<compile_context>
chip_gen: v6e
topology: v6e:2x2x1
jax: 0.10.0
libtpu: 0.0.40
codegen_flags: <defaults>
</compile_context>

<pallas_src>
import functools

import jax
import jax.numpy as jnp
from jax import lax
from jax.experimental import pallas as pl
from jax.experimental.pallas import tpu as pltpu


def _ggnn_kernel(x_ref, abd_ref, w_ref, wih_ref, whh_ref, bih_ref, bhh_ref, o_ref,
                 *, num_layers, tb, n, c_pad, compute_dtype, unroll_layers):
    """One grid step: full GGNN recurrence for `tb` graphs (rows = tb*n nodes)."""
    rows = tb * n
    # Hidden state kept in f32; padded feature lanes provably stay zero through the GRU.
    h = x_ref[...].reshape(rows, c_pad)
    # Block-diagonal, transposed, binarized adjacency for this step's tb graphs:
    # a single lane-dense (rows, rows) operand -> one large MXU matmul per layer.
    a_bd = abd_ref[0]
    # Resident weights / biases loaded once (hoisted out of the layer loop).
    wih = wih_ref[...]
    whh = whh_ref[...]
    bih = bih_ref[...]
    bhh = bhh_ref[...]

    def layer_step(w_l, h_cur):
        h_c = h_cur.astype(compute_dtype)        # single cast, reused by both h-dots
        m = jnp.dot(h_c, w_l, preferred_element_type=jnp.float32)          # (rows, c_pad)
        agg = jnp.dot(a_bd, m.astype(compute_dtype),
                      preferred_element_type=jnp.float32)                  # A_bd @ m
        # GRUCell(agg, h) with PyTorch gate order [r | z | n]; gate slices are
        # 128-lane aligned because the feature dim is padded to c_pad.
        gi = jnp.dot(agg.astype(compute_dtype), wih,
                     preferred_element_type=jnp.float32) + bih             # (rows, 3*c_pad)
        gh = jnp.dot(h_c, whh, preferred_element_type=jnp.float32) + bhh
        r = jax.nn.sigmoid(gi[:, :c_pad] + gh[:, :c_pad])
        z = jax.nn.sigmoid(gi[:, c_pad:2 * c_pad] + gh[:, c_pad:2 * c_pad])
        ng = jnp.tanh(gi[:, 2 * c_pad:] + r * gh[:, 2 * c_pad:])
        return (1.0 - z) * ng + z * h_cur

    if unroll_layers:
        for l in range(num_layers):              # small L: static unroll
            h = layer_step(w_ref[l], h)
    else:                                        # large L: bound live ranges with a loop
        h = lax.fori_loop(0, num_layers, lambda l, hh: layer_step(w_ref[l], hh), h)

    o_ref[...] = h.reshape(tb, n, c_pad).astype(o_ref.dtype)


def _pad_axis(x, axis, new_size):
    pad = [(0, 0)] * x.ndim
    pad[axis] = (0, new_size - x.shape[axis])
    return jnp.pad(x, pad)


def _pad_gru_matrix(w, c, c_pad):
    # (c, 3c) with gates [r|z|n] along columns -> (c_pad, 3*c_pad), per-gate 128-wide blocks.
    blocks = []
    for g in range(3):
        blk = w[:, g * c:(g + 1) * c]
        blocks.append(jnp.pad(blk, ((0, c_pad - w.shape[0]), (0, c_pad - c))))
    return jnp.concatenate(blocks, axis=1)


def _pad_gru_bias(b, c, c_pad):
    blocks = [jnp.pad(b[g * c:(g + 1) * c], (0, c_pad - c)) for g in range(3)]
    return jnp.concatenate(blocks).reshape(1, 3 * c_pad)


def _pick_graphs_per_block(B, N, requested):
    """Graphs per grid step. rows = tb*N targets 256 (fills the v6e/v7x MXU; 2x the v5e
    128 tile), never pads a tiny batch into mostly-throwaway graphs, and prefers >= 2
    grid steps so both v7x TensorCores get work."""
    if requested is not None:
        return max(1, requested)
    tb = max(1, pl.cdiv(256, N))                 # rows >= 256
    tb = min(tb, B)                              # no more padding graphs than real ones
    if pl.cdiv(B, tb) == 1 and tb > 1 and (tb // 2) * N >= 128:
        tb = pl.cdiv(tb, 2)                      # split so the 2 v7x cores both get a step
    return tb


@functools.partial(jax.jit,
                   static_argnames=("out_channels", "graphs_per_block", "compute_dtype"))
def dense_ggnn_forward(x, adj, w, w_ih, b_ih, w_hh, b_hh, *,
                       out_channels, graphs_per_block=None,
                       compute_dtype=jnp.float32):
    B, N, D = x.shape
    L, C, _ = w.shape
    assert C == out_channels and D <= C

    c_pad = ((C + 127) // 128) * 128             # lane-dense feature width
    tb = _pick_graphs_per_block(B, N, graphs_per_block)
    b_pad = pl.cdiv(B, tb) * tb
    num_blocks = b_pad // tb
    rows = tb * N

    # Features: zero-pad D -> c_pad (this also implements GatedGraphConv's D < C padding)
    # and batch B -> b_pad; padded graphs have empty adjacency and are sliced off below.
    # TODO(synk): x is shipped zero-padded to c_pad through HBM; for very large batches it
    # could be padded in-kernel instead to cut x DMA bytes (matters most on v5e HBM BW).
    x_p = _pad_axis(_pad_axis(x.astype(jnp.float32), 2, c_pad), 0, b_pad)

    # Adjacency: binarize + transpose on the host (0/1 is exact in bf16), then assemble one
    # block-diagonal (rows, rows) matrix per grid step so the per-graph aggregation becomes
    # a single large MXU matmul instead of tb tiny (N x N) ones.  This is the dense
    # equivalent of dense_to_sparse + per-graph edge-index offsets + scatter-add.
    a_t = jnp.swapaxes((adj != 0).astype(compute_dtype), 1, 2)           # A^T, (B, N, N)
    a_t = _pad_axis(a_t, 0, b_pad).reshape(num_blocks, tb, N, N)
    eye = jnp.eye(tb, dtype=compute_dtype)
    a_bd = jnp.einsum("ij,ginm->ginjm", eye, a_t).reshape(num_blocks, rows, rows)

    # Weights cast to compute_dtype on the host (halves their HBM->VMEM DMA in bf16 and
    # removes per-step in-kernel casts); biases stay f32 (added to f32 accumulators).
    w_p = jnp.pad(w.astype(jnp.float32),
                  ((0, 0), (0, c_pad - C), (0, c_pad - C))).astype(compute_dtype)
    wih_p = _pad_gru_matrix(w_ih.astype(jnp.float32), C, c_pad).astype(compute_dtype)
    whh_p = _pad_gru_matrix(w_hh.astype(jnp.float32), C, c_pad).astype(compute_dtype)
    bih_p = _pad_gru_bias(b_ih.astype(jnp.float32), C, c_pad)
    bhh_p = _pad_gru_bias(b_hh.astype(jnp.float32), C, c_pad)

    # VMEM budget: estimate this tiling's footprint and leave headroom, capped against the
    # generation's VMEM capacity (v7x 64 MiB, v5e/v6e 128 MiB) instead of a fixed 32 MiB.
    cbytes = jnp.dtype(compute_dtype).itemsize
    blk_bytes = (2 * (tb * N * c_pad * 4)                    # x block (double-buffered)
                 + 2 * (tb * N * c_pad * 4)                  # out block
                 + 2 * (rows * rows * cbytes)                # block-diag adjacency
                 + 2 * (L * c_pad * c_pad * cbytes)          # W (resident)
                 + 2 * 2 * (c_pad * 3 * c_pad * cbytes)      # W_ih, W_hh (resident)
                 + 8 * rows * 3 * c_pad * 4)                 # live intermediates (generous)
    try:
        vmem_cap = int(pltpu.get_tpu_info().vmem_capacity_bytes)
    except Exception:                                        # fall back to smallest (v7x)
        vmem_cap = 64 * 1024 * 1024
    vmem_limit = int(min(max(2 * blk_bytes, 32 * 1024 * 1024), 0.75 * vmem_cap))

    kernel = functools.partial(_ggnn_kernel, num_layers=L, tb=tb, n=N, c_pad=c_pad,
                               compute_dtype=compute_dtype, unroll_layers=(L <= 3))

    # NOTE: for very large out_channels on v7x, the five resident weight/bias specs below
    # can additionally use pipeline_mode=pl.Buffered(1) to drop their second VMEM buffer.
    out_p = pl.pallas_call(
        kernel,
        out_shape=jax.ShapeDtypeStruct((b_pad, N, c_pad), jnp.float32),
        grid_spec=pltpu.PrefetchScalarGridSpec(
            num_scalar_prefetch=0,
            grid=(num_blocks,),
            in_specs=[
                pl.BlockSpec((tb, N, c_pad), lambda b: (b, 0, 0)),       # x       (per step)
                pl.BlockSpec((1, rows, rows), lambda b: (b, 0, 0)),      # A_bd^T  (per step)
                pl.BlockSpec((L, c_pad, c_pad), lambda b: (0, 0, 0)),    # W       (resident)
                pl.BlockSpec((c_pad, 3 * c_pad), lambda b: (0, 0)),      # W_ih    (resident)
                pl.BlockSpec((c_pad, 3 * c_pad), lambda b: (0, 0)),      # W_hh    (resident)
                pl.BlockSpec((1, 3 * c_pad), lambda b: (0, 0)),          # b_ih    (resident)
                pl.BlockSpec((1, 3 * c_pad), lambda b: (0, 0)),          # b_hh    (resident)
            ],
            out_specs=pl.BlockSpec((tb, N, c_pad), lambda b: (b, 0, 0)),
        ),
        compiler_params=pltpu.CompilerParams(
            dimension_semantics=("parallel",),        # megacore-shard the graph axis (v7x)
            vmem_limit_bytes=vmem_limit,
        ),
    )(x_p, a_bd, w_p, wih_p, whh_p, bih_p, bhh_p)

    return out_p[:B, :, :C]


def dense_ggnn_reference(x, adj, w, w_ih, b_ih, w_hh, b_hh, out_channels):
    """Plain-JAX reference of the same math (PyG GatedGraphConv over dense adj)."""
    B, N, D = x.shape
    C = out_channels
    prec = lax.Precision.HIGHEST
    h = jnp.pad(x, ((0, 0), (0, 0), (0, C - D)))
    a = (adj != 0).astype(jnp.float32)
    for l in range(w.shape[0]):
        m = jnp.einsum("bnc,cd->bnd", h, w[l], precision=prec)
        agg = jnp.einsum("bij,bid->bjd", a, m, precision=prec)          # A^T @ m
        gi = jnp.einsum("bnc,cd->bnd", agg, w_ih, precision=prec) + b_ih
        gh = jnp.einsum("bnc,cd->bnd", h, w_hh, precision=prec) + b_hh
        r = jax.nn.sigmoid(gi[..., :C] + gh[..., :C])
        z = jax.nn.sigmoid(gi[..., C:2 * C] + gh[..., C:2 * C])
        ng = jnp.tanh(gi[..., 2 * C:] + r * gh[..., 2 * C:])
        h = (1.0 - z) * ng + z * h
    return h


if __name__ == "__main__":
    B, N, D_in = 24, 16, 16          # auto tb=16 -> rows=256 per step, 2 grid steps (b_pad=32)
    out_channels = 32
    num_layers = 2

    key = jax.random.PRNGKey(0)
    kx, ka, kw, kih, khh, kbi, kbh, kw4 = jax.random.split(key, 8)

    x = jax.random.normal(kx, (B, N, D_in), jnp.float32)
    adj = (jax.random.uniform(ka, (B, N, N)) < 0.3).astype(jnp.float32)

    C = out_channels
    s = 1.0 / (C ** 0.5)             # PyTorch GRUCell / GatedGraphConv uniform init
    w = jax.random.uniform(kw, (num_layers, C, C), jnp.float32, -s, s)
    w_ih = jax.random.uniform(kih, (C, 3 * C), jnp.float32, -s, s)   # (in, 3*hidden), [r|z|n]
    w_hh = jax.random.uniform(khh, (C, 3 * C), jnp.float32, -s, s)
    b_ih = jax.random.uniform(kbi, (3 * C,), jnp.float32, -s, s)
    b_hh = jax.random.uniform(kbh, (3 * C,), jnp.float32, -s, s)

    # f32 compute path.
    out = dense_ggnn_forward(x, adj, w, w_ih, b_ih, w_hh, b_hh, out_channels=out_channels)
    jax.block_until_ready(out)
    assert out.shape == (B, N, out_channels), out.shape

    ref = dense_ggnn_reference(x, adj, w, w_ih, b_ih, w_hh, b_hh, out_channels)
    assert bool(jnp.allclose(out, ref, atol=1e-4, rtol=1e-4)), \
        float(jnp.max(jnp.abs(out - ref)))

    # bf16 matmul operands / f32 accumulation (v6e/v7x MXU-friendly path), looser tolerance.
    out_bf16 = dense_ggnn_forward(x, adj, w, w_ih, b_ih, w_hh, b_hh,
                                  out_channels=out_channels, compute_dtype=jnp.bfloat16)
    jax.block_until_ready(out_bf16)
    assert bool(jnp.allclose(out_bf16, ref, atol=5e-2, rtol=5e-2)), \
        float(jnp.max(jnp.abs(out_bf16 - ref)))

    # Deeper recurrence exercises the lax.fori_loop layer path (used when num_layers > 3).
    w4 = jax.random.uniform(kw4, (4, C, C), jnp.float32, -s, s)
    out4 = dense_ggnn_forward(x, adj, w4, w_ih, b_ih, w_hh, b_hh, out_channels=out_channels)
    jax.block_until_ready(out4)
    ref4 = dense_ggnn_reference(x, adj, w4, w_ih, b_ih, w_hh, b_hh, out_channels)
    assert bool(jnp.allclose(out4, ref4, atol=1e-3, rtol=1e-3)), \
        float(jnp.max(jnp.abs(out4 - ref4)))

    print("KERNEL_OK")
</pallas_src>

<mosaic_0001>
module attributes {stable_mosaic.version = 11 : i64} {
  func.func @_ggnn_kernel(%arg0: i32, %arg1: memref<16x16x128xf32, #tpu.memory_space<vmem>>, %arg2: memref<1x256x256xf32, #tpu.memory_space<vmem>>, %arg3: memref<2x128x128xf32, #tpu.memory_space<vmem>>, %arg4: memref<128x384xf32, #tpu.memory_space<vmem>>, %arg5: memref<128x384xf32, #tpu.memory_space<vmem>>, %arg6: memref<1x384xf32, #tpu.memory_space<vmem>>, %arg7: memref<1x384xf32, #tpu.memory_space<vmem>>, %arg8: memref<16x16x128xf32, #tpu.memory_space<vmem>>) attributes {dimension_semantics = [#tpu.dimension_semantics<parallel>], iteration_bounds = array<i64: 2>, scalar_prefetch = 0 : i64, scratch_operands = 0 : i64, tpu.core_type = #tpu.core_type<tc>, window_params = [{transform_indices = @transform_0, window_bounds = array<i64: 16, 16, 128>}, {transform_indices = @transform_1, window_bounds = array<i64: 1, 256, 256>}, {pipeline_mode = #tpu.pipeline_mode<synchronous>, transform_indices = @transform_2, window_bounds = array<i64: 2, 128, 128>}, {pipeline_mode = #tpu.pipeline_mode<synchronous>, transform_indices = @transform_3, window_bounds = array<i64: 128, 384>}, {pipeline_mode = #tpu.pipeline_mode<synchronous>, transform_indices = @transform_4, window_bounds = array<i64: 128, 384>}, {pipeline_mode = #tpu.pipeline_mode<synchronous>, transform_indices = @transform_5, window_bounds = array<i64: 1, 384>}, {pipeline_mode = #tpu.pipeline_mode<synchronous>, transform_indices = @transform_6, window_bounds = array<i64: 1, 384>}, {transform_indices = @transform_7, window_bounds = array<i64: 16, 16, 128>}]} {
    %c0 = arith.constant 0 : index
    %c0_0 = arith.constant 0 : index
    %c0_1 = arith.constant 0 : index
    %0 = vector.load %arg1[%c0, %c0_0, %c0_1] : memref<16x16x128xf32, #tpu.memory_space<vmem>>, vector<16x16x128xf32>
    %1 = vector.shape_cast %0 : vector<16x16x128xf32> to vector<256x128xf32>
    %c0_2 = arith.constant 0 : index
    %c0_3 = arith.constant 0 : index
    %c0_4 = arith.constant 0 : index
    %2 = vector.load %arg2[%c0_2, %c0_3, %c0_4] : memref<1x256x256xf32, #tpu.memory_space<vmem>>, vector<1x256x256xf32>
    %3 = vector.shape_cast %2 : vector<1x256x256xf32> to vector<256x256xf32>
    %c0_5 = arith.constant 0 : index
    %c0_6 = arith.constant 0 : index
    %4 = vector.load %arg4[%c0_5, %c0_6] : memref<128x384xf32, #tpu.memory_space<vmem>>, vector<128x384xf32>
    %c0_7 = arith.constant 0 : index
    %c0_8 = arith.constant 0 : index
    %5 = vector.load %arg5[%c0_7, %c0_8] : memref<128x384xf32, #tpu.memory_space<vmem>>, vector<128x384xf32>
    %c0_9 = arith.constant 0 : index
    %c0_10 = arith.constant 0 : index
    %6 = vector.load %arg6[%c0_9, %c0_10] : memref<1x384xf32, #tpu.memory_space<vmem>>, vector<1x384xf32>
    %c0_11 = arith.constant 0 : index
    %c0_12 = arith.constant 0 : index
    %7 = vector.load %arg7[%c0_11, %c0_12] : memref<1x384xf32, #tpu.memory_space<vmem>>, vector<1x384xf32>
    %c0_13 = arith.constant 0 : index
    %c0_14 = arith.constant 0 : index
    %c0_15 = arith.constant 0 : index
    %8 = vector.load %arg3[%c0_13, %c0_14, %c0_15] : memref<2x128x128xf32, #tpu.memory_space<vmem>>, vector<1x128x128xf32>
    %9 = vector.shape_cast %8 : vector<1x128x128xf32> to vector<128x128xf32>
    %cst = arith.constant dense<0.000000e+00> : vector<256x128xf32>
    %10 = tpu.matmul %1, %9, %cst {dimension_numbers = #tpu.dot_dimension_numbers<[1], [0], [0], [1], [0, 0, 1, 1], [], []>} : vector<256x128xf32>, vector<128x128xf32>, vector<256x128xf32> -> vector<256x128xf32>
    %cst_16 = arith.constant dense<0.000000e+00> : vector<256x128xf32>
    %11 = tpu.matmul %3, %10, %cst_16 {dimension_numbers = #tpu.dot_dimension_numbers<[1], [0], [0], [1], [0, 0, 1, 1], [], []>} : vector<256x256xf32>, vector<256x128xf32>, vector<256x128xf32> -> vector<256x128xf32>
    %cst_17 = arith.constant dense<0.000000e+00> : vector<256x384xf32>
    %12 = tpu.matmul %11, %4, %cst_17 {dimension_numbers = #tpu.dot_dimension_numbers<[1], [0], [0], [1], [0, 0, 1, 1], [], []>} : vector<256x128xf32>, vector<128x384xf32>, vector<256x384xf32> -> vector<256x384xf32>
    %13 = vector.broadcast %6 : vector<1x384xf32> to vector<256x384xf32>
    %14 = arith.addf %12, %13 : vector<256x384xf32>
    %cst_18 = arith.constant dense<0.000000e+00> : vector<256x384xf32>
    %15 = tpu.matmul %1, %5, %cst_18 {dimension_numbers = #tpu.dot_dimension_numbers<[1], [0], [0], [1], [0, 0, 1, 1], [], []>} : vector<256x128xf32>, vector<128x384xf32>, vector<256x384xf32> -> vector<256x384xf32>
    %16 = vector.broadcast %7 : vector<1x384xf32> to vector<256x384xf32>
    %17 = arith.addf %15, %16 : vector<256x384xf32>
    %18 = vector.extract_strided_slice %14 {offsets = [0, 0], sizes = [256, 128], strides = [1, 1]} : vector<256x384xf32> to vector<256x128xf32>
    %19 = vector.extract_strided_slice %17 {offsets = [0, 0], sizes = [256, 128], strides = [1, 1]} : vector<256x384xf32> to vector<256x128xf32>
    %20 = arith.addf %18, %19 : vector<256x128xf32>
    %21 = arith.negf %20 : vector<256x128xf32>
    %22 = math.exp %21 : vector<256x128xf32>
    %cst_19 = arith.constant 1.000000e+00 : f32
    %23 = vector.broadcast %cst_19 : f32 to vector<256x128xf32>
    %24 = arith.addf %23, %22 : vector<256x128xf32>
    %25 = arith.divf %23, %24 : vector<256x128xf32>
    %26 = vector.extract_strided_slice %14 {offsets = [0, 128], sizes = [256, 128], strides = [1, 1]} : vector<256x384xf32> to vector<256x128xf32>
    %27 = vector.extract_strided_slice %17 {offsets = [0, 128], sizes = [256, 128], strides = [1, 1]} : vector<256x384xf32> to vector<256x128xf32>
    %28 = arith.addf %26, %27 : vector<256x128xf32>
    %29 = arith.negf %28 : vector<256x128xf32>
    %30 = math.exp %29 : vector<256x128xf32>
    %cst_20 = arith.constant 1.000000e+00 : f32
    %31 = vector.broadcast %cst_20 : f32 to vector<256x128xf32>
    %32 = arith.addf %31, %30 : vector<256x128xf32>
    %33 = arith.divf %31, %32 : vector<256x128xf32>
    %34 = vector.extract_strided_slice %14 {offsets = [0, 256], sizes = [256, 128], strides = [1, 1]} : vector<256x384xf32> to vector<256x128xf32>
    %35 = vector.extract_strided_slice %17 {offsets = [0, 256], sizes = [256, 128], strides = [1, 1]} : vector<256x384xf32> to vector<256x128xf32>
    %36 = arith.mulf %25, %35 : vector<256x128xf32>
    %37 = arith.addf %34, %36 : vector<256x128xf32>
    %38 = math.tanh %37 : vector<256x128xf32>
    %cst_21 = arith.constant 1.000000e+00 : f32
    %39 = vector.broadcast %cst_21 : f32 to vector<256x128xf32>
    %40 = arith.subf %39, %33 : vector<256x128xf32>
    %41 = arith.mulf %40, %38 : vector<256x128xf32>
    %42 = arith.mulf %33, %1 : vector<256x128xf32>
    %43 = arith.addf %41, %42 : vector<256x128xf32>
    %c1 = arith.constant 1 : index
    %c0_22 = arith.constant 0 : index
    %c0_23 = arith.constant 0 : index
    %44 = vector.load %arg3[%c1, %c0_22, %c0_23] : memref<2x128x128xf32, #tpu.memory_space<vmem>>, vector<1x128x128xf32>
    %45 = vector.shape_cast %44 : vector<1x128x128xf32> to vector<128x128xf32>
    %cst_24 = arith.constant dense<0.000000e+00> : vector<256x128xf32>
    %46 = tpu.matmul %43, %45, %cst_24 {dimension_numbers = #tpu.dot_dimension_numbers<[1], [0], [0], [1], [0, 0, 1, 1], [], []>} : vector<256x128xf32>, vector<128x128xf32>, vector<256x128xf32> -> vector<256x128xf32>
    %cst_25 = arith.constant dense<0.000000e+00> : vector<256x128xf32>
    %47 = tpu.matmul %3, %46, %cst_25 {dimension_numbers = #tpu.dot_dimension_numbers<[1], [0], [0], [1], [0, 0, 1, 1], [], []>} : vector<256x256xf32>, vector<256x128xf32>, vector<256x128xf32> -> vector<256x128xf32>
    %cst_26 = arith.constant dense<0.000000e+00> : vector<256x384xf32>
    %48 = tpu.matmul %47, %4, %cst_26 {dimension_numbers = #tpu.dot_dimension_numbers<[1], [0], [0], [1], [0, 0, 1, 1], [], []>} : vector<256x128xf32>, vector<128x384xf32>, vector<256x384xf32> -> vector<256x384xf32>
    %49 = vector.broadcast %6 : vector<1x384xf32> to vector<256x384xf32>
    %50 = arith.addf %48, %49 : vector<256x384xf32>
    %cst_27 = arith.constant dense<0.000000e+00> : vector<256x384xf32>
    %51 = tpu.matmul %43, %5, %cst_27 {dimension_numbers = #tpu.dot_dimension_numbers<[1], [0], [0], [1], [0, 0, 1, 1], [], []>} : vector<256x128xf32>, vector<128x384xf32>, vector<256x384xf32> -> vector<256x384xf32>
    %52 = vector.broadcast %7 : vector<1x384xf32> to vector<256x384xf32>
    %53 = arith.addf %51, %52 : vector<256x384xf32>
    %54 = vector.extract_strided_slice %50 {offsets = [0, 0], sizes = [256, 128], strides = [1, 1]} : vector<256x384xf32> to vector<256x128xf32>
    %55 = vector.extract_strided_slice %53 {offsets = [0, 0], sizes = [256, 128], strides = [1, 1]} : vector<256x384xf32> to vector<256x128xf32>
    %56 = arith.addf %54, %55 : vector<256x128xf32>
    %57 = arith.negf %56 : vector<256x128xf32>
    %58 = math.exp %57 : vector<256x128xf32>
    %cst_28 = arith.constant 1.000000e+00 : f32
    %59 = vector.broadcast %cst_28 : f32 to vector<256x128xf32>
    %60 = arith.addf %59, %58 : vector<256x128xf32>
    %61 = arith.divf %59, %60 : vector<256x128xf32>
    %62 = vector.extract_strided_slice %50 {offsets = [0, 128], sizes = [256, 128], strides = [1, 1]} : vector<256x384xf32> to vector<256x128xf32>
    %63 = vector.extract_strided_slice %53 {offsets = [0, 128], sizes = [256, 128], strides = [1, 1]} : vector<256x384xf32> to vector<256x128xf32>
    %64 = arith.addf %62, %63 : vector<256x128xf32>
    %65 = arith.negf %64 : vector<256x128xf32>
    %66 = math.exp %65 : vector<256x128xf32>
    %cst_29 = arith.constant 1.000000e+00 : f32
    %67 = vector.broadcast %cst_29 : f32 to vector<256x128xf32>
    %68 = arith.addf %67, %66 : vector<256x128xf32>
    %69 = arith.divf %67, %68 : vector<256x128xf32>
    %70 = vector.extract_strided_slice %50 {offsets = [0, 256], sizes = [256, 128], strides = [1, 1]} : vector<256x384xf32> to vector<256x128xf32>
    %71 = vector.extract_strided_slice %53 {offsets = [0, 256], sizes = [256, 128], strides = [1, 1]} : vector<256x384xf32> to vector<256x128xf32>
    %72 = arith.mulf %61, %71 : vector<256x128xf32>
    %73 = arith.addf %70, %72 : vector<256x128xf32>
    %74 = math.tanh %73 : vector<256x128xf32>
    %cst_30 = arith.constant 1.000000e+00 : f32
    %75 = vector.broadcast %cst_30 : f32 to vector<256x128xf32>
    %76 = arith.subf %75, %69 : vector<256x128xf32>
    %77 = arith.mulf %76, %74 : vector<256x128xf32>
    %78 = arith.mulf %69, %43 : vector<256x128xf32>
    %79 = arith.addf %77, %78 : vector<256x128xf32>
    %80 = vector.shape_cast %79 : vector<256x128xf32> to vector<16x16x128xf32>
    %c0_31 = arith.constant 0 : index
    %c0_32 = arith.constant 0 : index
    %c0_33 = arith.constant 0 : index
    %81 = vector.load %arg8[%c0_31, %c0_32, %c0_33] : memref<16x16x128xf32, #tpu.memory_space<vmem>>, vector<16x16x128xf32>
    tpu.vector_store %arg8[%c0_31, %c0_32, %c0_33], %80 {strides = array<i32>} : memref<16x16x128xf32, #tpu.memory_space<vmem>>, vector<16x16x128xf32>,
    return
  }
  func.func @transform_0(%arg0: i32) -> (i32, i32, i32) {
    %c0_i32 = arith.constant 0 : i32
    %c0_i32_0 = arith.constant 0 : i32
    %c0_i32_1 = arith.constant 0 : i32
    return %arg0, %c0_i32, %c0_i32_0 : i32, i32, i32
  }
  func.func @transform_1(%arg0: i32) -> (i32, i32, i32) {
    %c0_i32 = arith.constant 0 : i32
    %c0_i32_0 = arith.constant 0 : i32
    %c0_i32_1 = arith.constant 0 : i32
    return %arg0, %c0_i32, %c0_i32_0 : i32, i32, i32
  }
  func.func @transform_2(%arg0: i32) -> (i32, i32, i32) {
    %c0_i32 = arith.constant 0 : i32
    %c0_i32_0 = arith.constant 0 : i32
    %c0_i32_1 = arith.constant 0 : i32
    %c0_i32_2 = arith.constant 0 : i32
    return %c0_i32, %c0_i32_0, %c0_i32_1 : i32, i32, i32
  }
  func.func @transform_3(%arg0: i32) -> (i32, i32) {
    %c0_i32 = arith.constant 0 : i32
    %c0_i32_0 = arith.constant 0 : i32
    %c0_i32_1 = arith.constant 0 : i32
    return %c0_i32, %c0_i32_0 : i32, i32
  }
  func.func @transform_4(%arg0: i32) -> (i32, i32) {
    %c0_i32 = arith.constant 0 : i32
    %c0_i32_0 = arith.constant 0 : i32
    %c0_i32_1 = arith.constant 0 : i32
    return %c0_i32, %c0_i32_0 : i32, i32
  }
  func.func @transform_5(%arg0: i32) -> (i32, i32) {
    %c0_i32 = arith.constant 0 : i32
    %c0_i32_0 = arith.constant 0 : i32
    %c0_i32_1 = arith.constant 0 : i32
    return %c0_i32, %c0_i32_0 : i32, i32
  }
  func.func @transform_6(%arg0: i32) -> (i32, i32) {
    %c0_i32 = arith.constant 0 : i32
    %c0_i32_0 = arith.constant 0 : i32
    %c0_i32_1 = arith.constant 0 : i32
    return %c0_i32, %c0_i32_0 : i32, i32
  }
  func.func @transform_7(%arg0: i32) -> (i32, i32, i32) {
    %c0_i32 = arith.constant 0 : i32
    %c0_i32_0 = arith.constant 0 : i32
    %c0_i32_1 = arith.constant 0 : i32
    return %arg0, %c0_i32, %c0_i32_0 : i32, i32, i32
  }
}

</mosaic_0001>

<llo_original>
// kernel: dense_ggnn_forward.1
$region0: #{dense_ggnn_forward.1}
  #allocation0 [shape = 'u32[]', space=smem, size = 0x4, offset = 0x4, fixed_abs, tag = 'smem constant byte address 0x4 - core index']
  #allocation1 [shape = 'u32[144,128]{1,0:T(1,128)}', space=vmem, size = 0x12000, scoped, tag = 'internal scratch']
  %s0 = inlined_call_operand.vmem [shape: f32[32,16,128], index: 0, kind: input, shape index: {}]
  %s1 = inlined_call_operand.vmem [shape: f32[2,256,256], index: 1, kind: input, shape index: {}]
  %s2 = inlined_call_operand.vmem [shape: f32[2,128,128], index: 2, kind: input, shape index: {}]
  %s3 = inlined_call_operand.vmem [shape: f32[128,384], index: 3, kind: input, shape index: {}]
  %s4 = inlined_call_operand.vmem [shape: f32[128,384], index: 4, kind: input, shape index: {}]
  %s5 = inlined_call_operand.vmem [shape: f32[1,384], index: 5, kind: input, shape index: {}]
  %s6 = inlined_call_operand.vmem [shape: f32[1,384], index: 6, kind: input, shape index: {}]
  %s7 = inlined_call_operand.vmem [shape: f32[32,16,128], index: 7, kind: output, shape index: {}]
  %s8 = sld [smem:[#allocation0]]
  $region61: #{dense_ggnn_forward.1} parent=0
    _
  %s10 = ssub.s32 1, %s8
  %s11 = scalar_select 0, %s10, %s8
  loop: start=0, step=1, limit=4
  $region2: #{dense_ggnn_forward.1} parent=0 // loop_pre_header
    _
  $region3: #{dense_ggnn_forward.1} parent=0 // loop_header
    %s13 = sphi 0, %s17
    %p14 = scmp.ge.s32.totalorder %s13, 4
    %s23 = sphi 0, %s25
    %s26 = sphi 0, %s23
    %s27 = sphi 0, %s26
    %s43 = sphi 0, %s27
    %s49 = sphi 0, %s51
    %s52 = sphi 0, %s49
    %s53 = sphi 0, %s52
    %s69 = sphi 0, %s53
    %s73 = sphi 0, %s73
    %s75 = sphi 0, %s73
    %s76 = sphi 0, %s75
    %s90 = sphi 0, %s76
    %s94 = sphi 0, %s94
    %s96 = sphi 0, %s94
    %s97 = sphi 0, %s96
    %s111 = sphi 0, %s97
    %s115 = sphi 0, %s115
    %s117 = sphi 0, %s115
    %s118 = sphi 0, %s117
    %s132 = sphi 0, %s118
    %s136 = sphi 0, %s136
    %s138 = sphi 0, %s136
    %s139 = sphi 0, %s138
    %s153 = sphi 0, %s139
    %s157 = sphi 0, %s157
    %s159 = sphi 0, %s157
    %s160 = sphi 0, %s159
    %s174 = sphi 0, %s160
    %s180 = sphi 0, %s182
    %s183 = sphi 0, %s180
    %s184 = sphi 0, %s183
    %s200 = sphi 0, %s184
  $region4: #{dense_ggnn_forward.1} parent=0 // loop_header_branch
    %16 = sbr.rel (%p14) target = $region8
  $region5: #{dense_ggnn_forward.1} parent=0 // loop_body
    %s18 = ssub.s32 %s13, 1
    %s19 = ssub.s32 %s13, 2
    %s20 = sadd.s32 %s13, 1
    %s21 = ssub.s32 %s13, %s20
    %p22 = scmp.eq.s32.totalorder %s21, 0
    %s24 = sadd.s32 %s23, 1
    %s25 = scalar_select %p22, %s23, %s24
    %p28 = pneg %p22
    %p29 = scmp.eq.s32.totalorder %s13, 1
    %p30 = por %p28, %p29
    %p31 = scmp.ne.s32.totalorder %s23, %s26
    %p32 = scmp.eq.s32.totalorder %s13, 0
    %p33 = por %p31, %p32
    %p34 = scmp.ne.s32.totalorder %s23, %s26
    %p35 = scmp.eq.s32.totalorder %s18, 1
    %p36 = por %p34, %p35
    %p37 = scmp.ne.s32.totalorder %s26, %s27
    %p38 = scmp.eq.s32.totalorder %s18, 0
    %p39 = por %p37, %p38
    %p40 = scmp.ne.s32.totalorder %s26, %s27
    %p41 = scmp.eq.s32.totalorder %s19, 1
    %p42 = por %p40, %p41
    %p44 = scmp.ne.s32.totalorder %s27, %s43
    %p45 = scmp.eq.s32.totalorder %s19, 0
    %p46 = por %p44, %p45
    %s47 = ssub.s32 %s13, %s20
    %p48 = scmp.eq.s32.totalorder %s47, 0
    %s50 = sadd.s32 %s49, 1
    %s51 = scalar_select %p48, %s49, %s50
    %p54 = pneg %p48
    %p55 = scmp.eq.s32.totalorder %s13, 1
    %p56 = por %p54, %p55
    %p57 = scmp.ne.s32.totalorder %s49, %s52
    %p58 = scmp.eq.s32.totalorder %s13, 0
    %p59 = por %p57, %p58
    %p60 = scmp.ne.s32.totalorder %s49, %s52
    %p61 = scmp.eq.s32.totalorder %s18, 1
    %p62 = por %p60, %p61
    %p63 = scmp.ne.s32.totalorder %s52, %s53
    %p64 = scmp.eq.s32.totalorder %s18, 0
    %p65 = por %p63, %p64
    %p66 = scmp.ne.s32.totalorder %s52, %s53
    %p67 = scmp.eq.s32.totalorder %s19, 1
    %p68 = por %p66, %p67
    %p70 = scmp.ne.s32.totalorder %s53, %s69
    %p71 = scmp.eq.s32.totalorder %s19, 0
    %p72 = por %p70, %p71
    %s74 = sadd.s32 %s73, 1
    %p77 = scmp.eq.s32.totalorder %s13, 1
    %p78 = scmp.ne.s32.totalorder %s73, %s75
    %p79 = scmp.eq.s32.totalorder %s13, 0
    %p80 = por %p78, %p79
    %p81 = scmp.ne.s32.totalorder %s73, %s75
    %p82 = scmp.eq.s32.totalorder %s18, 1
    %p83 = por %p81, %p82
    %p84 = scmp.ne.s32.totalorder %s75, %s76
    %p85 = scmp.eq.s32.totalorder %s18, 0
    %p86 = por %p84, %p85
    %p87 = scmp.ne.s32.totalorder %s75, %s76
    %p88 = scmp.eq.s32.totalorder %s19, 1
    %p89 = por %p87, %p88
    %p91 = scmp.ne.s32.totalorder %s76, %s90
    %p92 = scmp.eq.s32.totalorder %s19, 0
    %p93 = por %p91, %p92
    %s95 = sadd.s32 %s94, 1
    %p98 = scmp.eq.s32.totalorder %s13, 1
    %p99 = scmp.ne.s32.totalorder %s94, %s96
    %p100 = scmp.eq.s32.totalorder %s13, 0
    %p101 = por %p99, %p100
    %p102 = scmp.ne.s32.totalorder %s94, %s96
    %p103 = scmp.eq.s32.totalorder %s18, 1
    %p104 = por %p102, %p103
    %p105 = scmp.ne.s32.totalorder %s96, %s97
    %p106 = scmp.eq.s32.totalorder %s18, 0
    %p107 = por %p105, %p106
    %p108 = scmp.ne.s32.totalorder %s96, %s97
    %p109 = scmp.eq.s32.totalorder %s19, 1
    %p110 = por %p108, %p109
    %p112 = scmp.ne.s32.totalorder %s97, %s111
    %p113 = scmp.eq.s32.totalorder %s19, 0
    %p114 = por %p112, %p113
    %s116 = sadd.s32 %s115, 1
    %p119 = scmp.eq.s32.totalorder %s13, 1
    %p120 = scmp.ne.s32.totalorder %s115, %s117
    %p121 = scmp.eq.s32.totalorder %s13, 0
    %p122 = por %p120, %p121
    %p123 = scmp.ne.s32.totalorder %s115, %s117
    %p124 = scmp.eq.s32.totalorder %s18, 1
    %p125 = por %p123, %p124
    %p126 = scmp.ne.s32.totalorder %s117, %s118
    %p127 = scmp.eq.s32.totalorder %s18, 0
    %p128 = por %p126, %p127
    %p129 = scmp.ne.s32.totalorder %s117, %s118
    %p130 = scmp.eq.s32.totalorder %s19, 1
    %p131 = por %p129, %p130
    %p133 = scmp.ne.s32.totalorder %s118, %s132
    %p134 = scmp.eq.s32.totalorder %s19, 0
    %p135 = por %p133, %p134
    %s137 = sadd.s32 %s136, 1
    %p140 = scmp.eq.s32.totalorder %s13, 1
    %p141 = scmp.ne.s32.totalorder %s136, %s138
    %p142 = scmp.eq.s32.totalorder %s13, 0
    %p143 = por %p141, %p142
    %p144 = scmp.ne.s32.totalorder %s136, %s138
    %p145 = scmp.eq.s32.totalorder %s18, 1
    %p146 = por %p144, %p145
    %p147 = scmp.ne.s32.totalorder %s138, %s139
    %p148 = scmp.eq.s32.totalorder %s18, 0
    %p149 = por %p147, %p148
    %p150 = scmp.ne.s32.totalorder %s138, %s139
    %p151 = scmp.eq.s32.totalorder %s19, 1
    %p152 = por %p150, %p151
    %p154 = scmp.ne.s32.totalorder %s139, %s153
    %p155 = scmp.eq.s32.totalorder %s19, 0
    %p156 = por %p154, %p155
    %s158 = sadd.s32 %s157, 1
    %p161 = scmp.eq.s32.totalorder %s13, 1
    %p162 = scmp.ne.s32.totalorder %s157, %s159
    %p163 = scmp.eq.s32.totalorder %s13, 0
    %p164 = por %p162, %p163
    %p165 = scmp.ne.s32.totalorder %s157, %s159
    %p166 = scmp.eq.s32.totalorder %s18, 1
    %p167 = por %p165, %p166
    %p168 = scmp.ne.s32.totalorder %s159, %s160
    %p169 = scmp.eq.s32.totalorder %s18, 0
    %p170 = por %p168, %p169
    %p171 = scmp.ne.s32.totalorder %s159, %s160
    %p172 = scmp.eq.s32.totalorder %s19, 1
    %p173 = por %p171, %p172
    %p175 = scmp.ne.s32.totalorder %s160, %s174
    %p176 = scmp.eq.s32.totalorder %s19, 0
    %p177 = por %p175, %p176
    %s178 = ssub.s32 %s13, %s20
    %p179 = scmp.eq.s32.totalorder %s178, 0
    %s181 = sadd.s32 %s180, 1
    %s182 = scalar_select %p179, %s180, %s181
    %p185 = pneg %p179
    %p186 = scmp.eq.s32.totalorder %s13, 1
    %p187 = por %p185, %p186
    %p188 = scmp.ne.s32.totalorder %s180, %s183
    %p189 = scmp.eq.s32.totalorder %s13, 0
    %p190 = por %p188, %p189
    %p191 = scmp.ne.s32.totalorder %s180, %s183
    %p192 = scmp.eq.s32.totalorder %s18, 1
    %p193 = por %p191, %p192
    %p194 = scmp.ne.s32.totalorder %s183, %s184
    %p195 = scmp.eq.s32.totalorder %s18, 0
    %p196 = por %p194, %p195
    %p197 = scmp.ne.s32.totalorder %s183, %s184
    %p198 = scmp.eq.s32.totalorder %s19, 1
    %p199 = por %p197, %p198
    %p201 = scmp.ne.s32.totalorder %s184, %s200
    %p202 = scmp.eq.s32.totalorder %s19, 0
    %p203 = por %p201, %p202
    %p204 = scmp.le.s32.totalorder 1, %s13
    %p205 = scmp.lt.s32.totalorder %s13, 3
    %p206 = pnand %p204, %p205
    %p207 = pneg %p206
    // Predicated region
    $region9: #{dense_ggnn_forward.1} parent=5 // pred_check
      _
    $region10: #{dense_ggnn_forward.1} parent=5 // pred_check_branch
      %209 = sbr.rel (%p206) target = $region12
    $region11: #{dense_ggnn_forward.1} parent=5 // pred_region
      %s210 = ssub.s32 %s13, 1
      // Predicated region
      $region13: #{dense_ggnn_forward.1} parent=11 // pred_check
        %p211 = pneg %p86
      $region14: #{dense_ggnn_forward.1} parent=11 // pred_check_branch
        %213 = sbr.rel (%p211) target = $region16
      $region15: #{dense_ggnn_forward.1} parent=11 // pred_region
        _
      $region16: #{dense_ggnn_forward.1} parent=11 // pred_fallthru
        _
      // Predicated region
      $region17: #{dense_ggnn_forward.1} parent=11 // pred_check
        %p214 = pneg %p107
      $region18: #{dense_ggnn_forward.1} parent=11 // pred_check_branch
        %216 = sbr.rel (%p214) target = $region20
      $region19: #{dense_ggnn_forward.1} parent=11 // pred_region
        _
      $region20: #{dense_ggnn_forward.1} parent=11 // pred_fallthru
        _
      // Predicated region
      $region21: #{dense_ggnn_forward.1} parent=11 // pred_check
        %p217 = pneg %p128
      $region22: #{dense_ggnn_forward.1} parent=11 // pred_check_branch
        %219 = sbr.rel (%p217) target = $region24
      $region23: #{dense_ggnn_forward.1} parent=11 // pred_region
        _
      $region24: #{dense_ggnn_forward.1} parent=11 // pred_fallthru
        _
      // Predicated region
      $region25: #{dense_ggnn_forward.1} parent=11 // pred_check
        %p220 = pneg %p149
      $region26: #{dense_ggnn_forward.1} parent=11 // pred_check_branch
        %222 = sbr.rel (%p220) target = $region28
      $region27: #{dense_ggnn_forward.1} parent=11 // pred_region
        _
      $region28: #{dense_ggnn_forward.1} parent=11 // pred_fallthru
        _
      // Predicated region
      $region29: #{dense_ggnn_forward.1} parent=11 // pred_check
        %p223 = pneg %p170
      $region30: #{dense_ggnn_forward.1} parent=11 // pred_check_branch
        %225 = sbr.rel (%p223) target = $region32
      $region31: #{dense_ggnn_forward.1} parent=11 // pred_region
        _
      $region32: #{dense_ggnn_forward.1} parent=11 // pred_fallthru
        _
    $region12: #{dense_ggnn_forward.1} parent=5 // pred_fallthru
      _
    %p226 = scmp.lt.s32.totalorder %s13, 2
    // Predicated region
    $region33: #{dense_ggnn_forward.1} parent=5 // pred_check
      %p227 = pneg %p226
    $region34: #{dense_ggnn_forward.1} parent=5 // pred_check_branch
      %229 = sbr.rel (%p227) target = $region36
    $region35: #{dense_ggnn_forward.1} parent=5 // pred_region
      // Predicated region
      $region37: #{dense_ggnn_forward.1} parent=35 // pred_check
        %p230 = pneg %p33
      $region38: #{dense_ggnn_forward.1} parent=35 // pred_check_branch
        %232 = sbr.rel (%p230) target = $region40
      $region39: #{dense_ggnn_forward.1} parent=35 // pred_region
        %s233 = smul.u32 16, %s13
        %p234 = scmp.lt.s32.totalorder %s233, 31
        %s235 = scalar_select %p234, %s233, 31
        %s236 = smul.addr %s235, 2
        %s237 = smul.addr %s236, 8
        %s238 = scalar_lea.vmem %s0, %s237
        %s239 = smul.u32 16, %s13
      $region40: #{dense_ggnn_forward.1} parent=35 // pred_fallthru
        _
      // Predicated region
      $region41: #{dense_ggnn_forward.1} parent=35 // pred_check
        %p240 = pneg %p59
      $region42: #{dense_ggnn_forward.1} parent=35 // pred_check_branch
        %242 = sbr.rel (%p240) target = $region44
      $region43: #{dense_ggnn_forward.1} parent=35 // pred_region
        %p243 = scmp.lt.s32.totalorder %s13, 1
        %s244 = scalar_select %p243, %s13, 1
        %s245 = smul.addr %s244, 64
        %s246 = smul.addr %s245, 8
        %s247 = scalar_lea.vmem %s1, %s246
      $region44: #{dense_ggnn_forward.1} parent=35 // pred_fallthru
        _
    $region36: #{dense_ggnn_forward.1} parent=5 // pred_fallthru
      _
    %p248 = scmp.le.s32.totalorder 1, %s13
    %p249 = scmp.lt.s32.totalorder %s13, 3
    %p250 = pnand %p248, %p249
    %p251 = pneg %p250
    // Predicated region
    $region45: #{dense_ggnn_forward.1} parent=5 // pred_check
      _
    $region46: #{dense_ggnn_forward.1} parent=5 // pred_check_branch
      %253 = sbr.rel (%p250) target = $region48
    $region47: #{dense_ggnn_forward.1} parent=5 // pred_region
      %s254 = ssub.s32 %s13, 1
      %s255 = smul.u32 16, %s18
      %p256 = scmp.lt.s32.totalorder %s255, 31
      %s257 = scalar_select %p256, %s255, 31
      %s258 = smul.addr %s257, 2
      %s259 = smul.addr %s258, 8
      %s260 = scalar_lea.vmem %s0, %s259
      %p261 = pneg %p39
      %p262 = pneg %p36
      %p263 = scmp.lt.s32.totalorder %s18, 1
      %s264 = scalar_select %p263, %s18, 1
      %s265 = smul.addr %s264, 64
      %s266 = smul.addr %s265, 8
      %s267 = scalar_lea.vmem %s1, %s266
      %p268 = pneg %p65
      %p269 = pneg %p62
      %p270 = pneg %p86
      %p271 = pneg %p83
      %p272 = pneg %p107
      %p273 = pneg %p104
      %p274 = pneg %p128
      %p275 = pneg %p125
      %p276 = pneg %p149
      %p277 = pneg %p146
      %p278 = pneg %p170
      %p279 = pneg %p167
      %p280 = pneg %p196
      %p281 = pneg %p193
      %s282 = smul.u32 16, %s18
      %p283 = scmp.lt.s32.totalorder %s282, 31
      %s284 = scalar_select %p283, %s282, 31
      %s285 = smul.addr %s284, 2
      %s286 = smul.addr %s285, 8
      %s287 = scalar_lea.vmem %s7, %s286
      %s288 = smul.u32 16, %s18
      %p289 = scmp.lt.s32.totalorder %s288, 31
      %s290 = scalar_select %p289, %s288, 31
      %s291 = smul.addr %s290, 2
      %s292 = smul.addr %s291, 8
      %s293 = scalar_lea.vmem %s0, %s292
      %s294 = smul.u32 16, %s18
      %p295 = scmp.lt.s32.totalorder %s18, 1
      %s296 = scalar_select %p295, %s18, 1
      %s297 = smul.addr %s296, 64
      %s298 = smul.addr %s297, 8
      %s299 = scalar_lea.vmem %s1, %s298
      %s300 = smul.u32 16, %s18
      %p301 = scmp.lt.s32.totalorder %s300, 31
      %s302 = scalar_select %p301, %s300, 31
      %s303 = smul.addr %s302, 2
      %s304 = smul.addr %s303, 8
      %s305 = scalar_lea.vmem %s7, %s304
      %s306 = smul.u32 16, %s18
      %v307 = vld [vmem:[%s293] sm:$0xff]
      %v308 = vld [vmem:[%s293 + $0x8] sm:$0xff]
      %v309 = vld [vmem:[%s293 + $0x10] sm:$0xff]
      %v310 = vld [vmem:[%s293 + $0x18] sm:$0xff]
      %v311 = vld [vmem:[%s293 + $0x20] sm:$0xff]
      %v312 = vld [vmem:[%s293 + $0x28] sm:$0xff]
      %v313 = vld [vmem:[%s293 + $0x30] sm:$0xff]
      %v314 = vld [vmem:[%s293 + $0x38] sm:$0xff]
      %v315 = vld [vmem:[%s293 + $0x40] sm:$0xff]
      %v316 = vld [vmem:[%s293 + $0x48] sm:$0xff]
      %v317 = vld [vmem:[%s293 + $0x50] sm:$0xff]
      %v318 = vld [vmem:[%s293 + $0x58] sm:$0xff]
      %v319 = vld [vmem:[%s293 + $0x60] sm:$0xff]
      %v320 = vld [vmem:[%s293 + $0x68] sm:$0xff]
      %v321 = vld [vmem:[%s293 + $0x70] sm:$0xff]
      %v322 = vld [vmem:[%s293 + $0x78] sm:$0xff]
      %v323 = vld [vmem:[%s293 + $0x80] sm:$0xff]
      %v324 = vld [vmem:[%s293 + $0x88] sm:$0xff]
      %v325 = vld [vmem:[%s293 + $0x90] sm:$0xff]
      %v326 = vld [vmem:[%s293 + $0x98] sm:$0xff]
      %v327 = vld [vmem:[%s293 + $0xa0] sm:$0xff]
      %v328 = vld [vmem:[%s293 + $0xa8] sm:$0xff]
      %v329 = vld [vmem:[%s293 + $0xb0] sm:$0xff]
      %v330 = vld [vmem:[%s293 + $0xb8] sm:$0xff]
      %v331 = vld [vmem:[%s293 + $0xc0] sm:$0xff]
      %v332 = vld [vmem:[%s293 + $0xc8] sm:$0xff]
      %v333 = vld [vmem:[%s293 + $0xd0] sm:$0xff]
      %v334 = vld [vmem:[%s293 + $0xd8] sm:$0xff]
      %v335 = vld [vmem:[%s293 + $0xe0] sm:$0xff]
      %v336 = vld [vmem:[%s293 + $0xe8] sm:$0xff]
      %v337 = vld [vmem:[%s293 + $0xf0] sm:$0xff]
      %v338 = vld [vmem:[%s293 + $0xf8] sm:$0xff]
      %v339 = vld [vmem:[%s299] sm:$0xff]
      %v340 = vld [vmem:[%s299 + $0x8] sm:$0xff]
      %v341 = vld [vmem:[%s299 + $0x10] sm:$0xff]
      %v342 = vld [vmem:[%s299 + $0x18] sm:$0xff]
      %v343 = vld [vmem:[%s299 + $0x20] sm:$0xff]
      %v344 = vld [vmem:[%s299 + $0x28] sm:$0xff]
      %v345 = vld [vmem:[%s299 + $0x30] sm:$0xff]
      %v346 = vld [vmem:[%s299 + $0x38] sm:$0xff]
      %v347 = vld [vmem:[%s299 + $0x40] sm:$0xff]
      %v348 = vld [vmem:[%s299 + $0x48] sm:$0xff]
      %v349 = vld [vmem:[%s299 + $0x50] sm:$0xff]
      %v350 = vld [vmem:[%s299 + $0x58] sm:$0xff]
      %v351 = vld [vmem:[%s299 + $0x60] sm:$0xff]
      %v352 = vld [vmem:[%s299 + $0x68] sm:$0xff]
      %v353 = vld [vmem:[%s299 + $0x70] sm:$0xff]
      %v354 = vld [vmem:[%s299 + $0x78] sm:$0xff]
      %v355 = vld [vmem:[%s299 + $0x80] sm:$0xff]
      %v356 = vld [vmem:[%s299 + $0x88] sm:$0xff]
      %v357 = vld [vmem:[%s299 + $0x90] sm:$0xff]
      %v358 = vld [vmem:[%s299 + $0x98] sm:$0xff]
      %v359 = vld [vmem:[%s299 + $0xa0] sm:$0xff]
      %v360 = vld [vmem:[%s299 + $0xa8] sm:$0xff]
      %v361 = vld [vmem:[%s299 + $0xb0] sm:$0xff]
      %v362 = vld [vmem:[%s299 + $0xb8] sm:$0xff]
      %v363 = vld [vmem:[%s299 + $0xc0] sm:$0xff]
      %v364 = vld [vmem:[%s299 + $0xc8] sm:$0xff]
      %v365 = vld [vmem:[%s299 + $0xd0] sm:$0xff]
      %v366 = vld [vmem:[%s299 + $0xd8] sm:$0xff]
      %v367 = vld [vmem:[%s299 + $0xe0] sm:$0xff]
      %v368 = vld [vmem:[%s299 + $0xe8] sm:$0xff]
      %v369 = vld [vmem:[%s299 + $0xf0] sm:$0xff]
      %v370 = vld [vmem:[%s299 + $0xf8] sm:$0xff]
      %v371 = vld [vmem:[%s299 + $0x100] sm:$0xff]
      %v372 = vld [vmem:[%s299 + $0x108] sm:$0xff]
      %v373 = vld [vmem:[%s299 + $0x110] sm:$0xff]
      %v374 = vld [vmem:[%s299 + $0x118] sm:$0xff]
      %v375 = vld [vmem:[%s299 + $0x120] sm:$0xff]
      %v376 = vld [vmem:[%s299 + $0x128] sm:$0xff]
      %v377 = vld [vmem:[%s299 + $0x130] sm:$0xff]
      %v378 = vld [vmem:[%s299 + $0x138] sm:$0xff]
      %v379 = vld [vmem:[%s299 + $0x140] sm:$0xff]
      %v380 = vld [vmem:[%s299 + $0x148] sm:$0xff]
      %v381 = vld [vmem:[%s299 + $0x150] sm:$0xff]
      %v382 = vld [vmem:[%s299 + $0x158] sm:$0xff]
      %v383 = vld [vmem:[%s299 + $0x160] sm:$0xff]
      %v384 = vld [vmem:[%s299 + $0x168] sm:$0xff]
      %v385 = vld [vmem:[%s299 + $0x170] sm:$0xff]
      %v386 = vld [vmem:[%s299 + $0x178] sm:$0xff]
      %v387 = vld [vmem:[%s299 + $0x180] sm:$0xff]
      %v388 = vld [vmem:[%s299 + $0x188] sm:$0xff]
      %v389 = vld [vmem:[%s299 + $0x190] sm:$0xff]
      %v390 = vld [vmem:[%s299 + $0x198] sm:$0xff]
      %v391 = vld [vmem:[%s299 + $0x1a0] sm:$0xff]
      %v392 = vld [vmem:[%s299 + $0x1a8] sm:$0xff]
      %v393 = vld [vmem:[%s299 + $0x1b0] sm:$0xff]
      %v394 = vld [vmem:[%s299 + $0x1b8] sm:$0xff]
      %v395 = vld [vmem:[%s299 + $0x1c0] sm:$0xff]
      %v396 = vld [vmem:[%s299 + $0x1c8] sm:$0xff]
      %v397 = vld [vmem:[%s299 + $0x1d0] sm:$0xff]
      %v398 = vld [vmem:[%s299 + $0x1d8] sm:$0xff]
      %v399 = vld [vmem:[%s299 + $0x1e0] sm:$0xff]
      %v400 = vld [vmem:[%s299 + $0x1e8] sm:$0xff]
      %v401 = vld [vmem:[%s299 + $0x1f0] sm:$0xff]
      %v402 = vld [vmem:[%s299 + $0x1f8] sm:$0xff]
      %v403 = vld [vmem:[%s3] sm:$0xff]
      %v404 = vld [vmem:[%s3 + $0x8] sm:$0xff]
      %v405 = vld [vmem:[%s3 + $0x10] sm:$0xff]
      %v406 = vld [vmem:[%s3 + $0x18] sm:$0xff]
      %v407 = vld [vmem:[%s3 + $0x20] sm:$0xff]
      %v408 = vld [vmem:[%s3 + $0x28] sm:$0xff]
      %v409 = vld [vmem:[%s3 + $0x30] sm:$0xff]
      %v410 = vld [vmem:[%s3 + $0x38] sm:$0xff]
      %v411 = vld [vmem:[%s3 + $0x40] sm:$0xff]
      %v412 = vld [vmem:[%s3 + $0x48] sm:$0xff]
      %v413 = vld [vmem:[%s3 + $0x50] sm:$0xff]
      %v414 = vld [vmem:[%s3 + $0x58] sm:$0xff]
      %v415 = vld [vmem:[%s3 + $0x60] sm:$0xff]
      %v416 = vld [vmem:[%s3 + $0x68] sm:$0xff]
      %v417 = vld [vmem:[%s3 + $0x70] sm:$0xff]
      %v418 = vld [vmem:[%s3 + $0x78] sm:$0xff]
      %v419 = vld [vmem:[%s3 + $0x80] sm:$0xff]
      %v420 = vld [vmem:[%s3 + $0x88] sm:$0xff]
      %v421 = vld [vmem:[%s3 + $0x90] sm:$0xff]
      %v422 = vld [vmem:[%s3 + $0x98] sm:$0xff]
      %v423 = vld [vmem:[%s3 + $0xa0] sm:$0xff]
      %v424 = vld [vmem:[%s3 + $0xa8] sm:$0xff]
      %v425 = vld [vmem:[%s3 + $0xb0] sm:$0xff]
      %v426 = vld [vmem:[%s3 + $0xb8] sm:$0xff]
      %v427 = vld [vmem:[%s3 + $0xc0] sm:$0xff]
      %v428 = vld [vmem:[%s3 + $0xc8] sm:$0xff]
      %v429 = vld [vmem:[%s3 + $0xd0] sm:$0xff]
      %v430 = vld [vmem:[%s3 + $0xd8] sm:$0xff]
      %v431 = vld [vmem:[%s3 + $0xe0] sm:$0xff]
      %v432 = vld [vmem:[%s3 + $0xe8] sm:$0xff]
      %v433 = vld [vmem:[%s3 + $0xf0] sm:$0xff]
      %v434 = vld [vmem:[%s3 + $0xf8] sm:$0xff]
      %v435 = vld [vmem:[%s3 + $0x100] sm:$0xff]
      %v436 = vld [vmem:[%s3 + $0x108] sm:$0xff]
      %v437 = vld [vmem:[%s3 + $0x110] sm:$0xff]
      %v438 = vld [vmem:[%s3 + $0x118] sm:$0xff]
      %v439 = vld [vmem:[%s3 + $0x120] sm:$0xff]
      %v440 = vld [vmem:[%s3 + $0x128] sm:$0xff]
      %v441 = vld [vmem:[%s3 + $0x130] sm:$0xff]
      %v442 = vld [vmem:[%s3 + $0x138] sm:$0xff]
      %v443 = vld [vmem:[%s3 + $0x140] sm:$0xff]
      %v444 = vld [vmem:[%s3 + $0x148] sm:$0xff]
      %v445 = vld [vmem:[%s3 + $0x150] sm:$0xff]
      %v446 = vld [vmem:[%s3 + $0x158] sm:$0xff]
      %v447 = vld [vmem:[%s3 + $0x160] sm:$0xff]
      %v448 = vld [vmem:[%s3 + $0x168] sm:$0xff]
      %v449 = vld [vmem:[%s3 + $0x170] sm:$0xff]
      %v450 = vld [vmem:[%s3 + $0x178] sm:$0xff]
      %v451 = vld [vmem:[%s4] sm:$0xff]
      %v452 = vld [vmem:[%s4 + $0x8] sm:$0xff]
      %v453 = vld [vmem:[%s4 + $0x10] sm:$0xff]
      %v454 = vld [vmem:[%s4 + $0x18] sm:$0xff]
      %v455 = vld [vmem:[%s4 + $0x20] sm:$0xff]
      %v456 = vld [vmem:[%s4 + $0x28] sm:$0xff]
      %v457 = vld [vmem:[%s4 + $0x30] sm:$0xff]
      %v458 = vld [vmem:[%s4 + $0x38] sm:$0xff]
      %v459 = vld [vmem:[%s4 + $0x40] sm:$0xff]
      %v460 = vld [vmem:[%s4 + $0x48] sm:$0xff]
      %v461 = vld [vmem:[%s4 + $0x50] sm:$0xff]
      %v462 = vld [vmem:[%s4 + $0x58] sm:$0xff]
      %v463 = vld [vmem:[%s4 + $0x60] sm:$0xff]
      %v464 = vld [vmem:[%s4 + $0x68] sm:$0xff]
      %v465 = vld [vmem:[%s4 + $0x70] sm:$0xff]
      %v466 = vld [vmem:[%s4 + $0x78] sm:$0xff]
      %v467 = vld [vmem:[%s4 + $0x80] sm:$0xff]
      %v468 = vld [vmem:[%s4 + $0x88] sm:$0xff]
      %v469 = vld [vmem:[%s4 + $0x90] sm:$0xff]
      %v470 = vld [vmem:[%s4 + $0x98] sm:$0xff]
      %v471 = vld [vmem:[%s4 + $0xa0] sm:$0xff]
      %v472 = vld [vmem:[%s4 + $0xa8] sm:$0xff]
      %v473 = vld [vmem:[%s4 + $0xb0] sm:$0xff]
      %v474 = vld [vmem:[%s4 + $0xb8] sm:$0xff]
      %v475 = vld [vmem:[%s4 + $0xc0] sm:$0xff]
      %v476 = vld [vmem:[%s4 + $0xc8] sm:$0xff]
      %v477 = vld [vmem:[%s4 + $0xd0] sm:$0xff]
      %v478 = vld [vmem:[%s4 + $0xd8] sm:$0xff]
      %v479 = vld [vmem:[%s4 + $0xe0] sm:$0xff]
      %v480 = vld [vmem:[%s4 + $0xe8] sm:$0xff]
      %v481 = vld [vmem:[%s4 + $0xf0] sm:$0xff]
      %v482 = vld [vmem:[%s4 + $0xf8] sm:$0xff]
      %v483 = vld [vmem:[%s4 + $0x100] sm:$0xff]
      %v484 = vld [vmem:[%s4 + $0x108] sm:$0xff]
      %v485 = vld [vmem:[%s4 + $0x110] sm:$0xff]
      %v486 = vld [vmem:[%s4 + $0x118] sm:$0xff]
      %v487 = vld [vmem:[%s4 + $0x120] sm:$0xff]
      %v488 = vld [vmem:[%s4 + $0x128] sm:$0xff]
      %v489 = vld [vmem:[%s4 + $0x130] sm:$0xff]
      %v490 = vld [vmem:[%s4 + $0x138] sm:$0xff]
      %v491 = vld [vmem:[%s4 + $0x140] sm:$0xff]
      %v492 = vld [vmem:[%s4 + $0x148] sm:$0xff]
      %v493 = vld [vmem:[%s4 + $0x150] sm:$0xff]
      %v494 = vld [vmem:[%s4 + $0x158] sm:$0xff]
      %v495 = vld [vmem:[%s4 + $0x160] sm:$0xff]
      %v496 = vld [vmem:[%s4 + $0x168] sm:$0xff]
      %v497 = vld [vmem:[%s4 + $0x170] sm:$0xff]
      %v498 = vld [vmem:[%s4 + $0x178] sm:$0xff]
      %v499 = vld [vmem:[%s5] sm:$0x7]
      %v500 = vld [vmem:[%s6] sm:$0x7]
      %v501 = vld [vmem:[%s2] sm:$0xff]
      %v502 = vld [vmem:[%s2 + $0x8] sm:$0xff]
      %v503 = vld [vmem:[%s2 + $0x10] sm:$0xff]
      %v504 = vld [vmem:[%s2 + $0x18] sm:$0xff]
      %v505 = vld [vmem:[%s2 + $0x20] sm:$0xff]
      %v506 = vld [vmem:[%s2 + $0x28] sm:$0xff]
      %v507 = vld [vmem:[%s2 + $0x30] sm:$0xff]
      %v508 = vld [vmem:[%s2 + $0x38] sm:$0xff]
      %v509 = vld [vmem:[%s2 + $0x40] sm:$0xff]
      %v510 = vld [vmem:[%s2 + $0x48] sm:$0xff]
      %v511 = vld [vmem:[%s2 + $0x50] sm:$0xff]
      %v512 = vld [vmem:[%s2 + $0x58] sm:$0xff]
      %v513 = vld [vmem:[%s2 + $0x60] sm:$0xff]
      %v514 = vld [vmem:[%s2 + $0x68] sm:$0xff]
      %v515 = vld [vmem:[%s2 + $0x70] sm:$0xff]
      %v516 = vld [vmem:[%s2 + $0x78] sm:$0xff]
      %517 = vmatprep.subr.mxu0 0.0
      %518 = vmatpush1.msra.mxu0 %v516
      %519 = vmatprep.subr.mxu0 0.0
      %520 = vmatpush1.msra.mxu0 %v515
      %521 = vmatprep.subr.mxu0 0.0
      %522 = vmatpush1.msra.mxu0 %v514
      %523 = vmatprep.subr.mxu0 0.0
      %524 = vmatpush1.msra.mxu0 %v513
      %525 = vmatprep.subr.mxu0 0.0
      %526 = vmatpush1.msra.mxu0 %v512
      %527 = vmatprep.subr.mxu0 0.0
      %528 = vmatpush1.msra.mxu0 %v511
      %529 = vmatprep.subr.mxu0 0.0
      %530 = vmatpush1.msra.mxu0 %v510
      %531 = vmatprep.subr.mxu0 0.0
      %532 = vmatpush1.msra.mxu0 %v509
      %533 = vmatprep.subr.mxu0 0.0
      %534 = vmatpush1.msra.mxu0 %v508
      %535 = vmatprep.subr.mxu0 0.0
      %536 = vmatpush1.msra.mxu0 %v507
      %537 = vmatprep.subr.mxu0 0.0
      %538 = vmatpush1.msra.mxu0 %v506
      %539 = vmatprep.subr.mxu0 0.0
      %540 = vmatpush1.msra.mxu0 %v505
      %541 = vmatprep.subr.mxu0 0.0
      %542 = vmatpush1.msra.mxu0 %v504
      %543 = vmatprep.subr.mxu0 0.0
      %544 = vmatpush1.msra.mxu0 %v503
      %545 = vmatprep.subr.mxu0 0.0
      %546 = vmatpush1.msra.mxu0 %v502
      %547 = vmatprep.subr.mxu0 0.0
      %548 = vmatpush1.msra.mxu0 %v501
      %549 = vmatprep.subr.mxu0 0.0
      %550 = vmatpush2.msra.mxu0 0.0
      %551 = vmatprep.subr.mxu0 0.0
      %552 = vmatpush2.msra.mxu0 0.0
      %553 = vmatprep.subr.mxu0 0.0
      %554 = vmatpush2.msra.mxu0 0.0
      %555 = vmatprep.subr.mxu0 0.0
      %556 = vmatpush2.msra.mxu0 0.0
      %557 = vmatprep.subr.mxu0 0.0
      %558 = vmatpush2.msra.mxu0 0.0
      %559 = vmatprep.subr.mxu0 0.0
      %560 = vmatpush2.msra.mxu0 0.0
      %561 = vmatprep.subr.mxu0 0.0
      %562 = vmatpush2.msra.mxu0 0.0
      %563 = vmatprep.subr.mxu0 0.0
      %564 = vmatpush2.msra.mxu0 0.0
      %565 = vmatprep.subr.mxu0 0.0
      %566 = vmatpush2.msra.mxu0 0.0
      %567 = vmatprep.subr.mxu0 0.0
      %568 = vmatpush2.msra.mxu0 0.0
      %569 = vmatprep.subr.mxu0 0.0
      %570 = vmatpush2.msra.mxu0 0.0
      %571 = vmatprep.subr.mxu0 0.0
      %572 = vmatpush2.msra.mxu0 0.0
      %573 = vmatprep.subr.mxu0 0.0
      %574 = vmatpush2.msra.mxu0 0.0
      %575 = vmatprep.subr.mxu0 0.0
      %576 = vmatpush2.msra.mxu0 0.0
      %577 = vmatprep.subr.mxu0 0.0
      %578 = vmatpush2.msra.mxu0 0.0
      %579 = vmatprep.subr.mxu0 0.0
      %580 = vmatpush2.msra.mxu0 0.0
      %581 = vmatprep.mubr.f32.mxu0 0.0
      %582 = vmatmul.mubr.f32.gmra.mxu0 %v307
      %v583 = vpop.f32.mrf.mxu0
      %v584 = vadd.f32 0.0, %v583
      %v585 = vpop.f32.mrf.mxu0
      %586 = vmatprep.mubr.f32.mxu0 0.0
      %587 = vmatmul.mubr.f32.gmra.mxu0 %v308
      %v588 = vpop.f32.mrf.mxu0
      %v589 = vadd.f32 0.0, %v588
      %v590 = vpop.f32.mrf.mxu0
      %591 = vmatprep.mubr.f32.mxu0 0.0
      %592 = vmatmul.mubr.f32.gmra.mxu0 %v309
      %v593 = vpop.f32.mrf.mxu0
      %v594 = vadd.f32 0.0, %v593
      %v595 = vpop.f32.mrf.mxu0
      %596 = vmatprep.mubr.f32.mxu0 0.0
      %597 = vmatmul.mubr.f32.gmra.mxu0 %v310
      %v598 = vpop.f32.mrf.mxu0
      %v599 = vadd.f32 0.0, %v598
      %v600 = vpop.f32.mrf.mxu0
      %601 = vmatprep.mubr.f32.mxu0 0.0
      %602 = vmatmul.mubr.f32.gmra.mxu0 %v311
      %v603 = vpop.f32.mrf.mxu0
      %v604 = vadd.f32 0.0, %v603
      %v605 = vpop.f32.mrf.mxu0
      %606 = vmatprep.mubr.f32.mxu0 0.0
      %607 = vmatmul.mubr.f32.gmra.mxu0 %v312
      %v608 = vpop.f32.mrf.mxu0
      %v609 = vadd.f32 0.0, %v608
      %v610 = vpop.f32.mrf.mxu0
      %611 = vmatprep.mubr.f32.mxu0 0.0
      %612 = vmatmul.mubr.f32.gmra.mxu0 %v313
      %v613 = vpop.f32.mrf.mxu0
      %v614 = vadd.f32 0.0, %v613
      %v615 = vpop.f32.mrf.mxu0
      %616 = vmatprep.mubr.f32.mxu0 0.0
      %617 = vmatmul.mubr.f32.gmra.mxu0 %v314
      %v618 = vpop.f32.mrf.mxu0
      %v619 = vadd.f32 0.0, %v618
      %v620 = vpop.f32.mrf.mxu0
      %621 = vmatprep.mubr.f32.mxu0 0.0
      %622 = vmatmul.mubr.f32.gmra.mxu0 %v315
      %v623 = vpop.f32.mrf.mxu0
      %v624 = vadd.f32 0.0, %v623
      %v625 = vpop.f32.mrf.mxu0
      %626 = vmatprep.mubr.f32.mxu0 0.0
      %627 = vmatmul.mubr.f32.gmra.mxu0 %v316
      %v628 = vpop.f32.mrf.mxu0
      %v629 = vadd.f32 0.0, %v628
      %v630 = vpop.f32.mrf.mxu0
      %631 = vmatprep.mubr.f32.mxu0 0.0
      %632 = vmatmul.mubr.f32.gmra.mxu0 %v317
      %v633 = vpop.f32.mrf.mxu0
      %v634 = vadd.f32 0.0, %v633
      %v635 = vpop.f32.mrf.mxu0
      %636 = vmatprep.mubr.f32.mxu0 0.0
      %637 = vmatmul.mubr.f32.gmra.mxu0 %v318
      %v638 = vpop.f32.mrf.mxu0
      %v639 = vadd.f32 0.0, %v638
      %v640 = vpop.f32.mrf.mxu0
      %641 = vmatprep.mubr.f32.mxu0 0.0
      %642 = vmatmul.mubr.f32.gmra.mxu0 %v319
      %v643 = vpop.f32.mrf.mxu0
      %v644 = vadd.f32 0.0, %v643
      %v645 = vpop.f32.mrf.mxu0
      %646 = vmatprep.mubr.f32.mxu0 0.0
      %647 = vmatmul.mubr.f32.gmra.mxu0 %v320
      %v648 = vpop.f32.mrf.mxu0
      %v649 = vadd.f32 0.0, %v648
      %v650 = vpop.f32.mrf.mxu0
      %651 = vmatprep.mubr.f32.mxu0 0.0
      %652 = vmatmul.mubr.f32.gmra.mxu0 %v321
      %v653 = vpop.f32.mrf.mxu0
      %v654 = vadd.f32 0.0, %v653
      %v655 = vpop.f32.mrf.mxu0
      %656 = vmatprep.mubr.f32.mxu0 0.0
      %657 = vmatmul.mubr.f32.gmra.mxu0 %v322
      %v658 = vpop.f32.mrf.mxu0
      %v659 = vadd.f32 0.0, %v658
      %v660 = vpop.f32.mrf.mxu0
      %661 = vmatprep.mubr.f32.mxu0 0.0
      %662 = vmatmul.mubr.f32.gmra.mxu0 %v323
      %v663 = vpop.f32.mrf.mxu0
      %v664 = vadd.f32 0.0, %v663
      %v665 = vpop.f32.mrf.mxu0
      %666 = vmatprep.mubr.f32.mxu0 0.0
      %667 = vmatmul.mubr.f32.gmra.mxu0 %v324
      %v668 = vpop.f32.mrf.mxu0
      %v669 = vadd.f32 0.0, %v668
      %v670 = vpop.f32.mrf.mxu0
      %671 = vmatprep.mubr.f32.mxu0 0.0
      %672 = vmatmul.mubr.f32.gmra.mxu0 %v325
      %v673 = vpop.f32.mrf.mxu0
      %v674 = vadd.f32 0.0, %v673
      %v675 = vpop.f32.mrf.mxu0
      %676 = vmatprep.mubr.f32.mxu0 0.0
      %677 = vmatmul.mubr.f32.gmra.mxu0 %v326
      %v678 = vpop.f32.mrf.mxu0
      %v679 = vadd.f32 0.0, %v678
      %v680 = vpop.f32.mrf.mxu0
      %681 = vmatprep.mubr.f32.mxu0 0.0
      %682 = vmatmul.mubr.f32.gmra.mxu0 %v327
      %v683 = vpop.f32.mrf.mxu0
      %v684 = vadd.f32 0.0, %v683
      %v685 = vpop.f32.mrf.mxu0
      %686 = vmatprep.mubr.f32.mxu0 0.0
      %687 = vmatmul.mubr.f32.gmra.mxu0 %v328
      %v688 = vpop.f32.mrf.mxu0
      %v689 = vadd.f32 0.0, %v688
      %v690 = vpop.f32.mrf.mxu0
      %691 = vmatprep.mubr.f32.mxu0 0.0
      %692 = vmatmul.mubr.f32.gmra.mxu0 %v329
      %v693 = vpop.f32.mrf.mxu0
      %v694 = vadd.f32 0.0, %v693
      %v695 = vpop.f32.mrf.mxu0
      %696 = vmatprep.mubr.f32.mxu0 0.0
      %697 = vmatmul.mubr.f32.gmra.mxu0 %v330
      %v698 = vpop.f32.mrf.mxu0
      %v699 = vadd.f32 0.0, %v698
      %v700 = vpop.f32.mrf.mxu0
      %701 = vmatprep.mubr.f32.mxu0 0.0
      %702 = vmatmul.mubr.f32.gmra.mxu0 %v331
      %v703 = vpop.f32.mrf.mxu0
      %v704 = vadd.f32 0.0, %v703
      %v705 = vpop.f32.mrf.mxu0
      %706 = vmatprep.mubr.f32.mxu0 0.0
      %707 = vmatmul.mubr.f32.gmra.mxu0 %v332
      %v708 = vpop.f32.mrf.mxu0
      %v709 = vadd.f32 0.0, %v708
      %v710 = vpop.f32.mrf.mxu0
      %711 = vmatprep.mubr.f32.mxu0 0.0
      %712 = vmatmul.mubr.f32.gmra.mxu0 %v333
      %v713 = vpop.f32.mrf.mxu0
      %v714 = vadd.f32 0.0, %v713
      %v715 = vpop.f32.mrf.mxu0
      %716 = vmatprep.mubr.f32.mxu0 0.0
      %717 = vmatmul.mubr.f32.gmra.mxu0 %v334
      %v718 = vpop.f32.mrf.mxu0
      %v719 = vadd.f32 0.0, %v718
      %v720 = vpop.f32.mrf.mxu0
      %721 = vmatprep.mubr.f32.mxu0 0.0
      %722 = vmatmul.mubr.f32.gmra.mxu0 %v335
      %v723 = vpop.f32.mrf.mxu0
      %v724 = vadd.f32 0.0, %v723
      %v725 = vpop.f32.mrf.mxu0
      %726 = vmatprep.mubr.f32.mxu0 0.0
      %727 = vmatmul.mubr.f32.gmra.mxu0 %v336
      %v728 = vpop.f32.mrf.mxu0
      %v729 = vadd.f32 0.0, %v728
      %v730 = vpop.f32.mrf.mxu0
      %731 = vmatprep.mubr.f32.mxu0 0.0
      %732 = vmatmul.mubr.f32.gmra.mxu0 %v337
      %v733 = vpop.f32.mrf.mxu0
      %v734 = vadd.f32 0.0, %v733
      %v735 = vpop.f32.mrf.mxu0
      %736 = vmatprep.mubr.f32.mxu0 0.0
      %737 = vmatmul.mubr.f32.gmra.mxu0 %v338
      %v738 = vpop.f32.mrf.mxu0
      %v739 = vadd.f32 0.0, %v738
      %v740 = vpop.f32.mrf.mxu0
      %741 = vdwg.mxu0
      %742 = vmatprep.subr.mxu0 0.0
      %743 = vmatpush1.msra.mxu0 %v659
      %744 = vmatprep.subr.mxu0 0.0
      %745 = vmatpush1.msra.mxu0 %v654
      %746 = vmatprep.subr.mxu0 0.0
      %747 = vmatpush1.msra.mxu0 %v649
      %748 = vmatprep.subr.mxu0 0.0
      %749 = vmatpush1.msra.mxu0 %v644
      %750 = vmatprep.subr.mxu0 0.0
      %751 = vmatpush1.msra.mxu0 %v639
      %752 = vmatprep.subr.mxu0 0.0
      %753 = vmatpush1.msra.mxu0 %v634
      %754 = vmatprep.subr.mxu0 0.0
      %755 = vmatpush1.msra.mxu0 %v629
      %756 = vmatprep.subr.mxu0 0.0
      %757 = vmatpush1.msra.mxu0 %v624
      %758 = vmatprep.subr.mxu0 0.0
      %759 = vmatpush1.msra.mxu0 %v619
      %760 = vmatprep.subr.mxu0 0.0
      %761 = vmatpush1.msra.mxu0 %v614
      %762 = vmatprep.subr.mxu0 0.0
      %763 = vmatpush1.msra.mxu0 %v609
      %764 = vmatprep.subr.mxu0 0.0
      %765 = vmatpush1.msra.mxu0 %v604
      %766 = vmatprep.subr.mxu0 0.0
      %767 = vmatpush1.msra.mxu0 %v599
      %768 = vmatprep.subr.mxu0 0.0
      %769 = vmatpush1.msra.mxu0 %v594
      %770 = vmatprep.subr.mxu0 0.0
      %771 = vmatpush1.msra.mxu0 %v589
      %772 = vmatprep.subr.mxu0 0.0
      %773 = vmatpush1.msra.mxu0 %v584
      %774 = vmatprep.subr.mxu0 0.0
      %775 = vmatpush2.msra.mxu0 %v739
      %776 = vmatprep.subr.mxu0 0.0
      %777 = vmatpush2.msra.mxu0 %v734
      %778 = vmatprep.subr.mxu0 0.0
      %779 = vmatpush2.msra.mxu0 %v729
      %780 = vmatprep.subr.mxu0 0.0
      %781 = vmatpush2.msra.mxu0 %v724
      %782 = vmatprep.subr.mxu0 0.0
      %783 = vmatpush2.msra.mxu0 %v719
      %784 = vmatprep.subr.mxu0 0.0
      %785 = vmatpush2.msra.mxu0 %v714
      %786 = vmatprep.subr.mxu0 0.0
      %787 = vmatpush2.msra.mxu0 %v709
      %788 = vmatprep.subr.mxu0 0.0
      %789 = vmatpush2.msra.mxu0 %v704
      %790 = vmatprep.subr.mxu0 0.0
      %791 = vmatpush2.msra.mxu0 %v699
      %792 = vmatprep.subr.mxu0 0.0
      %793 = vmatpush2.msra.mxu0 %v694
      %794 = vmatprep.subr.mxu0 0.0
      %795 = vmatpush2.msra.mxu0 %v689
      %796 = vmatprep.subr.mxu0 0.0
      %797 = vmatpush2.msra.mxu0 %v684
      %798 = vmatprep.subr.mxu0 0.0
      %799 = vmatpush2.msra.mxu0 %v679
      %800 = vmatprep.subr.mxu0 0.0
      %801 = vmatpush2.msra.mxu0 %v674
      %802 = vmatprep.subr.mxu0 0.0
      %803 = vmatpush2.msra.mxu0 %v669
      %804 = vmatprep.subr.mxu0 0.0
      %805 = vmatpush2.msra.mxu0 %v664
      %806 = vmatprep.mubr.f32.mxu0 %v340
      %807 = vmatmul.mubr.f32.gmra.mxu0 %v339
      %v808 = vpop.f32.mrf.mxu0
      %v809 = vadd.f32 0.0, %v808
      %v810 = vpop.f32.mrf.mxu0
      %811 = vmatprep.mubr.f32.mxu0 %v342
      %812 = vmatmul.mubr.f32.gmra.mxu0 %v341
      %v813 = vpop.f32.mrf.mxu0
      %v814 = vadd.f32 0.0, %v813
      %v815 = vpop.f32.mrf.mxu0
      %816 = vmatprep.mubr.f32.mxu0 %v344
      %817 = vmatmul.mubr.f32.gmra.mxu0 %v343
      %v818 = vpop.f32.mrf.mxu0
      %v819 = vadd.f32 0.0, %v818
      %v820 = vpop.f32.mrf.mxu0
      %821 = vmatprep.mubr.f32.mxu0 %v346
      %822 = vmatmul.mubr.f32.gmra.mxu0 %v345
      %v823 = vpop.f32.mrf.mxu0
      %v824 = vadd.f32 0.0, %v823
      %v825 = vpop.f32.mrf.mxu0
      %826 = vmatprep.mubr.f32.mxu0 %v348
      %827 = vmatmul.mubr.f32.gmra.mxu0 %v347
      %v828 = vpop.f32.mrf.mxu0
      %v829 = vadd.f32 0.0, %v828
      %v830 = vpop.f32.mrf.mxu0
      %831 = vmatprep.mubr.f32.mxu0 %v350
      %832 = vmatmul.mubr.f32.gmra.mxu0 %v349
      %v833 = vpop.f32.mrf.mxu0
      %v834 = vadd.f32 0.0, %v833
      %v835 = vpop.f32.mrf.mxu0
      %836 = vmatprep.mubr.f32.mxu0 %v352
      %837 = vmatmul.mubr.f32.gmra.mxu0 %v351
      %v838 = vpop.f32.mrf.mxu0
      %v839 = vadd.f32 0.0, %v838
      %v840 = vpop.f32.mrf.mxu0
      %841 = vmatprep.mubr.f32.mxu0 %v354
      %842 = vmatmul.mubr.f32.gmra.mxu0 %v353
      %v843 = vpop.f32.mrf.mxu0
      %v844 = vadd.f32 0.0, %v843
      %v845 = vpop.f32.mrf.mxu0
      %846 = vmatprep.mubr.f32.mxu0 %v356
      %847 = vmatmul.mubr.f32.gmra.mxu0 %v355
      %v848 = vpop.f32.mrf.mxu0
      %v849 = vadd.f32 0.0, %v848
      %v850 = vpop.f32.mrf.mxu0
      %851 = vmatprep.mubr.f32.mxu0 %v358
      %852 = vmatmul.mubr.f32.gmra.mxu0 %v357
      %v853 = vpop.f32.mrf.mxu0
      %v854 = vadd.f32 0.0, %v853
      %v855 = vpop.f32.mrf.mxu0
      %856 = vmatprep.mubr.f32.mxu0 %v360
      %857 = vmatmul.mubr.f32.gmra.mxu0 %v359
      %v858 = vpop.f32.mrf.mxu0
      %v859 = vadd.f32 0.0, %v858
      %v860 = vpop.f32.mrf.mxu0
      %861 = vmatprep.mubr.f32.mxu0 %v362
      %862 = vmatmul.mubr.f32.gmra.mxu0 %v361
      %v863 = vpop.f32.mrf.mxu0
      %v864 = vadd.f32 0.0, %v863
      %v865 = vpop.f32.mrf.mxu0
      %866 = vmatprep.mubr.f32.mxu0 %v364
      %867 = vmatmul.mubr.f32.gmra.mxu0 %v363
      %v868 = vpop.f32.mrf.mxu0
      %v869 = vadd.f32 0.0, %v868
      %v870 = vpop.f32.mrf.mxu0
      %871 = vmatprep.mubr.f32.mxu0 %v366
      %872 = vmatmul.mubr.f32.gmra.mxu0 %v365
      %v873 = vpop.f32.mrf.mxu0
      %v874 = vadd.f32 0.0, %v873
      %v875 = vpop.f32.mrf.mxu0
      %876 = vmatprep.mubr.f32.mxu0 %v368
      %877 = vmatmul.mubr.f32.gmra.mxu0 %v367
      %v878 = vpop.f32.mrf.mxu0
      %v879 = vadd.f32 0.0, %v878
      %v880 = vpop.f32.mrf.mxu0
      %881 = vmatprep.mubr.f32.mxu0 %v370
      %882 = vmatmul.mubr.f32.gmra.mxu0 %v369
      %v883 = vpop.f32.mrf.mxu0
      %v884 = vadd.f32 0.0, %v883
      %v885 = vpop.f32.mrf.mxu0
      %886 = vmatprep.mubr.f32.mxu0 %v372
      %887 = vmatmul.mubr.f32.gmra.mxu0 %v371
      %v888 = vpop.f32.mrf.mxu0
      %v889 = vadd.f32 0.0, %v888
      %v890 = vpop.f32.mrf.mxu0
      %891 = vmatprep.mubr.f32.mxu0 %v374
      %892 = vmatmul.mubr.f32.gmra.mxu0 %v373
      %v893 = vpop.f32.mrf.mxu0
      %v894 = vadd.f32 0.0, %v893
      %v895 = vpop.f32.mrf.mxu0
      %896 = vmatprep.mubr.f32.mxu0 %v376
      %897 = vmatmul.mubr.f32.gmra.mxu0 %v375
      %v898 = vpop.f32.mrf.mxu0
      %v899 = vadd.f32 0.0, %v898
      %v900 = vpop.f32.mrf.mxu0
      %901 = vmatprep.mubr.f32.mxu0 %v378
      %902 = vmatmul.mubr.f32.gmra.mxu0 %v377
      %v903 = vpop.f32.mrf.mxu0
      %v904 = vadd.f32 0.0, %v903
      %v905 = vpop.f32.mrf.mxu0
      %906 = vmatprep.mubr.f32.mxu0 %v380
      %907 = vmatmul.mubr.f32.gmra.mxu0 %v379
      %v908 = vpop.f32.mrf.mxu0
      %v909 = vadd.f32 0.0, %v908
      %v910 = vpop.f32.mrf.mxu0
      %911 = vmatprep.mubr.f32.mxu0 %v382
      %912 = vmatmul.mubr.f32.gmra.mxu0 %v381
      %v913 = vpop.f32.mrf.mxu0
      %v914 = vadd.f32 0.0, %v913
      %v915 = vpop.f32.mrf.mxu0
      %916 = vmatprep.mubr.f32.mxu0 %v384
      %917 = vmatmul.mubr.f32.gmra.mxu0 %v383
      %v918 = vpop.f32.mrf.mxu0
      %v919 = vadd.f32 0.0, %v918
      %v920 = vpop.f32.mrf.mxu0
      %921 = vmatprep.mubr.f32.mxu0 %v386
      %922 = vmatmul.mubr.f32.gmra.mxu0 %v385
      %v923 = vpop.f32.mrf.mxu0
      %v924 = vadd.f32 0.0, %v923
      %v925 = vpop.f32.mrf.mxu0
      %926 = vmatprep.mubr.f32.mxu0 %v388
      %927 = vmatmul.mubr.f32.gmra.mxu0 %v387
      %v928 = vpop.f32.mrf.mxu0
      %v929 = vadd.f32 0.0, %v928
      %v930 = vpop.f32.mrf.mxu0
      %931 = vmatprep.mubr.f32.mxu0 %v390
      %932 = vmatmul.mubr.f32.gmra.mxu0 %v389
      %v933 = vpop.f32.mrf.mxu0
      %v934 = vadd.f32 0.0, %v933
      %v935 = vpop.f32.mrf.mxu0
      %936 = vmatprep.mubr.f32.mxu0 %v392
      %937 = vmatmul.mubr.f32.gmra.mxu0 %v391
      %v938 = vpop.f32.mrf.mxu0
      %v939 = vadd.f32 0.0, %v938
      %v940 = vpop.f32.mrf.mxu0
      %941 = vmatprep.mubr.f32.mxu0 %v394
      %942 = vmatmul.mubr.f32.gmra.mxu0 %v393
      %v943 = vpop.f32.mrf.mxu0
      %v944 = vadd.f32 0.0, %v943
      %v945 = vpop.f32.mrf.mxu0
      %946 = vmatprep.mubr.f32.mxu0 %v396
      %947 = vmatmul.mubr.f32.gmra.mxu0 %v395
      %v948 = vpop.f32.mrf.mxu0
      %v949 = vadd.f32 0.0, %v948
      %v950 = vpop.f32.mrf.mxu0
      %951 = vmatprep.mubr.f32.mxu0 %v398
      %952 = vmatmul.mubr.f32.gmra.mxu0 %v397
      %v953 = vpop.f32.mrf.mxu0
      %v954 = vadd.f32 0.0, %v953
      %v955 = vpop.f32.mrf.mxu0
      %956 = vmatprep.mubr.f32.mxu0 %v400
      %957 = vmatmul.mubr.f32.gmra.mxu0 %v399
      %v958 = vpop.f32.mrf.mxu0
      %v959 = vadd.f32 0.0, %v958
      %v960 = vpop.f32.mrf.mxu0
      %961 = vmatprep.mubr.f32.mxu0 %v402
      %962 = vmatmul.mubr.f32.gmra.mxu0 %v401
      %v963 = vpop.f32.mrf.mxu0
      %v964 = vadd.f32 0.0, %v963
      %v965 = vpop.f32.mrf.mxu0
      %966 = vdwg.mxu0
      %v968 = vlaneseq
      %v969 = vshrl.u32 %v968, 7
      %v970 = vsub.s32 0, %v969
      %v971 = vrot.slane %v499, %v970
      %v972 = vlaneseq
      %v973 = vshrl.u32 %v972, 7
      %v974 = vsub.s32 1, %v973
      %v975 = vrot.slane %v499, %v974
      %v976 = vlaneseq
      %v977 = vshrl.u32 %v976, 7
      %v978 = vsub.s32 2, %v977
      %v979 = vrot.slane %v499, %v978
      %983 = vmatprep.subr.mxu0 %v449
      %984 = vmatpush1.msra.mxu0 %v448
      %985 = vmatprep.subr.mxu0 %v446
      %986 = vmatpush1.msra.mxu0 %v445
      %987 = vmatprep.subr.mxu0 %v443
      %988 = vmatpush1.msra.mxu0 %v442
      %989 = vmatprep.subr.mxu0 %v440
      %990 = vmatpush1.msra.mxu0 %v439
      %991 = vmatprep.subr.mxu0 %v437
      %992 = vmatpush1.msra.mxu0 %v436
      %993 = vmatprep.subr.mxu0 %v434
      %994 = vmatpush1.msra.mxu0 %v433
      %995 = vmatprep.subr.mxu0 %v431
      %996 = vmatpush1.msra.mxu0 %v430
      %997 = vmatprep.subr.mxu0 %v428
      %998 = vmatpush1.msra.mxu0 %v427
      %999 = vmatprep.subr.mxu0 %v425
      %1000 = vmatpush1.msra.mxu0 %v424
      %1001 = vmatprep.subr.mxu0 %v422
      %1002 = vmatpush1.msra.mxu0 %v421
      %1003 = vmatprep.subr.mxu0 %v419
      %1004 = vmatpush1.msra.mxu0 %v418
      %1005 = vmatprep.subr.mxu0 %v416
      %1006 = vmatpush1.msra.mxu0 %v415
      %1007 = vmatprep.subr.mxu0 %v413
      %1008 = vmatpush1.msra.mxu0 %v412
      %1009 = vmatprep.subr.mxu0 %v410
      %1010 = vmatpush1.msra.mxu0 %v409
      %1011 = vmatprep.subr.mxu0 %v407
      %1012 = vmatpush1.msra.mxu0 %v406
      %1013 = vmatprep.subr.mxu0 %v404
      %1014 = vmatpush1.msra.mxu0 %v403
      %1015 = vmatprep.subr.mxu0 0.0
      %1016 = vmatpush2.msra.mxu0 0.0
      %1017 = vmatprep.subr.mxu0 0.0
      %1018 = vmatpush2.msra.mxu0 0.0
      %1019 = vmatprep.subr.mxu0 0.0
      %1020 = vmatpush2.msra.mxu0 0.0
      %1021 = vmatprep.subr.mxu0 0.0
      %1022 = vmatpush2.msra.mxu0 0.0
      %1023 = vmatprep.subr.mxu0 0.0
      %1024 = vmatpush2.msra.mxu0 0.0
      %1025 = vmatprep.subr.mxu0 0.0
      %1026 = vmatpush2.msra.mxu0 0.0
      %1027 = vmatprep.subr.mxu0 0.0
      %1028 = vmatpush2.msra.mxu0 0.0
      %1029 = vmatprep.subr.mxu0 0.0
      %1030 = vmatpush2.msra.mxu0 0.0
      %1031 = vmatprep.subr.mxu0 0.0
      %1032 = vmatpush2.msra.mxu0 0.0
      %1033 = vmatprep.subr.mxu0 0.0
      %1034 = vmatpush2.msra.mxu0 0.0
      %1035 = vmatprep.subr.mxu0 0.0
      %1036 = vmatpush2.msra.mxu0 0.0
      %1037 = vmatprep.subr.mxu0 0.0
      %1038 = vmatpush2.msra.mxu0 0.0
      %1039 = vmatprep.subr.mxu0 0.0
      %1040 = vmatpush2.msra.mxu0 0.0
      %1041 = vmatprep.subr.mxu0 0.0
      %1042 = vmatpush2.msra.mxu0 0.0
      %1043 = vmatprep.subr.mxu0 0.0
      %1044 = vmatpush2.msra.mxu0 0.0
      %1045 = vmatprep.subr.mxu0 0.0
      %1046 = vmatpush2.msra.mxu0 0.0
      %1047 = vmatprep.mubr.f32.mxu0 0.0
      %1048 = vmatmul.mubr.f32.gmra.mxu0 %v809
      %v1049 = vpop.f32.mrf.mxu0
      %v1050 = vadd.f32 %v971, %v1049
      %v1051 = vpop.f32.mrf.mxu0
      %v1052 = vadd.f32 %v975, %v1051
      %1053 = vmatprep.mubr.f32.mxu0 0.0
      %1054 = vmatmul.mubr.f32.gmra.mxu0 %v814
      %v1055 = vpop.f32.mrf.mxu0
      %v1056 = vadd.f32 %v971, %v1055
      %v1057 = vpop.f32.mrf.mxu0
      %v1058 = vadd.f32 %v975, %v1057
      %1059 = vmatprep.mubr.f32.mxu0 0.0
      %1060 = vmatmul.mubr.f32.gmra.mxu0 %v819
      %v1061 = vpop.f32.mrf.mxu0
      %v1062 = vadd.f32 %v971, %v1061
      %v1063 = vpop.f32.mrf.mxu0
      %v1064 = vadd.f32 %v975, %v1063
      %1065 = vmatprep.mubr.f32.mxu0 0.0
      %1066 = vmatmul.mubr.f32.gmra.mxu0 %v824
      %v1067 = vpop.f32.mrf.mxu0
      %v1068 = vadd.f32 %v971, %v1067
      %v1069 = vpop.f32.mrf.mxu0
      %v1070 = vadd.f32 %v975, %v1069
      %1071 = vmatprep.mubr.f32.mxu0 0.0
      %1072 = vmatmul.mubr.f32.gmra.mxu0 %v829
      %v1073 = vpop.f32.mrf.mxu0
      %v1074 = vadd.f32 %v971, %v1073
      %v1075 = vpop.f32.mrf.mxu0
      %v1076 = vadd.f32 %v975, %v1075
      %1077 = vmatprep.mubr.f32.mxu0 0.0
      %1078 = vmatmul.mubr.f32.gmra.mxu0 %v834
      %v1079 = vpop.f32.mrf.mxu0
      %v1080 = vadd.f32 %v971, %v1079
      %v1081 = vpop.f32.mrf.mxu0
      %v1082 = vadd.f32 %v975, %v1081
      %1083 = vmatprep.mubr.f32.mxu0 0.0
      %1084 = vmatmul.mubr.f32.gmra.mxu0 %v839
      %v1085 = vpop.f32.mrf.mxu0
      %v1086 = vadd.f32 %v971, %v1085
      %v1087 = vpop.f32.mrf.mxu0
      %v1088 = vadd.f32 %v975, %v1087
      %1089 = vmatprep.mubr.f32.mxu0 0.0
      %1090 = vmatmul.mubr.f32.gmra.mxu0 %v844
      %v1091 = vpop.f32.mrf.mxu0
      %v1092 = vadd.f32 %v971, %v1091
      %v1093 = vpop.f32.mrf.mxu0
      %v1094 = vadd.f32 %v975, %v1093
      %1095 = vmatprep.mubr.f32.mxu0 0.0
      %1096 = vmatmul.mubr.f32.gmra.mxu0 %v849
      %v1097 = vpop.f32.mrf.mxu0
      %v1098 = vadd.f32 %v971, %v1097
      %v1099 = vpop.f32.mrf.mxu0
      %v1100 = vadd.f32 %v975, %v1099
      %1101 = vmatprep.mubr.f32.mxu0 0.0
      %1102 = vmatmul.mubr.f32.gmra.mxu0 %v854
      %v1103 = vpop.f32.mrf.mxu0
      %v1104 = vadd.f32 %v971, %v1103
      %v1105 = vpop.f32.mrf.mxu0
      %v1106 = vadd.f32 %v975, %v1105
      %1107 = vmatprep.mubr.f32.mxu0 0.0
      %1108 = vmatmul.mubr.f32.gmra.mxu0 %v859
      %v1109 = vpop.f32.mrf.mxu0
      %v1110 = vadd.f32 %v971, %v1109
      %v1111 = vpop.f32.mrf.mxu0
      %v1112 = vadd.f32 %v975, %v1111
      %1113 = vmatprep.mubr.f32.mxu0 0.0
      %1114 = vmatmul.mubr.f32.gmra.mxu0 %v864
      %v1115 = vpop.f32.mrf.mxu0
      %v1116 = vadd.f32 %v971, %v1115
      %v1117 = vpop.f32.mrf.mxu0
      %v1118 = vadd.f32 %v975, %v1117
      %1119 = vmatprep.mubr.f32.mxu0 0.0
      %1120 = vmatmul.mubr.f32.gmra.mxu0 %v869
      %v1121 = vpop.f32.mrf.mxu0
      %v1122 = vadd.f32 %v971, %v1121
      %v1123 = vpop.f32.mrf.mxu0
      %v1124 = vadd.f32 %v975, %v1123
      %1125 = vmatprep.mubr.f32.mxu0 0.0
      %1126 = vmatmul.mubr.f32.gmra.mxu0 %v874
      %v1127 = vpop.f32.mrf.mxu0
      %v1128 = vadd.f32 %v971, %v1127
      %v1129 = vpop.f32.mrf.mxu0
      %v1130 = vadd.f32 %v975, %v1129
      %1131 = vmatprep.mubr.f32.mxu0 0.0
      %1132 = vmatmul.mubr.f32.gmra.mxu0 %v879
      %v1133 = vpop.f32.mrf.mxu0
      %v1134 = vadd.f32 %v971, %v1133
      %v1135 = vpop.f32.mrf.mxu0
      %v1136 = vadd.f32 %v975, %v1135
      %1137 = vmatprep.mubr.f32.mxu0 0.0
      %1138 = vmatmul.mubr.f32.gmra.mxu0 %v884
      %v1139 = vpop.f32.mrf.mxu0
      %v1140 = vadd.f32 %v971, %v1139
      %v1141 = vpop.f32.mrf.mxu0
      %v1142 = vadd.f32 %v975, %v1141
      %1143 = vmatprep.mubr.f32.mxu0 0.0
      %1144 = vmatmul.mubr.f32.gmra.mxu0 %v889
      %v1145 = vpop.f32.mrf.mxu0
      %v1146 = vadd.f32 %v971, %v1145
      %v1147 = vpop.f32.mrf.mxu0
      %v1148 = vadd.f32 %v975, %v1147
      %1149 = vmatprep.mubr.f32.mxu0 0.0
      %1150 = vmatmul.mubr.f32.gmra.mxu0 %v894
      %v1151 = vpop.f32.mrf.mxu0
      %v1152 = vadd.f32 %v971, %v1151
      %v1153 = vpop.f32.mrf.mxu0
      %v1154 = vadd.f32 %v975, %v1153
      %1155 = vmatprep.mubr.f32.mxu0 0.0
      %1156 = vmatmul.mubr.f32.gmra.mxu0 %v899
      %v1157 = vpop.f32.mrf.mxu0
      %v1158 = vadd.f32 %v971, %v1157
      %v1159 = vpop.f32.mrf.mxu0
      %v1160 = vadd.f32 %v975, %v1159
      %1161 = vmatprep.mubr.f32.mxu0 0.0
      %1162 = vmatmul.mubr.f32.gmra.mxu0 %v904
      %v1163 = vpop.f32.mrf.mxu0
      %v1164 = vadd.f32 %v971, %v1163
      %v1165 = vpop.f32.mrf.mxu0
      %v1166 = vadd.f32 %v975, %v1165
      %1167 = vmatprep.mubr.f32.mxu0 0.0
      %1168 = vmatmul.mubr.f32.gmra.mxu0 %v909
      %v1169 = vpop.f32.mrf.mxu0
      %v1170 = vadd.f32 %v971, %v1169
      %v1171 = vpop.f32.mrf.mxu0
      %v1172 = vadd.f32 %v975, %v1171
      %1173 = vmatprep.mubr.f32.mxu0 0.0
      %1174 = vmatmul.mubr.f32.gmra.mxu0 %v914
      %v1175 = vpop.f32.mrf.mxu0
      %v1176 = vadd.f32 %v971, %v1175
      %v1177 = vpop.f32.mrf.mxu0
      %v1178 = vadd.f32 %v975, %v1177
      %1179 = vmatprep.mubr.f32.mxu0 0.0
      %1180 = vmatmul.mubr.f32.gmra.mxu0 %v919
      %v1181 = vpop.f32.mrf.mxu0
      %v1182 = vadd.f32 %v971, %v1181
      %v1183 = vpop.f32.mrf.mxu0
      %v1184 = vadd.f32 %v975, %v1183
      %1185 = vmatprep.mubr.f32.mxu0 0.0
      %1186 = vmatmul.mubr.f32.gmra.mxu0 %v924
      %v1187 = vpop.f32.mrf.mxu0
      %v1188 = vadd.f32 %v971, %v1187
      %v1189 = vpop.f32.mrf.mxu0
      %v1190 = vadd.f32 %v975, %v1189
      %1191 = vmatprep.mubr.f32.mxu0 0.0
      %1192 = vmatmul.mubr.f32.gmra.mxu0 %v929
      %v1193 = vpop.f32.mrf.mxu0
      %v1194 = vadd.f32 %v971, %v1193
      %v1195 = vpop.f32.mrf.mxu0
      %v1196 = vadd.f32 %v975, %v1195
      %1197 = vmatprep.mubr.f32.mxu0 0.0
      %1198 = vmatmul.mubr.f32.gmra.mxu0 %v934
      %v1199 = vpop.f32.mrf.mxu0
      %v1200 = vadd.f32 %v971, %v1199
      %v1201 = vpop.f32.mrf.mxu0
      %v1202 = vadd.f32 %v975, %v1201
      %1203 = vmatprep.mubr.f32.mxu0 0.0
      %1204 = vmatmul.mubr.f32.gmra.mxu0 %v939
      %v1205 = vpop.f32.mrf.mxu0
      %v1206 = vadd.f32 %v971, %v1205
      %v1207 = vpop.f32.mrf.mxu0
      %v1208 = vadd.f32 %v975, %v1207
      %1209 = vmatprep.mubr.f32.mxu0 0.0
      %1210 = vmatmul.mubr.f32.gmra.mxu0 %v944
      %v1211 = vpop.f32.mrf.mxu0
      %v1212 = vadd.f32 %v971, %v1211
      %v1213 = vpop.f32.mrf.mxu0
      %v1214 = vadd.f32 %v975, %v1213
      %1215 = vmatprep.mubr.f32.mxu0 0.0
      %1216 = vmatmul.mubr.f32.gmra.mxu0 %v949
      %v1217 = vpop.f32.mrf.mxu0
      %v1218 = vadd.f32 %v971, %v1217
      %v1219 = vpop.f32.mrf.mxu0
      %v1220 = vadd.f32 %v975, %v1219
      %1221 = vmatprep.mubr.f32.mxu0 0.0
      %1222 = vmatmul.mubr.f32.gmra.mxu0 %v954
      %v1223 = vpop.f32.mrf.mxu0
      %v1224 = vadd.f32 %v971, %v1223
      %v1225 = vpop.f32.mrf.mxu0
      %v1226 = vadd.f32 %v975, %v1225
      %1227 = vmatprep.mubr.f32.mxu0 0.0
      %1228 = vmatmul.mubr.f32.gmra.mxu0 %v959
      %v1229 = vpop.f32.mrf.mxu0
      %v1230 = vadd.f32 %v971, %v1229
      %v1231 = vpop.f32.mrf.mxu0
      %v1232 = vadd.f32 %v975, %v1231
      %1233 = vmatprep.mubr.f32.mxu0 0.0
      %1234 = vmatmul.mubr.f32.gmra.mxu0 %v964
      %v1235 = vpop.f32.mrf.mxu0
      %v1236 = vadd.f32 %v971, %v1235
      %v1237 = vpop.f32.mrf.mxu0
      %v1238 = vadd.f32 %v975, %v1237
      %1239 = vdwg.mxu0
      %1240 = vmatprep.subr.mxu0 0.0
      %1241 = vmatpush1.msra.mxu0 %v450
      %1242 = vmatprep.subr.mxu0 0.0
      %1243 = vmatpush1.msra.mxu0 %v447
      %1244 = vmatprep.subr.mxu0 0.0
      %1245 = vmatpush1.msra.mxu0 %v444
      %1246 = vmatprep.subr.mxu0 0.0
      %1247 = vmatpush1.msra.mxu0 %v441
      %1248 = vmatprep.subr.mxu0 0.0
      %1249 = vmatpush1.msra.mxu0 %v438
      %1250 = vmatprep.subr.mxu0 0.0
      %1251 = vmatpush1.msra.mxu0 %v435
      %1252 = vmatprep.subr.mxu0 0.0
      %1253 = vmatpush1.msra.mxu0 %v432
      %1254 = vmatprep.subr.mxu0 0.0
      %1255 = vmatpush1.msra.mxu0 %v429
      %1256 = vmatprep.subr.mxu0 0.0
      %1257 = vmatpush1.msra.mxu0 %v426
      %1258 = vmatprep.subr.mxu0 0.0
      %1259 = vmatpush1.msra.mxu0 %v423
      %1260 = vmatprep.subr.mxu0 0.0
      %1261 = vmatpush1.msra.mxu0 %v420
      %1262 = vmatprep.subr.mxu0 0.0
      %1263 = vmatpush1.msra.mxu0 %v417
      %1264 = vmatprep.subr.mxu0 0.0
      %1265 = vmatpush1.msra.mxu0 %v414
      %1266 = vmatprep.subr.mxu0 0.0
      %1267 = vmatpush1.msra.mxu0 %v411
      %1268 = vmatprep.subr.mxu0 0.0
      %1269 = vmatpush1.msra.mxu0 %v408
      %1270 = vmatprep.subr.mxu0 0.0
      %1271 = vmatpush1.msra.mxu0 %v405
      %1272 = vmatprep.subr.mxu0 0.0
      %1273 = vmatpush2.msra.mxu0 0.0
      %1274 = vmatprep.subr.mxu0 0.0
      %1275 = vmatpush2.msra.mxu0 0.0
      %1276 = vmatprep.subr.mxu0 0.0
      %1277 = vmatpush2.msra.mxu0 0.0
      %1278 = vmatprep.subr.mxu0 0.0
      %1279 = vmatpush2.msra.mxu0 0.0
      %1280 = vmatprep.subr.mxu0 0.0
      %1281 = vmatpush2.msra.mxu0 0.0
      %1282 = vmatprep.subr.mxu0 0.0
      %1283 = vmatpush2.msra.mxu0 0.0
      %1284 = vmatprep.subr.mxu0 0.0
      %1285 = vmatpush2.msra.mxu0 0.0
      %1286 = vmatprep.subr.mxu0 0.0
      %1287 = vmatpush2.msra.mxu0 0.0
      %1288 = vmatprep.subr.mxu0 0.0
      %1289 = vmatpush2.msra.mxu0 0.0
      %1290 = vmatprep.subr.mxu0 0.0
      %1291 = vmatpush2.msra.mxu0 0.0
      %1292 = vmatprep.subr.mxu0 0.0
      %1293 = vmatpush2.msra.mxu0 0.0
      %1294 = vmatprep.subr.mxu0 0.0
      %1295 = vmatpush2.msra.mxu0 0.0
      %1296 = vmatprep.subr.mxu0 0.0
      %1297 = vmatpush2.msra.mxu0 0.0
      %1298 = vmatprep.subr.mxu0 0.0
      %1299 = vmatpush2.msra.mxu0 0.0
      %1300 = vmatprep.subr.mxu0 0.0
      %1301 = vmatpush2.msra.mxu0 0.0
      %1302 = vmatprep.subr.mxu0 0.0
      %1303 = vmatpush2.msra.mxu0 0.0
      %1304 = vmatprep.mubr.f32.mxu0 0.0
      %1305 = vmatmul.mubr.f32.gmra.mxu0 %v809
      %v1306 = vpop.f32.mrf.mxu0
      %v1307 = vadd.f32 %v979, %v1306
      %v1308 = vpop.f32.mrf.mxu0
      %1309 = vmatprep.mubr.f32.mxu0 0.0
      %1310 = vmatmul.mubr.f32.gmra.mxu0 %v814
      %v1311 = vpop.f32.mrf.mxu0
      %v1312 = vadd.f32 %v979, %v1311
      %v1313 = vpop.f32.mrf.mxu0
      %1314 = vmatprep.mubr.f32.mxu0 0.0
      %1315 = vmatmul.mubr.f32.gmra.mxu0 %v819
      %v1316 = vpop.f32.mrf.mxu0
      %v1317 = vadd.f32 %v979, %v1316
      %v1318 = vpop.f32.mrf.mxu0
      %1319 = vmatprep.mubr.f32.mxu0 0.0
      %1320 = vmatmul.mubr.f32.gmra.mxu0 %v824
      %v1321 = vpop.f32.mrf.mxu0
      %v1322 = vadd.f32 %v979, %v1321
      %v1323 = vpop.f32.mrf.mxu0
      %1324 = vmatprep.mubr.f32.mxu0 0.0
      %1325 = vmatmul.mubr.f32.gmra.mxu0 %v829
      %v1326 = vpop.f32.mrf.mxu0
      %v1327 = vadd.f32 %v979, %v1326
      %v1328 = vpop.f32.mrf.mxu0
      %1329 = vmatprep.mubr.f32.mxu0 0.0
      %1330 = vmatmul.mubr.f32.gmra.mxu0 %v834
      %v1331 = vpop.f32.mrf.mxu0
      %v1332 = vadd.f32 %v979, %v1331
      %v1333 = vpop.f32.mrf.mxu0
      %1334 = vmatprep.mubr.f32.mxu0 0.0
      %1335 = vmatmul.mubr.f32.gmra.mxu0 %v839
      %v1336 = vpop.f32.mrf.mxu0
      %v1337 = vadd.f32 %v979, %v1336
      %v1338 = vpop.f32.mrf.mxu0
      %1339 = vmatprep.mubr.f32.mxu0 0.0
      %1340 = vmatmul.mubr.f32.gmra.mxu0 %v844
      %v1341 = vpop.f32.mrf.mxu0
      %v1342 = vadd.f32 %v979, %v1341
      %v1343 = vpop.f32.mrf.mxu0
      %1344 = vmatprep.mubr.f32.mxu0 0.0
      %1345 = vmatmul.mubr.f32.gmra.mxu0 %v849
      %v1346 = vpop.f32.mrf.mxu0
      %v1347 = vadd.f32 %v979, %v1346
      %v1348 = vpop.f32.mrf.mxu0
      %1349 = vmatprep.mubr.f32.mxu0 0.0
      %1350 = vmatmul.mubr.f32.gmra.mxu0 %v854
      %v1351 = vpop.f32.mrf.mxu0
      %v1352 = vadd.f32 %v979, %v1351
      %v1353 = vpop.f32.mrf.mxu0
      %1354 = vmatprep.mubr.f32.mxu0 0.0
      %1355 = vmatmul.mubr.f32.gmra.mxu0 %v859
      %v1356 = vpop.f32.mrf.mxu0
      %v1357 = vadd.f32 %v979, %v1356
      %v1358 = vpop.f32.mrf.mxu0
      %1359 = vmatprep.mubr.f32.mxu0 0.0
      %1360 = vmatmul.mubr.f32.gmra.mxu0 %v864
      %v1361 = vpop.f32.mrf.mxu0
      %v1362 = vadd.f32 %v979, %v1361
      %v1363 = vpop.f32.mrf.mxu0
      %1364 = vmatprep.mubr.f32.mxu0 0.0
      %1365 = vmatmul.mubr.f32.gmra.mxu0 %v869
      %v1366 = vpop.f32.mrf.mxu0
      %v1367 = vadd.f32 %v979, %v1366
      %v1368 = vpop.f32.mrf.mxu0
      %1369 = vmatprep.mubr.f32.mxu0 0.0
      %1370 = vmatmul.mubr.f32.gmra.mxu0 %v874
      %v1371 = vpop.f32.mrf.mxu0
      %v1372 = vadd.f32 %v979, %v1371
      %v1373 = vpop.f32.mrf.mxu0
      %1374 = vmatprep.mubr.f32.mxu0 0.0
      %1375 = vmatmul.mubr.f32.gmra.mxu0 %v879
      %v1376 = vpop.f32.mrf.mxu0
      %v1377 = vadd.f32 %v979, %v1376
      %v1378 = vpop.f32.mrf.mxu0
      %1379 = vmatprep.mubr.f32.mxu0 0.0
      %1380 = vmatmul.mubr.f32.gmra.mxu0 %v884
      %v1381 = vpop.f32.mrf.mxu0
      %v1382 = vadd.f32 %v979, %v1381
      %v1383 = vpop.f32.mrf.mxu0
      %1384 = vmatprep.mubr.f32.mxu0 0.0
      %1385 = vmatmul.mubr.f32.gmra.mxu0 %v889
      %v1386 = vpop.f32.mrf.mxu0
      %v1387 = vadd.f32 %v979, %v1386
      %v1388 = vpop.f32.mrf.mxu0
      %1389 = vmatprep.mubr.f32.mxu0 0.0
      %1390 = vmatmul.mubr.f32.gmra.mxu0 %v894
      %v1391 = vpop.f32.mrf.mxu0
      %v1392 = vadd.f32 %v979, %v1391
      %v1393 = vpop.f32.mrf.mxu0
      %1394 = vmatprep.mubr.f32.mxu0 0.0
      %1395 = vmatmul.mubr.f32.gmra.mxu0 %v899
      %v1396 = vpop.f32.mrf.mxu0
      %v1397 = vadd.f32 %v979, %v1396
      %v1398 = vpop.f32.mrf.mxu0
      %1399 = vmatprep.mubr.f32.mxu0 0.0
      %1400 = vmatmul.mubr.f32.gmra.mxu0 %v904
      %v1401 = vpop.f32.mrf.mxu0
      %v1402 = vadd.f32 %v979, %v1401
      %v1403 = vpop.f32.mrf.mxu0
      %1404 = vmatprep.mubr.f32.mxu0 0.0
      %1405 = vmatmul.mubr.f32.gmra.mxu0 %v909
      %v1406 = vpop.f32.mrf.mxu0
      %v1407 = vadd.f32 %v979, %v1406
      %v1408 = vpop.f32.mrf.mxu0
      %1409 = vmatprep.mubr.f32.mxu0 0.0
      %1410 = vmatmul.mubr.f32.gmra.mxu0 %v914
      %v1411 = vpop.f32.mrf.mxu0
      %v1412 = vadd.f32 %v979, %v1411
      %v1413 = vpop.f32.mrf.mxu0
      %1414 = vmatprep.mubr.f32.mxu0 0.0
      %1415 = vmatmul.mubr.f32.gmra.mxu0 %v919
      %v1416 = vpop.f32.mrf.mxu0
      %v1417 = vadd.f32 %v979, %v1416
      %v1418 = vpop.f32.mrf.mxu0
      %1419 = vmatprep.mubr.f32.mxu0 0.0
      %1420 = vmatmul.mubr.f32.gmra.mxu0 %v924
      %v1421 = vpop.f32.mrf.mxu0
      %v1422 = vadd.f32 %v979, %v1421
      %v1423 = vpop.f32.mrf.mxu0
      %1424 = vmatprep.mubr.f32.mxu0 0.0
      %1425 = vmatmul.mubr.f32.gmra.mxu0 %v929
      %v1426 = vpop.f32.mrf.mxu0
      %v1427 = vadd.f32 %v979, %v1426
      %v1428 = vpop.f32.mrf.mxu0
      %1429 = vmatprep.mubr.f32.mxu0 0.0
      %1430 = vmatmul.mubr.f32.gmra.mxu0 %v934
      %v1431 = vpop.f32.mrf.mxu0
      %v1432 = vadd.f32 %v979, %v1431
      %v1433 = vpop.f32.mrf.mxu0
      %1434 = vmatprep.mubr.f32.mxu0 0.0
      %1435 = vmatmul.mubr.f32.gmra.mxu0 %v939
      %v1436 = vpop.f32.mrf.mxu0
      %v1437 = vadd.f32 %v979, %v1436
      %v1438 = vpop.f32.mrf.mxu0
      %1439 = vmatprep.mubr.f32.mxu0 0.0
      %1440 = vmatmul.mubr.f32.gmra.mxu0 %v944
      %v1441 = vpop.f32.mrf.mxu0
      %v1442 = vadd.f32 %v979, %v1441
      %v1443 = vpop.f32.mrf.mxu0
      %1444 = vmatprep.mubr.f32.mxu0 0.0
      %1445 = vmatmul.mubr.f32.gmra.mxu0 %v949
      %v1446 = vpop.f32.mrf.mxu0
      %v1447 = vadd.f32 %v979, %v1446
      %v1448 = vpop.f32.mrf.mxu0
      %1449 = vmatprep.mubr.f32.mxu0 0.0
      %1450 = vmatmul.mubr.f32.gmra.mxu0 %v954
      %v1451 = vpop.f32.mrf.mxu0
      %v1452 = vadd.f32 %v979, %v1451
      %v1453 = vpop.f32.mrf.mxu0
      %1454 = vmatprep.mubr.f32.mxu0 0.0
      %1455 = vmatmul.mubr.f32.gmra.mxu0 %v959
      %v1456 = vpop.f32.mrf.mxu0
      %v1457 = vadd.f32 %v979, %v1456
      %v1458 = vpop.f32.mrf.mxu0
      %1459 = vmatprep.mubr.f32.mxu0 0.0
      %1460 = vmatmul.mubr.f32.gmra.mxu0 %v964
      %v1461 = vpop.f32.mrf.mxu0
      %v1462 = vadd.f32 %v979, %v1461
      %v1463 = vpop.f32.mrf.mxu0
      %1464 = vdwg.mxu0
      %v1466 = vlaneseq
      %v1467 = vshrl.u32 %v1466, 7
      %v1468 = vsub.s32 0, %v1467
      %v1469 = vrot.slane %v500, %v1468
      %v1470 = vlaneseq
      %v1471 = vshrl.u32 %v1470, 7
      %v1472 = vsub.s32 1, %v1471
      %v1473 = vrot.slane %v500, %v1472
      %v1474 = vlaneseq
      %v1475 = vshrl.u32 %v1474, 7
      %v1476 = vsub.s32 2, %v1475
      %v1477 = vrot.slane %v500, %v1476
      %1481 = vmatprep.subr.mxu0 %v497
      %1482 = vmatpush1.msra.mxu0 %v496
      %1483 = vmatprep.subr.mxu0 %v494
      %1484 = vmatpush1.msra.mxu0 %v493
      %1485 = vmatprep.subr.mxu0 %v491
      %1486 = vmatpush1.msra.mxu0 %v490
      %1487 = vmatprep.subr.mxu0 %v488
      %1488 = vmatpush1.msra.mxu0 %v487
      %1489 = vmatprep.subr.mxu0 %v485
      %1490 = vmatpush1.msra.mxu0 %v484
      %1491 = vmatprep.subr.mxu0 %v482
      %1492 = vmatpush1.msra.mxu0 %v481
      %1493 = vmatprep.subr.mxu0 %v479
      %1494 = vmatpush1.msra.mxu0 %v478
      %1495 = vmatprep.subr.mxu0 %v476
      %1496 = vmatpush1.msra.mxu0 %v475
      %1497 = vmatprep.subr.mxu0 %v473
      %1498 = vmatpush1.msra.mxu0 %v472
      %1499 = vmatprep.subr.mxu0 %v470
      %1500 = vmatpush1.msra.mxu0 %v469
      %1501 = vmatprep.subr.mxu0 %v467
      %1502 = vmatpush1.msra.mxu0 %v466
      %1503 = vmatprep.subr.mxu0 %v464
      %1504 = vmatpush1.msra.mxu0 %v463
      %1505 = vmatprep.subr.mxu0 %v461
      %1506 = vmatpush1.msra.mxu0 %v460
      %1507 = vmatprep.subr.mxu0 %v458
      %1508 = vmatpush1.msra.mxu0 %v457
      %1509 = vmatprep.subr.mxu0 %v455
      %1510 = vmatpush1.msra.mxu0 %v454
      %1511 = vmatprep.subr.mxu0 %v452
      %1512 = vmatpush1.msra.mxu0 %v451
      %1513 = vmatprep.subr.mxu0 0.0
      %1514 = vmatpush2.msra.mxu0 0.0
      %1515 = vmatprep.subr.mxu0 0.0
      %1516 = vmatpush2.msra.mxu0 0.0
      %1517 = vmatprep.subr.mxu0 0.0
      %1518 = vmatpush2.msra.mxu0 0.0
      %1519 = vmatprep.subr.mxu0 0.0
      %1520 = vmatpush2.msra.mxu0 0.0
      %1521 = vmatprep.subr.mxu0 0.0
      %1522 = vmatpush2.msra.mxu0 0.0
      %1523 = vmatprep.subr.mxu0 0.0
      %1524 = vmatpush2.msra.mxu0 0.0
      %1525 = vmatprep.subr.mxu0 0.0
      %1526 = vmatpush2.msra.mxu0 0.0
      %1527 = vmatprep.subr.mxu0 0.0
      %1528 = vmatpush2.msra.mxu0 0.0
      %1529 = vmatprep.subr.mxu0 0.0
      %1530 = vmatpush2.msra.mxu0 0.0
      %1531 = vmatprep.subr.mxu0 0.0
      %1532 = vmatpush2.msra.mxu0 0.0
      %1533 = vmatprep.subr.mxu0 0.0
      %1534 = vmatpush2.msra.mxu0 0.0
      %1535 = vmatprep.subr.mxu0 0.0
      %1536 = vmatpush2.msra.mxu0 0.0
      %1537 = vmatprep.subr.mxu0 0.0
      %1538 = vmatpush2.msra.mxu0 0.0
      %1539 = vmatprep.subr.mxu0 0.0
      %1540 = vmatpush2.msra.mxu0 0.0
      %1541 = vmatprep.subr.mxu0 0.0
      %1542 = vmatpush2.msra.mxu0 0.0
      %1543 = vmatprep.subr.mxu0 0.0
      %1544 = vmatpush2.msra.mxu0 0.0
      %1545 = vmatprep.mubr.f32.mxu0 0.0
      %1546 = vmatmul.mubr.f32.gmra.mxu0 %v307
      %v1547 = vpop.f32.mrf.mxu0
      %v1548 = vadd.f32 %v1469, %v1547
      %v1549 = vpop.f32.mrf.mxu0
      %v1550 = vadd.f32 %v1473, %v1549
      %1551 = vmatprep.mubr.f32.mxu0 0.0
      %1552 = vmatmul.mubr.f32.gmra.mxu0 %v308
      %v1553 = vpop.f32.mrf.mxu0
      %v1554 = vadd.f32 %v1469, %v1553
      %v1555 = vpop.f32.mrf.mxu0
      %v1556 = vadd.f32 %v1473, %v1555
      %1557 = vmatprep.mubr.f32.mxu0 0.0
      %1558 = vmatmul.mubr.f32.gmra.mxu0 %v309
      %v1559 = vpop.f32.mrf.mxu0
      %v1560 = vadd.f32 %v1469, %v1559
      %v1561 = vpop.f32.mrf.mxu0
      %v1562 = vadd.f32 %v1473, %v1561
      %1563 = vmatprep.mubr.f32.mxu0 0.0
      %1564 = vmatmul.mubr.f32.gmra.mxu0 %v310
      %v1565 = vpop.f32.mrf.mxu0
      %v1566 = vadd.f32 %v1469, %v1565
      %v1567 = vpop.f32.mrf.mxu0
      %v1568 = vadd.f32 %v1473, %v1567
      %1569 = vmatprep.mubr.f32.mxu0 0.0
      %1570 = vmatmul.mubr.f32.gmra.mxu0 %v311
      %v1571 = vpop.f32.mrf.mxu0
      %v1572 = vadd.f32 %v1469, %v1571
      %v1573 = vpop.f32.mrf.mxu0
      %v1574 = vadd.f32 %v1473, %v1573
      %1575 = vmatprep.mubr.f32.mxu0 0.0
      %1576 = vmatmul.mubr.f32.gmra.mxu0 %v312
      %v1577 = vpop.f32.mrf.mxu0
      %v1578 = vadd.f32 %v1469, %v1577
      %v1579 = vpop.f32.mrf.mxu0
      %v1580 = vadd.f32 %v1473, %v1579
      %1581 = vmatprep.mubr.f32.mxu0 0.0
      %1582 = vmatmul.mubr.f32.gmra.mxu0 %v313
      %v1583 = vpop.f32.mrf.mxu0
      %v1584 = vadd.f32 %v1469, %v1583
      %v1585 = vpop.f32.mrf.mxu0
      %v1586 = vadd.f32 %v1473, %v1585
      %1587 = vmatprep.mubr.f32.mxu0 0.0
      %1588 = vmatmul.mubr.f32.gmra.mxu0 %v314
      %v1589 = vpop.f32.mrf.mxu0
      %v1590 = vadd.f32 %v1469, %v1589
      %v1591 = vpop.f32.mrf.mxu0
      %v1592 = vadd.f32 %v1473, %v1591
      %1593 = vmatprep.mubr.f32.mxu0 0.0
      %1594 = vmatmul.mubr.f32.gmra.mxu0 %v315
      %v1595 = vpop.f32.mrf.mxu0
      %v1596 = vadd.f32 %v1469, %v1595
      %v1597 = vpop.f32.mrf.mxu0
      %v1598 = vadd.f32 %v1473, %v1597
      %1599 = vmatprep.mubr.f32.mxu0 0.0
      %1600 = vmatmul.mubr.f32.gmra.mxu0 %v316
      %v1601 = vpop.f32.mrf.mxu0
      %v1602 = vadd.f32 %v1469, %v1601
      %v1603 = vpop.f32.mrf.mxu0
      %v1604 = vadd.f32 %v1473, %v1603
      %1605 = vmatprep.mubr.f32.mxu0 0.0
      %1606 = vmatmul.mubr.f32.gmra.mxu0 %v317
      %v1607 = vpop.f32.mrf.mxu0
      %v1608 = vadd.f32 %v1469, %v1607
      %v1609 = vpop.f32.mrf.mxu0
      %v1610 = vadd.f32 %v1473, %v1609
      %1611 = vmatprep.mubr.f32.mxu0 0.0
      %1612 = vmatmul.mubr.f32.gmra.mxu0 %v318
      %v1613 = vpop.f32.mrf.mxu0
      %v1614 = vadd.f32 %v1469, %v1613
      %v1615 = vpop.f32.mrf.mxu0
      %v1616 = vadd.f32 %v1473, %v1615
      %1617 = vmatprep.mubr.f32.mxu0 0.0
      %1618 = vmatmul.mubr.f32.gmra.mxu0 %v319
      %v1619 = vpop.f32.mrf.mxu0
      %v1620 = vadd.f32 %v1469, %v1619
      %v1621 = vpop.f32.mrf.mxu0
      %v1622 = vadd.f32 %v1473, %v1621
      %1623 = vmatprep.mubr.f32.mxu0 0.0
      %1624 = vmatmul.mubr.f32.gmra.mxu0 %v320
      %v1625 = vpop.f32.mrf.mxu0
      %v1626 = vadd.f32 %v1469, %v1625
      %v1627 = vpop.f32.mrf.mxu0
      %v1628 = vadd.f32 %v1473, %v1627
      %1629 = vmatprep.mubr.f32.mxu0 0.0
      %1630 = vmatmul.mubr.f32.gmra.mxu0 %v321
      %v1631 = vpop.f32.mrf.mxu0
      %v1632 = vadd.f32 %v1469, %v1631
      %v1633 = vpop.f32.mrf.mxu0
      %v1634 = vadd.f32 %v1473, %v1633
      %1635 = vmatprep.mubr.f32.mxu0 0.0
      %1636 = vmatmul.mubr.f32.gmra.mxu0 %v322
      %v1637 = vpop.f32.mrf.mxu0
      %v1638 = vadd.f32 %v1469, %v1637
      %v1639 = vpop.f32.mrf.mxu0
      %v1640 = vadd.f32 %v1473, %v1639
      %1641 = vmatprep.mubr.f32.mxu0 0.0
      %1642 = vmatmul.mubr.f32.gmra.mxu0 %v323
      %v1643 = vpop.f32.mrf.mxu0
      %v1644 = vadd.f32 %v1469, %v1643
      %v1645 = vpop.f32.mrf.mxu0
      %v1646 = vadd.f32 %v1473, %v1645
      %1647 = vmatprep.mubr.f32.mxu0 0.0
      %1648 = vmatmul.mubr.f32.gmra.mxu0 %v324
      %v1649 = vpop.f32.mrf.mxu0
      %v1650 = vadd.f32 %v1469, %v1649
      %v1651 = vpop.f32.mrf.mxu0
      %v1652 = vadd.f32 %v1473, %v1651
      %1653 = vmatprep.mubr.f32.mxu0 0.0
      %1654 = vmatmul.mubr.f32.gmra.mxu0 %v325
      %v1655 = vpop.f32.mrf.mxu0
      %v1656 = vadd.f32 %v1469, %v1655
      %v1657 = vpop.f32.mrf.mxu0
      %v1658 = vadd.f32 %v1473, %v1657
      %1659 = vmatprep.mubr.f32.mxu0 0.0
      %1660 = vmatmul.mubr.f32.gmra.mxu0 %v326
      %v1661 = vpop.f32.mrf.mxu0
      %v1662 = vadd.f32 %v1469, %v1661
      %v1663 = vpop.f32.mrf.mxu0
      %v1664 = vadd.f32 %v1473, %v1663
      %1665 = vmatprep.mubr.f32.mxu0 0.0
      %1666 = vmatmul.mubr.f32.gmra.mxu0 %v327
      %v1667 = vpop.f32.mrf.mxu0
      %v1668 = vadd.f32 %v1469, %v1667
      %v1669 = vpop.f32.mrf.mxu0
      %v1670 = vadd.f32 %v1473, %v1669
      %1671 = vmatprep.mubr.f32.mxu0 0.0
      %1672 = vmatmul.mubr.f32.gmra.mxu0 %v328
      %v1673 = vpop.f32.mrf.mxu0
      %v1674 = vadd.f32 %v1469, %v1673
      %v1675 = vpop.f32.mrf.mxu0
      %v1676 = vadd.f32 %v1473, %v1675
      %1677 = vmatprep.mubr.f32.mxu0 0.0
      %1678 = vmatmul.mubr.f32.gmra.mxu0 %v329
      %v1679 = vpop.f32.mrf.mxu0
      %v1680 = vadd.f32 %v1469, %v1679
      %v1681 = vpop.f32.mrf.mxu0
      %v1682 = vadd.f32 %v1473, %v1681
      %1683 = vmatprep.mubr.f32.mxu0 0.0
      %1684 = vmatmul.mubr.f32.gmra.mxu0 %v330
      %v1685 = vpop.f32.mrf.mxu0
      %v1686 = vadd.f32 %v1469, %v1685
      %v1687 = vpop.f32.mrf.mxu0
      %v1688 = vadd.f32 %v1473, %v1687
      %1689 = vmatprep.mubr.f32.mxu0 0.0
      %1690 = vmatmul.mubr.f32.gmra.mxu0 %v331
      %v1691 = vpop.f32.mrf.mxu0
      %v1692 = vadd.f32 %v1469, %v1691
      %v1693 = vpop.f32.mrf.mxu0
      %v1694 = vadd.f32 %v1473, %v1693
      %1695 = vmatprep.mubr.f32.mxu0 0.0
      %1696 = vmatmul.mubr.f32.gmra.mxu0 %v332
      %v1697 = vpop.f32.mrf.mxu0
      %v1698 = vadd.f32 %v1469, %v1697
      %v1699 = vpop.f32.mrf.mxu0
      %v1700 = vadd.f32 %v1473, %v1699
      %1701 = vmatprep.mubr.f32.mxu0 0.0
      %1702 = vmatmul.mubr.f32.gmra.mxu0 %v333
      %v1703 = vpop.f32.mrf.mxu0
      %v1704 = vadd.f32 %v1469, %v1703
      %v1705 = vpop.f32.mrf.mxu0
      %v1706 = vadd.f32 %v1473, %v1705
      %1707 = vmatprep.mubr.f32.mxu0 0.0
      %1708 = vmatmul.mubr.f32.gmra.mxu0 %v334
      %v1709 = vpop.f32.mrf.mxu0
      %v1710 = vadd.f32 %v1469, %v1709
      %v1711 = vpop.f32.mrf.mxu0
      %v1712 = vadd.f32 %v1473, %v1711
      %1713 = vmatprep.mubr.f32.mxu0 0.0
      %1714 = vmatmul.mubr.f32.gmra.mxu0 %v335
      %v1715 = vpop.f32.mrf.mxu0
      %v1716 = vadd.f32 %v1469, %v1715
      %v1717 = vpop.f32.mrf.mxu0
      %v1718 = vadd.f32 %v1473, %v1717
      %1719 = vmatprep.mubr.f32.mxu0 0.0
      %1720 = vmatmul.mubr.f32.gmra.mxu0 %v336
      %v1721 = vpop.f32.mrf.mxu0
      %v1722 = vadd.f32 %v1469, %v1721
      %v1723 = vpop.f32.mrf.mxu0
      %v1724 = vadd.f32 %v1473, %v1723
      %1725 = vmatprep.mubr.f32.mxu0 0.0
      %1726 = vmatmul.mubr.f32.gmra.mxu0 %v337
      %v1727 = vpop.f32.mrf.mxu0
      %v1728 = vadd.f32 %v1469, %v1727
      %v1729 = vpop.f32.mrf.mxu0
      %v1730 = vadd.f32 %v1473, %v1729
      %1731 = vmatprep.mubr.f32.mxu0 0.0
      %1732 = vmatmul.mubr.f32.gmra.mxu0 %v338
      %v1733 = vpop.f32.mrf.mxu0
      %v1734 = vadd.f32 %v1469, %v1733
      %v1735 = vpop.f32.mrf.mxu0
      %v1736 = vadd.f32 %v1473, %v1735
      %1737 = vdwg.mxu0
      %1738 = vmatprep.subr.mxu0 0.0
      %1739 = vmatpush1.msra.mxu0 %v498
      %1740 = vmatprep.subr.mxu0 0.0
      %1741 = vmatpush1.msra.mxu0 %v495
      %1742 = vmatprep.subr.mxu0 0.0
      %1743 = vmatpush1.msra.mxu0 %v492
      %1744 = vmatprep.subr.mxu0 0.0
      %1745 = vmatpush1.msra.mxu0 %v489
      %1746 = vmatprep.subr.mxu0 0.0
      %1747 = vmatpush1.msra.mxu0 %v486
      %1748 = vmatprep.subr.mxu0 0.0
      %1749 = vmatpush1.msra.mxu0 %v483
      %1750 = vmatprep.subr.mxu0 0.0
      %1751 = vmatpush1.msra.mxu0 %v480
      %1752 = vmatprep.subr.mxu0 0.0
      %1753 = vmatpush1.msra.mxu0 %v477
      %1754 = vmatprep.subr.mxu0 0.0
      %1755 = vmatpush1.msra.mxu0 %v474
      %1756 = vmatprep.subr.mxu0 0.0
      %1757 = vmatpush1.msra.mxu0 %v471
      %1758 = vmatprep.subr.mxu0 0.0
      %1759 = vmatpush1.msra.mxu0 %v468
      %1760 = vmatprep.subr.mxu0 0.0
      %1761 = vmatpush1.msra.mxu0 %v465
      %1762 = vmatprep.subr.mxu0 0.0
      %1763 = vmatpush1.msra.mxu0 %v462
      %1764 = vmatprep.subr.mxu0 0.0
      %1765 = vmatpush1.msra.mxu0 %v459
      %1766 = vmatprep.subr.mxu0 0.0
      %1767 = vmatpush1.msra.mxu0 %v456
      %1768 = vmatprep.subr.mxu0 0.0
      %1769 = vmatpush1.msra.mxu0 %v453
      %1770 = vmatprep.subr.mxu0 0.0
      %1771 = vmatpush2.msra.mxu0 0.0
      %1772 = vmatprep.subr.mxu0 0.0
      %1773 = vmatpush2.msra.mxu0 0.0
      %1774 = vmatprep.subr.mxu0 0.0
      %1775 = vmatpush2.msra.mxu0 0.0
      %1776 = vmatprep.subr.mxu0 0.0
      %1777 = vmatpush2.msra.mxu0 0.0
      %1778 = vmatprep.subr.mxu0 0.0
      %1779 = vmatpush2.msra.mxu0 0.0
      %1780 = vmatprep.subr.mxu0 0.0
      %1781 = vmatpush2.msra.mxu0 0.0
      %1782 = vmatprep.subr.mxu0 0.0
      %1783 = vmatpush2.msra.mxu0 0.0
      %1784 = vmatprep.subr.mxu0 0.0
      %1785 = vmatpush2.msra.mxu0 0.0
      %1786 = vmatprep.subr.mxu0 0.0
      %1787 = vmatpush2.msra.mxu0 0.0
      %1788 = vmatprep.subr.mxu0 0.0
      %1789 = vmatpush2.msra.mxu0 0.0
      %1790 = vmatprep.subr.mxu0 0.0
      %1791 = vmatpush2.msra.mxu0 0.0
      %1792 = vmatprep.subr.mxu0 0.0
      %1793 = vmatpush2.msra.mxu0 0.0
      %1794 = vmatprep.subr.mxu0 0.0
      %1795 = vmatpush2.msra.mxu0 0.0
      %1796 = vmatprep.subr.mxu0 0.0
      %1797 = vmatpush2.msra.mxu0 0.0
      %1798 = vmatprep.subr.mxu0 0.0
      %1799 = vmatpush2.msra.mxu0 0.0
      %1800 = vmatprep.subr.mxu0 0.0
      %1801 = vmatpush2.msra.mxu0 0.0
      %1802 = vmatprep.mubr.f32.mxu0 0.0
      %1803 = vmatmul.mubr.f32.gmra.mxu0 %v307
      %v1804 = vpop.f32.mrf.mxu0
      %v1805 = vadd.f32 %v1477, %v1804
      %v1806 = vpop.f32.mrf.mxu0
      %1807 = vmatprep.mubr.f32.mxu0 0.0
      %1808 = vmatmul.mubr.f32.gmra.mxu0 %v308
      %v1809 = vpop.f32.mrf.mxu0
      %v1810 = vadd.f32 %v1477, %v1809
      %v1811 = vpop.f32.mrf.mxu0
      %1812 = vmatprep.mubr.f32.mxu0 0.0
      %1813 = vmatmul.mubr.f32.gmra.mxu0 %v309
      %v1814 = vpop.f32.mrf.mxu0
      %v1815 = vadd.f32 %v1477, %v1814
      %v1816 = vpop.f32.mrf.mxu0
      %1817 = vmatprep.mubr.f32.mxu0 0.0
      %1818 = vmatmul.mubr.f32.gmra.mxu0 %v310
      %v1819 = vpop.f32.mrf.mxu0
      %v1820 = vadd.f32 %v1477, %v1819
      %v1821 = vpop.f32.mrf.mxu0
      %1822 = vmatprep.mubr.f32.mxu0 0.0
      %1823 = vmatmul.mubr.f32.gmra.mxu0 %v311
      %v1824 = vpop.f32.mrf.mxu0
      %v1825 = vadd.f32 %v1477, %v1824
      %v1826 = vpop.f32.mrf.mxu0
      %1827 = vmatprep.mubr.f32.mxu0 0.0
      %1828 = vmatmul.mubr.f32.gmra.mxu0 %v312
      %v1829 = vpop.f32.mrf.mxu0
      %v1830 = vadd.f32 %v1477, %v1829
      %v1831 = vpop.f32.mrf.mxu0
      %1832 = vmatprep.mubr.f32.mxu0 0.0
      %1833 = vmatmul.mubr.f32.gmra.mxu0 %v313
      %v1834 = vpop.f32.mrf.mxu0
      %v1835 = vadd.f32 %v1477, %v1834
      %v1836 = vpop.f32.mrf.mxu0
      %1837 = vmatprep.mubr.f32.mxu0 0.0
      %1838 = vmatmul.mubr.f32.gmra.mxu0 %v314
      %v1839 = vpop.f32.mrf.mxu0
      %v1840 = vadd.f32 %v1477, %v1839
      %v1841 = vpop.f32.mrf.mxu0
      %1842 = vmatprep.mubr.f32.mxu0 0.0
      %1843 = vmatmul.mubr.f32.gmra.mxu0 %v315
      %v1844 = vpop.f32.mrf.mxu0
      %v1845 = vadd.f32 %v1477, %v1844
      %v1846 = vpop.f32.mrf.mxu0
      %1847 = vmatprep.mubr.f32.mxu0 0.0
      %1848 = vmatmul.mubr.f32.gmra.mxu0 %v316
      %v1849 = vpop.f32.mrf.mxu0
      %v1850 = vadd.f32 %v1477, %v1849
      %v1851 = vpop.f32.mrf.mxu0
      %1852 = vmatprep.mubr.f32.mxu0 0.0
      %1853 = vmatmul.mubr.f32.gmra.mxu0 %v317
      %v1854 = vpop.f32.mrf.mxu0
      %v1855 = vadd.f32 %v1477, %v1854
      %v1856 = vpop.f32.mrf.mxu0
      %1857 = vmatprep.mubr.f32.mxu0 0.0
      %1858 = vmatmul.mubr.f32.gmra.mxu0 %v318
      %v1859 = vpop.f32.mrf.mxu0
      %v1860 = vadd.f32 %v1477, %v1859
      %v1861 = vpop.f32.mrf.mxu0
      %1862 = vmatprep.mubr.f32.mxu0 0.0
      %1863 = vmatmul.mubr.f32.gmra.mxu0 %v319
      %v1864 = vpop.f32.mrf.mxu0
      %v1865 = vadd.f32 %v1477, %v1864
      %v1866 = vpop.f32.mrf.mxu0
      %1867 = vmatprep.mubr.f32.mxu0 0.0
      %1868 = vmatmul.mubr.f32.gmra.mxu0 %v320
      %v1869 = vpop.f32.mrf.mxu0
      %v1870 = vadd.f32 %v1477, %v1869
      %v1871 = vpop.f32.mrf.mxu0
      %1872 = vmatprep.mubr.f32.mxu0 0.0
      %1873 = vmatmul.mubr.f32.gmra.mxu0 %v321
      %v1874 = vpop.f32.mrf.mxu0
      %v1875 = vadd.f32 %v1477, %v1874
      %v1876 = vpop.f32.mrf.mxu0
      %1877 = vmatprep.mubr.f32.mxu0 0.0
      %1878 = vmatmul.mubr.f32.gmra.mxu0 %v322
      %v1879 = vpop.f32.mrf.mxu0
      %v1880 = vadd.f32 %v1477, %v1879
      %v1881 = vpop.f32.mrf.mxu0
      %1882 = vmatprep.mubr.f32.mxu0 0.0
      %1883 = vmatmul.mubr.f32.gmra.mxu0 %v323
      %v1884 = vpop.f32.mrf.mxu0
      %v1885 = vadd.f32 %v1477, %v1884
      %v1886 = vpop.f32.mrf.mxu0
      %1887 = vmatprep.mubr.f32.mxu0 0.0
      %1888 = vmatmul.mubr.f32.gmra.mxu0 %v324
      %v1889 = vpop.f32.mrf.mxu0
      %v1890 = vadd.f32 %v1477, %v1889
      %v1891 = vpop.f32.mrf.mxu0
      %1892 = vmatprep.mubr.f32.mxu0 0.0
      %1893 = vmatmul.mubr.f32.gmra.mxu0 %v325
      %v1894 = vpop.f32.mrf.mxu0
      %v1895 = vadd.f32 %v1477, %v1894
      %v1896 = vpop.f32.mrf.mxu0
      %1897 = vmatprep.mubr.f32.mxu0 0.0
      %1898 = vmatmul.mubr.f32.gmra.mxu0 %v326
      %v1899 = vpop.f32.mrf.mxu0
      %v1900 = vadd.f32 %v1477, %v1899
      %v1901 = vpop.f32.mrf.mxu0
      %1902 = vmatprep.mubr.f32.mxu0 0.0
      %1903 = vmatmul.mubr.f32.gmra.mxu0 %v327
      %v1904 = vpop.f32.mrf.mxu0
      %v1905 = vadd.f32 %v1477, %v1904
      %v1906 = vpop.f32.mrf.mxu0
      %1907 = vmatprep.mubr.f32.mxu0 0.0
      %1908 = vmatmul.mubr.f32.gmra.mxu0 %v328
      %v1909 = vpop.f32.mrf.mxu0
      %v1910 = vadd.f32 %v1477, %v1909
      %v1911 = vpop.f32.mrf.mxu0
      %1912 = vmatprep.mubr.f32.mxu0 0.0
      %1913 = vmatmul.mubr.f32.gmra.mxu0 %v329
      %v1914 = vpop.f32.mrf.mxu0
      %v1915 = vadd.f32 %v1477, %v1914
      %v1916 = vpop.f32.mrf.mxu0
      %1917 = vmatprep.mubr.f32.mxu0 0.0
      %1918 = vmatmul.mubr.f32.gmra.mxu0 %v330
      %v1919 = vpop.f32.mrf.mxu0
      %v1920 = vadd.f32 %v1477, %v1919
      %v1921 = vpop.f32.mrf.mxu0
      %1922 = vmatprep.mubr.f32.mxu0 0.0
      %1923 = vmatmul.mubr.f32.gmra.mxu0 %v331
      %v1924 = vpop.f32.mrf.mxu0
      %v1925 = vadd.f32 %v1477, %v1924
      %v1926 = vpop.f32.mrf.mxu0
      %1927 = vmatprep.mubr.f32.mxu0 0.0
      %1928 = vmatmul.mubr.f32.gmra.mxu0 %v332
      %v1929 = vpop.f32.mrf.mxu0
      %v1930 = vadd.f32 %v1477, %v1929
      %v1931 = vpop.f32.mrf.mxu0
      %1932 = vmatprep.mubr.f32.mxu0 0.0
      %1933 = vmatmul.mubr.f32.gmra.mxu0 %v333
      %v1934 = vpop.f32.mrf.mxu0
      %v1935 = vadd.f32 %v1477, %v1934
      %v1936 = vpop.f32.mrf.mxu0
      %1937 = vmatprep.mubr.f32.mxu0 0.0
      %1938 = vmatmul.mubr.f32.gmra.mxu0 %v334
      %v1939 = vpop.f32.mrf.mxu0
      %v1940 = vadd.f32 %v1477, %v1939
      %v1941 = vpop.f32.mrf.mxu0
      %1942 = vmatprep.mubr.f32.mxu0 0.0
      %1943 = vmatmul.mubr.f32.gmra.mxu0 %v335
      %v1944 = vpop.f32.mrf.mxu0
      %v1945 = vadd.f32 %v1477, %v1944
      %v1946 = vpop.f32.mrf.mxu0
      %1947 = vmatprep.mubr.f32.mxu0 0.0
      %1948 = vmatmul.mubr.f32.gmra.mxu0 %v336
      %v1949 = vpop.f32.mrf.mxu0
      %v1950 = vadd.f32 %v1477, %v1949
      %v1951 = vpop.f32.mrf.mxu0
      %1952 = vmatprep.mubr.f32.mxu0 0.0
      %1953 = vmatmul.mubr.f32.gmra.mxu0 %v337
      %v1954 = vpop.f32.mrf.mxu0
      %v1955 = vadd.f32 %v1477, %v1954
      %v1956 = vpop.f32.mrf.mxu0
      %1957 = vmatprep.mubr.f32.mxu0 0.0
      %1958 = vmatmul.mubr.f32.gmra.mxu0 %v338
      %v1959 = vpop.f32.mrf.mxu0
      %v1960 = vadd.f32 %v1477, %v1959
      %v1961 = vpop.f32.mrf.mxu0
      %1962 = vdwg.mxu0
      %v1963 = vadd.f32 %v1050, %v1548
      %v1964 = vadd.f32 %v1056, %v1554
      %v1965 = vadd.f32 %v1062, %v1560
      %v1966 = vadd.f32 %v1068, %v1566
      %v1967 = vadd.f32 %v1074, %v1572
      %v1968 = vadd.f32 %v1080, %v1578
      %v1969 = vadd.f32 %v1086, %v1584
      %v1970 = vadd.f32 %v1092, %v1590
      %v1971 = vadd.f32 %v1098, %v1596
      %v1972 = vadd.f32 %v1104, %v1602
      %v1973 = vadd.f32 %v1110, %v1608
      %v1974 = vadd.f32 %v1116, %v1614
      %v1975 = vadd.f32 %v1122, %v1620
      %v1976 = vadd.f32 %v1128, %v1626
      %v1977 = vadd.f32 %v1134, %v1632
      %v1978 = vadd.f32 %v1140, %v1638
      %v1979 = vadd.f32 %v1146, %v1644
      %v1980 = vadd.f32 %v1152, %v1650
      %v1981 = vadd.f32 %v1158, %v1656
      %v1982 = vadd.f32 %v1164, %v1662
      %v1983 = vadd.f32 %v1170, %v1668
      %v1984 = vadd.f32 %v1176, %v1674
      %v1985 = vadd.f32 %v1182, %v1680
      %v1986 = vadd.f32 %v1188, %v1686
      %v1987 = vadd.f32 %v1194, %v1692
      %v1988 = vadd.f32 %v1200, %v1698
      %v1989 = vadd.f32 %v1206, %v1704
      %v1990 = vadd.f32 %v1212, %v1710
      %v1991 = vadd.f32 %v1218, %v1716
      %v1992 = vadd.f32 %v1224, %v1722
      %v1993 = vadd.f32 %v1230, %v1728
      %v1994 = vadd.f32 %v1236, %v1734
      %v1995 = vxor.u32 %v1963, 2147483648
      %v1996 = vxor.u32 %v1964, 2147483648
      %v1997 = vxor.u32 %v1965, 2147483648
      %v1998 = vxor.u32 %v1966, 2147483648
      %v1999 = vxor.u32 %v1967, 2147483648
      %v2000 = vxor.u32 %v1968, 2147483648
      %v2001 = vxor.u32 %v1969, 2147483648
      %v2002 = vxor.u32 %v1970, 2147483648
      %v2003 = vxor.u32 %v1971, 2147483648
      %v2004 = vxor.u32 %v1972, 2147483648
      %v2005 = vxor.u32 %v1973, 2147483648
      %v2006 = vxor.u32 %v1974, 2147483648
      %v2007 = vxor.u32 %v1975, 2147483648
      %v2008 = vxor.u32 %v1976, 2147483648
      %v2009 = vxor.u32 %v1977, 2147483648
      %v2010 = vxor.u32 %v1978, 2147483648
      %v2011 = vxor.u32 %v1979, 2147483648
      %v2012 = vxor.u32 %v1980, 2147483648
      %v2013 = vxor.u32 %v1981, 2147483648
      %v2014 = vxor.u32 %v1982, 2147483648
      %v2015 = vxor.u32 %v1983, 2147483648
      %v2016 = vxor.u32 %v1984, 2147483648
      %v2017 = vxor.u32 %v1985, 2147483648
      %v2018 = vxor.u32 %v1986, 2147483648
      %v2019 = vxor.u32 %v1987, 2147483648
      %v2020 = vxor.u32 %v1988, 2147483648
      %v2021 = vxor.u32 %v1989, 2147483648
      %v2022 = vxor.u32 %v1990, 2147483648
      %v2023 = vxor.u32 %v1991, 2147483648
      %v2024 = vxor.u32 %v1992, 2147483648
      %v2025 = vxor.u32 %v1993, 2147483648
      %v2026 = vxor.u32 %v1994, 2147483648
      %v2027 = vmul.f32 %v1995, 1.442695
      %v2028 = vpow.pop %v2027
      %v2029 = vmul.f32 %v1996, 1.442695
      %v2030 = vpow.pop %v2029
      %v2031 = vmul.f32 %v1997, 1.442695
      %v2032 = vpow.pop %v2031
      %v2033 = vmul.f32 %v1998, 1.442695
      %v2034 = vpow.pop %v2033
      %v2035 = vmul.f32 %v1999, 1.442695
      %v2036 = vpow.pop %v2035
      %v2037 = vmul.f32 %v2000, 1.442695
      %v2038 = vpow.pop %v2037
      %v2039 = vmul.f32 %v2001, 1.442695
      %v2040 = vpow.pop %v2039
      %v2041 = vmul.f32 %v2002, 1.442695
      %v2042 = vpow.pop %v2041
      %v2043 = vmul.f32 %v2003, 1.442695
      %v2044 = vpow.pop %v2043
      %v2045 = vmul.f32 %v2004, 1.442695
      %v2046 = vpow.pop %v2045
      %v2047 = vmul.f32 %v2005, 1.442695
      %v2048 = vpow.pop %v2047
      %v2049 = vmul.f32 %v2006, 1.442695
      %v2050 = vpow.pop %v2049
      %v2051 = vmul.f32 %v2007, 1.442695
      %v2052 = vpow.pop %v2051
      %v2053 = vmul.f32 %v2008, 1.442695
      %v2054 = vpow.pop %v2053
      %v2055 = vmul.f32 %v2009, 1.442695
      %v2056 = vpow.pop %v2055
      %v2057 = vmul.f32 %v2010, 1.442695
      %v2058 = vpow.pop %v2057
      %v2059 = vmul.f32 %v2011, 1.442695
      %v2060 = vpow.pop %v2059
      %v2061 = vmul.f32 %v2012, 1.442695
      %v2062 = vpow.pop %v2061
      %v2063 = vmul.f32 %v2013, 1.442695
      %v2064 = vpow.pop %v2063
      %v2065 = vmul.f32 %v2014, 1.442695
      %v2066 = vpow.pop %v2065
      %v2067 = vmul.f32 %v2015, 1.442695
      %v2068 = vpow.pop %v2067
      %v2069 = vmul.f32 %v2016, 1.442695
      %v2070 = vpow.pop %v2069
      %v2071 = vmul.f32 %v2017, 1.442695
      %v2072 = vpow.pop %v2071
      %v2073 = vmul.f32 %v2018, 1.442695
      %v2074 = vpow.pop %v2073
      %v2075 = vmul.f32 %v2019, 1.442695
      %v2076 = vpow.pop %v2075
      %v2077 = vmul.f32 %v2020, 1.442695
      %v2078 = vpow.pop %v2077
      %v2079 = vmul.f32 %v2021, 1.442695
      %v2080 = vpow.pop %v2079
      %v2081 = vmul.f32 %v2022, 1.442695
      %v2082 = vpow.pop %v2081
      %v2083 = vmul.f32 %v2023, 1.442695
      %v2084 = vpow.pop %v2083
      %v2085 = vmul.f32 %v2024, 1.442695
      %v2086 = vpow.pop %v2085
      %v2087 = vmul.f32 %v2025, 1.442695
      %v2088 = vpow.pop %v2087
      %v2089 = vmul.f32 %v2026, 1.442695
      %v2090 = vpow.pop %v2089
      %v2091 = vadd.f32 %v2028, 1.0
      %v2092 = vadd.f32 %v2030, 1.0
      %v2093 = vadd.f32 %v2032, 1.0
      %v2094 = vadd.f32 %v2034, 1.0
      %v2095 = vadd.f32 %v2036, 1.0
      %v2096 = vadd.f32 %v2038, 1.0
      %v2097 = vadd.f32 %v2040, 1.0
      %v2098 = vadd.f32 %v2042, 1.0
      %v2099 = vadd.f32 %v2044, 1.0
      %v2100 = vadd.f32 %v2046, 1.0
      %v2101 = vadd.f32 %v2048, 1.0
      %v2102 = vadd.f32 %v2050, 1.0
      %v2103 = vadd.f32 %v2052, 1.0
      %v2104 = vadd.f32 %v2054, 1.0
      %v2105 = vadd.f32 %v2056, 1.0
      %v2106 = vadd.f32 %v2058, 1.0
      %v2107 = vadd.f32 %v2060, 1.0
      %v2108 = vadd.f32 %v2062, 1.0
      %v2109 = vadd.f32 %v2064, 1.0
      %v2110 = vadd.f32 %v2066, 1.0
      %v2111 = vadd.f32 %v2068, 1.0
      %v2112 = vadd.f32 %v2070, 1.0
      %v2113 = vadd.f32 %v2072, 1.0
      %v2114 = vadd.f32 %v2074, 1.0
      %v2115 = vadd.f32 %v2076, 1.0
      %v2116 = vadd.f32 %v2078, 1.0
      %v2117 = vadd.f32 %v2080, 1.0
      %v2118 = vadd.f32 %v2082, 1.0
      %v2119 = vadd.f32 %v2084, 1.0
      %v2120 = vadd.f32 %v2086, 1.0
      %v2121 = vadd.f32 %v2088, 1.0
      %v2122 = vadd.f32 %v2090, 1.0
      %v2123 = vrcp.pop %v2091
      %v2124 = vmul.f32 1.0, %v2123
      %v2125 = vrcp.pop %v2092
      %v2126 = vmul.f32 1.0, %v2125
      %v2127 = vrcp.pop %v2093
      %v2128 = vmul.f32 1.0, %v2127
      %v2129 = vrcp.pop %v2094
      %v2130 = vmul.f32 1.0, %v2129
      %v2131 = vrcp.pop %v2095
      %v2132 = vmul.f32 1.0, %v2131
      %v2133 = vrcp.pop %v2096
      %v2134 = vmul.f32 1.0, %v2133
      %v2135 = vrcp.pop %v2097
      %v2136 = vmul.f32 1.0, %v2135
      %v2137 = vrcp.pop %v2098
      %v2138 = vmul.f32 1.0, %v2137
      %v2139 = vrcp.pop %v2099
      %v2140 = vmul.f32 1.0, %v2139
      %v2141 = vrcp.pop %v2100
      %v2142 = vmul.f32 1.0, %v2141
      %v2143 = vrcp.pop %v2101
      %v2144 = vmul.f32 1.0, %v2143
      %v2145 = vrcp.pop %v2102
      %v2146 = vmul.f32 1.0, %v2145
      %v2147 = vrcp.pop %v2103
      %v2148 = vmul.f32 1.0, %v2147
      %v2149 = vrcp.pop %v2104
      %v2150 = vmul.f32 1.0, %v2149
      %v2151 = vrcp.pop %v2105
      %v2152 = vmul.f32 1.0, %v2151
      %v2153 = vrcp.pop %v2106
      %v2154 = vmul.f32 1.0, %v2153
      %v2155 = vrcp.pop %v2107
      %v2156 = vmul.f32 1.0, %v2155
      %v2157 = vrcp.pop %v2108
      %v2158 = vmul.f32 1.0, %v2157
      %v2159 = vrcp.pop %v2109
      %v2160 = vmul.f32 1.0, %v2159
      %v2161 = vrcp.pop %v2110
      %v2162 = vmul.f32 1.0, %v2161
      %v2163 = vrcp.pop %v2111
      %v2164 = vmul.f32 1.0, %v2163
      %v2165 = vrcp.pop %v2112
      %v2166 = vmul.f32 1.0, %v2165
      %v2167 = vrcp.pop %v2113
      %v2168 = vmul.f32 1.0, %v2167
      %v2169 = vrcp.pop %v2114
      %v2170 = vmul.f32 1.0, %v2169
      %v2171 = vrcp.pop %v2115
      %v2172 = vmul.f32 1.0, %v2171
      %v2173 = vrcp.pop %v2116
      %v2174 = vmul.f32 1.0, %v2173
      %v2175 = vrcp.pop %v2117
      %v2176 = vmul.f32 1.0, %v2175
      %v2177 = vrcp.pop %v2118
      %v2178 = vmul.f32 1.0, %v2177
      %v2179 = vrcp.pop %v2119
      %v2180 = vmul.f32 1.0, %v2179
      %v2181 = vrcp.pop %v2120
      %v2182 = vmul.f32 1.0, %v2181
      %v2183 = vrcp.pop %v2121
      %v2184 = vmul.f32 1.0, %v2183
      %v2185 = vrcp.pop %v2122
      %v2186 = vmul.f32 1.0, %v2185
      %v2187 = vadd.f32 %v1052, %v1550
      %v2188 = vadd.f32 %v1058, %v1556
      %v2189 = vadd.f32 %v1064, %v1562
      %v2190 = vadd.f32 %v1070, %v1568
      %v2191 = vadd.f32 %v1076, %v1574
      %v2192 = vadd.f32 %v1082, %v1580
      %v2193 = vadd.f32 %v1088, %v1586
      %v2194 = vadd.f32 %v1094, %v1592
      %v2195 = vadd.f32 %v1100, %v1598
      %v2196 = vadd.f32 %v1106, %v1604
      %v2197 = vadd.f32 %v1112, %v1610
      %v2198 = vadd.f32 %v1118, %v1616
      %v2199 = vadd.f32 %v1124, %v1622
      %v2200 = vadd.f32 %v1130, %v1628
      %v2201 = vadd.f32 %v1136, %v1634
      %v2202 = vadd.f32 %v1142, %v1640
      %v2203 = vadd.f32 %v1148, %v1646
      %v2204 = vadd.f32 %v1154, %v1652
      %v2205 = vadd.f32 %v1160, %v1658
      %v2206 = vadd.f32 %v1166, %v1664
      %v2207 = vadd.f32 %v1172, %v1670
      %v2208 = vadd.f32 %v1178, %v1676
      %v2209 = vadd.f32 %v1184, %v1682
      %v2210 = vadd.f32 %v1190, %v1688
      %v2211 = vadd.f32 %v1196, %v1694
      %v2212 = vadd.f32 %v1202, %v1700
      %v2213 = vadd.f32 %v1208, %v1706
      %v2214 = vadd.f32 %v1214, %v1712
      %v2215 = vadd.f32 %v1220, %v1718
      %v2216 = vadd.f32 %v1226, %v1724
      %v2217 = vadd.f32 %v1232, %v1730
      %v2218 = vadd.f32 %v1238, %v1736
      %v2219 = vxor.u32 %v2187, 2147483648
      %v2220 = vxor.u32 %v2188, 2147483648
      %v2221 = vxor.u32 %v2189, 2147483648
      %v2222 = vxor.u32 %v2190, 2147483648
      %v2223 = vxor.u32 %v2191, 2147483648
      %v2224 = vxor.u32 %v2192, 2147483648
      %v2225 = vxor.u32 %v2193, 2147483648
      %v2226 = vxor.u32 %v2194, 2147483648
      %v2227 = vxor.u32 %v2195, 2147483648
      %v2228 = vxor.u32 %v2196, 2147483648
      %v2229 = vxor.u32 %v2197, 2147483648
      %v2230 = vxor.u32 %v2198, 2147483648
      %v2231 = vxor.u32 %v2199, 2147483648
      %v2232 = vxor.u32 %v2200, 2147483648
      %v2233 = vxor.u32 %v2201, 2147483648
      %v2234 = vxor.u32 %v2202, 2147483648
      %v2235 = vxor.u32 %v2203, 2147483648
      %v2236 = vxor.u32 %v2204, 2147483648
      %v2237 = vxor.u32 %v2205, 2147483648
      %v2238 = vxor.u32 %v2206, 2147483648
      %v2239 = vxor.u32 %v2207, 2147483648
      %v2240 = vxor.u32 %v2208, 2147483648
      %v2241 = vxor.u32 %v2209, 2147483648
      %v2242 = vxor.u32 %v2210, 2147483648
      %v2243 = vxor.u32 %v2211, 2147483648
      %v2244 = vxor.u32 %v2212, 2147483648
      %v2245 = vxor.u32 %v2213, 2147483648
      %v2246 = vxor.u32 %v2214, 2147483648
      %v2247 = vxor.u32 %v2215, 2147483648
      %v2248 = vxor.u32 %v2216, 2147483648
      %v2249 = vxor.u32 %v2217, 2147483648
      %v2250 = vxor.u32 %v2218, 2147483648
      %v2251 = vmul.f32 %v2219, 1.442695
      %v2252 = vpow.pop %v2251
      %v2253 = vmul.f32 %v2220, 1.442695
      %v2254 = vpow.pop %v2253
      %v2255 = vmul.f32 %v2221, 1.442695
      %v2256 = vpow.pop %v2255
      %v2257 = vmul.f32 %v2222, 1.442695
      %v2258 = vpow.pop %v2257
      %v2259 = vmul.f32 %v2223, 1.442695
      %v2260 = vpow.pop %v2259
      %v2261 = vmul.f32 %v2224, 1.442695
      %v2262 = vpow.pop %v2261
      %v2263 = vmul.f32 %v2225, 1.442695
      %v2264 = vpow.pop %v2263
      %v2265 = vmul.f32 %v2226, 1.442695
      %v2266 = vpow.pop %v2265
      %v2267 = vmul.f32 %v2227, 1.442695
      %v2268 = vpow.pop %v2267
      %v2269 = vmul.f32 %v2228, 1.442695
      %v2270 = vpow.pop %v2269
      %v2271 = vmul.f32 %v2229, 1.442695
      %v2272 = vpow.pop %v2271
      %v2273 = vmul.f32 %v2230, 1.442695
      %v2274 = vpow.pop %v2273
      %v2275 = vmul.f32 %v2231, 1.442695
      %v2276 = vpow.pop %v2275
      %v2277 = vmul.f32 %v2232, 1.442695
      %v2278 = vpow.pop %v2277
      %v2279 = vmul.f32 %v2233, 1.442695
      %v2280 = vpow.pop %v2279
      %v2281 = vmul.f32 %v2234, 1.442695
      %v2282 = vpow.pop %v2281
      %v2283 = vmul.f32 %v2235, 1.442695
      %v2284 = vpow.pop %v2283
      %v2285 = vmul.f32 %v2236, 1.442695
      %v2286 = vpow.pop %v2285
      %v2287 = vmul.f32 %v2237, 1.442695
      %v2288 = vpow.pop %v2287
      %v2289 = vmul.f32 %v2238, 1.442695
      %v2290 = vpow.pop %v2289
      %v2291 = vmul.f32 %v2239, 1.442695
      %v2292 = vpow.pop %v2291
      %v2293 = vmul.f32 %v2240, 1.442695
      %v2294 = vpow.pop %v2293
      %v2295 = vmul.f32 %v2241, 1.442695
      %v2296 = vpow.pop %v2295
      %v2297 = vmul.f32 %v2242, 1.442695
      %v2298 = vpow.pop %v2297
      %v2299 = vmul.f32 %v2243, 1.442695
      %v2300 = vpow.pop %v2299
      %v2301 = vmul.f32 %v2244, 1.442695
      %v2302 = vpow.pop %v2301
      %v2303 = vmul.f32 %v2245, 1.442695
      %v2304 = vpow.pop %v2303
      %v2305 = vmul.f32 %v2246, 1.442695
      %v2306 = vpow.pop %v2305
      %v2307 = vmul.f32 %v2247, 1.442695
      %v2308 = vpow.pop %v2307
      %v2309 = vmul.f32 %v2248, 1.442695
      %v2310 = vpow.pop %v2309
      %v2311 = vmul.f32 %v2249, 1.442695
      %v2312 = vpow.pop %v2311
      %v2313 = vmul.f32 %v2250, 1.442695
      %v2314 = vpow.pop %v2313
      %v2315 = vadd.f32 %v2252, 1.0
      %v2316 = vadd.f32 %v2254, 1.0
      %v2317 = vadd.f32 %v2256, 1.0
      %v2318 = vadd.f32 %v2258, 1.0
      %v2319 = vadd.f32 %v2260, 1.0
      %v2320 = vadd.f32 %v2262, 1.0
      %v2321 = vadd.f32 %v2264, 1.0
      %v2322 = vadd.f32 %v2266, 1.0
      %v2323 = vadd.f32 %v2268, 1.0
      %v2324 = vadd.f32 %v2270, 1.0
      %v2325 = vadd.f32 %v2272, 1.0
      %v2326 = vadd.f32 %v2274, 1.0
      %v2327 = vadd.f32 %v2276, 1.0
      %v2328 = vadd.f32 %v2278, 1.0
      %v2329 = vadd.f32 %v2280, 1.0
      %v2330 = vadd.f32 %v2282, 1.0
      %v2331 = vadd.f32 %v2284, 1.0
      %v2332 = vadd.f32 %v2286, 1.0
      %v2333 = vadd.f32 %v2288, 1.0
      %v2334 = vadd.f32 %v2290, 1.0
      %v2335 = vadd.f32 %v2292, 1.0
      %v2336 = vadd.f32 %v2294, 1.0
      %v2337 = vadd.f32 %v2296, 1.0
      %v2338 = vadd.f32 %v2298, 1.0
      %v2339 = vadd.f32 %v2300, 1.0
      %v2340 = vadd.f32 %v2302, 1.0
      %v2341 = vadd.f32 %v2304, 1.0
      %v2342 = vadd.f32 %v2306, 1.0
      %v2343 = vadd.f32 %v2308, 1.0
      %v2344 = vadd.f32 %v2310, 1.0
      %v2345 = vadd.f32 %v2312, 1.0
      %v2346 = vadd.f32 %v2314, 1.0
      %v2347 = vrcp.pop %v2315
      %v2348 = vmul.f32 1.0, %v2347
      %v2349 = vrcp.pop %v2316
      %v2350 = vmul.f32 1.0, %v2349
      %v2351 = vrcp.pop %v2317
      %v2352 = vmul.f32 1.0, %v2351
      %v2353 = vrcp.pop %v2318
      %v2354 = vmul.f32 1.0, %v2353
      %v2355 = vrcp.pop %v2319
      %v2356 = vmul.f32 1.0, %v2355
      %v2357 = vrcp.pop %v2320
      %v2358 = vmul.f32 1.0, %v2357
      %v2359 = vrcp.pop %v2321
      %v2360 = vmul.f32 1.0, %v2359
      %v2361 = vrcp.pop %v2322
      %v2362 = vmul.f32 1.0, %v2361
      %v2363 = vrcp.pop %v2323
      %v2364 = vmul.f32 1.0, %v2363
      %v2365 = vrcp.pop %v2324
      %v2366 = vmul.f32 1.0, %v2365
      %v2367 = vrcp.pop %v2325
      %v2368 = vmul.f32 1.0, %v2367
      %v2369 = vrcp.pop %v2326
      %v2370 = vmul.f32 1.0, %v2369
      %v2371 = vrcp.pop %v2327
      %v2372 = vmul.f32 1.0, %v2371
      %v2373 = vrcp.pop %v2328
      %v2374 = vmul.f32 1.0, %v2373
      %v2375 = vrcp.pop %v2329
      %v2376 = vmul.f32 1.0, %v2375
      %v2377 = vrcp.pop %v2330
      %v2378 = vmul.f32 1.0, %v2377
      %v2379 = vrcp.pop %v2331
      %v2380 = vmul.f32 1.0, %v2379
      %v2381 = vrcp.pop %v2332
      %v2382 = vmul.f32 1.0, %v2381
      %v2383 = vrcp.pop %v2333
      %v2384 = vmul.f32 1.0, %v2383
      %v2385 = vrcp.pop %v2334
      %v2386 = vmul.f32 1.0, %v2385
      %v2387 = vrcp.pop %v2335
      %v2388 = vmul.f32 1.0, %v2387
      %v2389 = vrcp.pop %v2336
      %v2390 = vmul.f32 1.0, %v2389
      %v2391 = vrcp.pop %v2337
      %v2392 = vmul.f32 1.0, %v2391
      %v2393 = vrcp.pop %v2338
      %v2394 = vmul.f32 1.0, %v2393
      %v2395 = vrcp.pop %v2339
      %v2396 = vmul.f32 1.0, %v2395
      %v2397 = vrcp.pop %v2340
      %v2398 = vmul.f32 1.0, %v2397
      %v2399 = vrcp.pop %v2341
      %v2400 = vmul.f32 1.0, %v2399
      %v2401 = vrcp.pop %v2342
      %v2402 = vmul.f32 1.0, %v2401
      %v2403 = vrcp.pop %v2343
      %v2404 = vmul.f32 1.0, %v2403
      %v2405 = vrcp.pop %v2344
      %v2406 = vmul.f32 1.0, %v2405
      %v2407 = vrcp.pop %v2345
      %v2408 = vmul.f32 1.0, %v2407
      %v2409 = vrcp.pop %v2346
      %v2410 = vmul.f32 1.0, %v2409
      %v2411 = vmul.f32 %v2124, %v1805
      %v2412 = vmul.f32 %v2126, %v1810
      %v2413 = vmul.f32 %v2128, %v1815
      %v2414 = vmul.f32 %v2130, %v1820
      %v2415 = vmul.f32 %v2132, %v1825
      %v2416 = vmul.f32 %v2134, %v1830
      %v2417 = vmul.f32 %v2136, %v1835
      %v2418 = vmul.f32 %v2138, %v1840
      %v2419 = vmul.f32 %v2140, %v1845
      %v2420 = vmul.f32 %v2142, %v1850
      %v2421 = vmul.f32 %v2144, %v1855
      %v2422 = vmul.f32 %v2146, %v1860
      %v2423 = vmul.f32 %v2148, %v1865
      %v2424 = vmul.f32 %v2150, %v1870
      %v2425 = vmul.f32 %v2152, %v1875
      %v2426 = vmul.f32 %v2154, %v1880
      %v2427 = vmul.f32 %v2156, %v1885
      %v2428 = vmul.f32 %v2158, %v1890
      %v2429 = vmul.f32 %v2160, %v1895
      %v2430 = vmul.f32 %v2162, %v1900
      %v2431 = vmul.f32 %v2164, %v1905
      %v2432 = vmul.f32 %v2166, %v1910
      %v2433 = vmul.f32 %v2168, %v1915
      %v2434 = vmul.f32 %v2170, %v1920
      %v2435 = vmul.f32 %v2172, %v1925
      %v2436 = vmul.f32 %v2174, %v1930
      %v2437 = vmul.f32 %v2176, %v1935
      %v2438 = vmul.f32 %v2178, %v1940
      %v2439 = vmul.f32 %v2180, %v1945
      %v2440 = vmul.f32 %v2182, %v1950
      %v2441 = vmul.f32 %v2184, %v1955
      %v2442 = vmul.f32 %v2186, %v1960
      %v2443 = vadd.f32 %v1307, %v2411
      %v2444 = vadd.f32 %v1312, %v2412
      %v2445 = vadd.f32 %v1317, %v2413
      %v2446 = vadd.f32 %v1322, %v2414
      %v2447 = vadd.f32 %v1327, %v2415
      %v2448 = vadd.f32 %v1332, %v2416
      %v2449 = vadd.f32 %v1337, %v2417
      %v2450 = vadd.f32 %v1342, %v2418
      %v2451 = vadd.f32 %v1347, %v2419
      %v2452 = vadd.f32 %v1352, %v2420
      %v2453 = vadd.f32 %v1357, %v2421
      %v2454 = vadd.f32 %v1362, %v2422
      %v2455 = vadd.f32 %v1367, %v2423
      %v2456 = vadd.f32 %v1372, %v2424
      %v2457 = vadd.f32 %v1377, %v2425
      %v2458 = vadd.f32 %v1382, %v2426
      %v2459 = vadd.f32 %v1387, %v2427
      %v2460 = vadd.f32 %v1392, %v2428
      %v2461 = vadd.f32 %v1397, %v2429
      %v2462 = vadd.f32 %v1402, %v2430
      %v2463 = vadd.f32 %v1407, %v2431
      %v2464 = vadd.f32 %v1412, %v2432
      %v2465 = vadd.f32 %v1417, %v2433
      %v2466 = vadd.f32 %v1422, %v2434
      %v2467 = vadd.f32 %v1427, %v2435
      %v2468 = vadd.f32 %v1432, %v2436
      %v2469 = vadd.f32 %v1437, %v2437
      %v2470 = vadd.f32 %v1442, %v2438
      %v2471 = vadd.f32 %v1447, %v2439
      %v2472 = vadd.f32 %v1452, %v2440
      %v2473 = vadd.f32 %v1457, %v2441
      %v2474 = vadd.f32 %v1462, %v2442
      %v2475 = vtanh.pop %v2443
      %v2476 = vtanh.pop %v2444
      %v2477 = vtanh.pop %v2445
      %v2478 = vtanh.pop %v2446
      %v2479 = vtanh.pop %v2447
      %v2480 = vtanh.pop %v2448
      %v2481 = vtanh.pop %v2449
      %v2482 = vtanh.pop %v2450
      %v2483 = vtanh.pop %v2451
      %v2484 = vtanh.pop %v2452
      %v2485 = vtanh.pop %v2453
      %v2486 = vtanh.pop %v2454
      %v2487 = vtanh.pop %v2455
      %v2488 = vtanh.pop %v2456
      %v2489 = vtanh.pop %v2457
      %v2490 = vtanh.pop %v2458
      %v2491 = vtanh.pop %v2459
      %v2492 = vtanh.pop %v2460
      %v2493 = vtanh.pop %v2461
      %v2494 = vtanh.pop %v2462
      %v2495 = vtanh.pop %v2463
      %v2496 = vtanh.pop %v2464
      %v2497 = vtanh.pop %v2465
      %v2498 = vtanh.pop %v2466
      %v2499 = vtanh.pop %v2467
      %v2500 = vtanh.pop %v2468
      %v2501 = vtanh.pop %v2469
      %v2502 = vtanh.pop %v2470
      %v2503 = vtanh.pop %v2471
      %v2504 = vtanh.pop %v2472
      %v2505 = vtanh.pop %v2473
      %v2506 = vtanh.pop %v2474
      %v2507 = vsub.f32 1.0, %v2348
      %v2508 = vsub.f32 1.0, %v2350
      %v2509 = vsub.f32 1.0, %v2352
      %v2510 = vsub.f32 1.0, %v2354
      %v2511 = vsub.f32 1.0, %v2356
      %v2512 = vsub.f32 1.0, %v2358
      %v2513 = vsub.f32 1.0, %v2360
      %v2514 = vsub.f32 1.0, %v2362
      %v2515 = vsub.f32 1.0, %v2364
      %v2516 = vsub.f32 1.0, %v2366
      %v2517 = vsub.f32 1.0, %v2368
      %v2518 = vsub.f32 1.0, %v2370
      %v2519 = vsub.f32 1.0, %v2372
      %v2520 = vsub.f32 1.0, %v2374
      %v2521 = vsub.f32 1.0, %v2376
      %v2522 = vsub.f32 1.0, %v2378
      %v2523 = vsub.f32 1.0, %v2380
      %v2524 = vsub.f32 1.0, %v2382
      %v2525 = vsub.f32 1.0, %v2384
      %v2526 = vsub.f32 1.0, %v2386
      %v2527 = vsub.f32 1.0, %v2388
      %v2528 = vsub.f32 1.0, %v2390
      %v2529 = vsub.f32 1.0, %v2392
      %v2530 = vsub.f32 1.0, %v2394
      %v2531 = vsub.f32 1.0, %v2396
      %v2532 = vsub.f32 1.0, %v2398
      %v2533 = vsub.f32 1.0, %v2400
      %v2534 = vsub.f32 1.0, %v2402
      %v2535 = vsub.f32 1.0, %v2404
      %v2536 = vsub.f32 1.0, %v2406
      %v2537 = vsub.f32 1.0, %v2408
      %v2538 = vsub.f32 1.0, %v2410
      %v2539 = vmul.f32 %v2507, %v2475
      %v2540 = vmul.f32 %v2508, %v2476
      %v2541 = vmul.f32 %v2509, %v2477
      %v2542 = vmul.f32 %v2510, %v2478
      %v2543 = vmul.f32 %v2511, %v2479
      %v2544 = vmul.f32 %v2512, %v2480
      %v2545 = vmul.f32 %v2513, %v2481
      %v2546 = vmul.f32 %v2514, %v2482
      %v2547 = vmul.f32 %v2515, %v2483
      %v2548 = vmul.f32 %v2516, %v2484
      %v2549 = vmul.f32 %v2517, %v2485
      %v2550 = vmul.f32 %v2518, %v2486
      %v2551 = vmul.f32 %v2519, %v2487
      %v2552 = vmul.f32 %v2520, %v2488
      %v2553 = vmul.f32 %v2521, %v2489
      %v2554 = vmul.f32 %v2522, %v2490
      %v2555 = vmul.f32 %v2523, %v2491
      %v2556 = vmul.f32 %v2524, %v2492
      %v2557 = vmul.f32 %v2525, %v2493
      %v2558 = vmul.f32 %v2526, %v2494
      %v2559 = vmul.f32 %v2527, %v2495
      %v2560 = vmul.f32 %v2528, %v2496
      %v2561 = vmul.f32 %v2529, %v2497
      %v2562 = vmul.f32 %v2530, %v2498
      %v2563 = vmul.f32 %v2531, %v2499
      %v2564 = vmul.f32 %v2532, %v2500
      %v2565 = vmul.f32 %v2533, %v2501
      %v2566 = vmul.f32 %v2534, %v2502
      %v2567 = vmul.f32 %v2535, %v2503
      %v2568 = vmul.f32 %v2536, %v2504
      %v2569 = vmul.f32 %v2537, %v2505
      %v2570 = vmul.f32 %v2538, %v2506
      %v2571 = vmul.f32 %v2348, %v307
      %v2572 = vmul.f32 %v2350, %v308
      %v2573 = vmul.f32 %v2352, %v309
      %v2574 = vmul.f32 %v2354, %v310
      %v2575 = vmul.f32 %v2356, %v311
      %v2576 = vmul.f32 %v2358, %v312
      %v2577 = vmul.f32 %v2360, %v313
      %v2578 = vmul.f32 %v2362, %v314
      %v2579 = vmul.f32 %v2364, %v315
      %v2580 = vmul.f32 %v2366, %v316
      %v2581 = vmul.f32 %v2368, %v317
      %v2582 = vmul.f32 %v2370, %v318
      %v2583 = vmul.f32 %v2372, %v319
      %v2584 = vmul.f32 %v2374, %v320
      %v2585 = vmul.f32 %v2376, %v321
      %v2586 = vmul.f32 %v2378, %v322
      %v2587 = vmul.f32 %v2380, %v323
      %v2588 = vmul.f32 %v2382, %v324
      %v2589 = vmul.f32 %v2384, %v325
      %v2590 = vmul.f32 %v2386, %v326
      %v2591 = vmul.f32 %v2388, %v327
      %v2592 = vmul.f32 %v2390, %v328
      %v2593 = vmul.f32 %v2392, %v329
      %v2594 = vmul.f32 %v2394, %v330
      %v2595 = vmul.f32 %v2396, %v331
      %v2596 = vmul.f32 %v2398, %v332
      %v2597 = vmul.f32 %v2400, %v333
      %v2598 = vmul.f32 %v2402, %v334
      %v2599 = vmul.f32 %v2404, %v335
      %v2600 = vmul.f32 %v2406, %v336
      %v2601 = vmul.f32 %v2408, %v337
      %v2602 = vmul.f32 %v2410, %v338
      %v2603 = vadd.f32 %v2539, %v2571
      %v2604 = vadd.f32 %v2540, %v2572
      %v2605 = vadd.f32 %v2541, %v2573
      %v2606 = vadd.f32 %v2542, %v2574
      %v2607 = vadd.f32 %v2543, %v2575
      %v2608 = vadd.f32 %v2544, %v2576
      %v2609 = vadd.f32 %v2545, %v2577
      %v2610 = vadd.f32 %v2546, %v2578
      %v2611 = vadd.f32 %v2547, %v2579
      %v2612 = vadd.f32 %v2548, %v2580
      %v2613 = vadd.f32 %v2549, %v2581
      %v2614 = vadd.f32 %v2550, %v2582
      %v2615 = vadd.f32 %v2551, %v2583
      %v2616 = vadd.f32 %v2552, %v2584
      %v2617 = vadd.f32 %v2553, %v2585
      %v2618 = vadd.f32 %v2554, %v2586
      %v2619 = vadd.f32 %v2555, %v2587
      %v2620 = vadd.f32 %v2556, %v2588
      %v2621 = vadd.f32 %v2557, %v2589
      %v2622 = vadd.f32 %v2558, %v2590
      %v2623 = vadd.f32 %v2559, %v2591
      %v2624 = vadd.f32 %v2560, %v2592
      %v2625 = vadd.f32 %v2561, %v2593
      %v2626 = vadd.f32 %v2562, %v2594
      %v2627 = vadd.f32 %v2563, %v2595
      %v2628 = vadd.f32 %v2564, %v2596
      %v2629 = vadd.f32 %v2565, %v2597
      %v2630 = vadd.f32 %v2566, %v2598
      %v2631 = vadd.f32 %v2567, %v2599
      %v2632 = vadd.f32 %v2568, %v2600
      %v2633 = vadd.f32 %v2569, %v2601
      %v2634 = vadd.f32 %v2570, %v2602
      %s2635 = scalar_lea.vmem %s2, 128
      %v2636 = vld [vmem:[%s2635] sm:$0xff]
      %v2637 = vld [vmem:[%s2635 + $0x8] sm:$0xff]
      %v2638 = vld [vmem:[%s2635 + $0x10] sm:$0xff]
      %v2639 = vld [vmem:[%s2635 + $0x18] sm:$0xff]
      %v2640 = vld [vmem:[%s2635 + $0x20] sm:$0xff]
      %v2641 = vld [vmem:[%s2635 + $0x28] sm:$0xff]
      %v2642 = vld [vmem:[%s2635 + $0x30] sm:$0xff]
      %v2643 = vld [vmem:[%s2635 + $0x38] sm:$0xff]
      %v2644 = vld [vmem:[%s2635 + $0x40] sm:$0xff]
      %v2645 = vld [vmem:[%s2635 + $0x48] sm:$0xff]
      %v2646 = vld [vmem:[%s2635 + $0x50] sm:$0xff]
      %v2647 = vld [vmem:[%s2635 + $0x58] sm:$0xff]
      %v2648 = vld [vmem:[%s2635 + $0x60] sm:$0xff]
      %v2649 = vld [vmem:[%s2635 + $0x68] sm:$0xff]
      %v2650 = vld [vmem:[%s2635 + $0x70] sm:$0xff]
      %v2651 = vld [vmem:[%s2635 + $0x78] sm:$0xff]
      %2652 = vmatprep.subr.mxu0 0.0
      %2653 = vmatpush1.msra.mxu0 %v2651
      %2654 = vmatprep.subr.mxu0 0.0
      %2655 = vmatpush1.msra.mxu0 %v2650
      %2656 = vmatprep.subr.mxu0 0.0
      %2657 = vmatpush1.msra.mxu0 %v2649
      %2658 = vmatprep.subr.mxu0 0.0
      %2659 = vmatpush1.msra.mxu0 %v2648
      %2660 = vmatprep.subr.mxu0 0.0
      %2661 = vmatpush1.msra.mxu0 %v2647
      %2662 = vmatprep.subr.mxu0 0.0
      %2663 = vmatpush1.msra.mxu0 %v2646
      %2664 = vmatprep.subr.mxu0 0.0
      %2665 = vmatpush1.msra.mxu0 %v2645
      %2666 = vmatprep.subr.mxu0 0.0
      %2667 = vmatpush1.msra.mxu0 %v2644
      %2668 = vmatprep.subr.mxu0 0.0
      %2669 = vmatpush1.msra.mxu0 %v2643
      %2670 = vmatprep.subr.mxu0 0.0
      %2671 = vmatpush1.msra.mxu0 %v2642
      %2672 = vmatprep.subr.mxu0 0.0
      %2673 = vmatpush1.msra.mxu0 %v2641
      %2674 = vmatprep.subr.mxu0 0.0
      %2675 = vmatpush1.msra.mxu0 %v2640
      %2676 = vmatprep.subr.mxu0 0.0
      %2677 = vmatpush1.msra.mxu0 %v2639
      %2678 = vmatprep.subr.mxu0 0.0
      %2679 = vmatpush1.msra.mxu0 %v2638
      %2680 = vmatprep.subr.mxu0 0.0
      %2681 = vmatpush1.msra.mxu0 %v2637
      %2682 = vmatprep.subr.mxu0 0.0
      %2683 = vmatpush1.msra.mxu0 %v2636
      %2684 = vmatprep.subr.mxu0 0.0
      %2685 = vmatpush2.msra.mxu0 0.0
      %2686 = vmatprep.subr.mxu0 0.0
      %2687 = vmatpush2.msra.mxu0 0.0
      %2688 = vmatprep.subr.mxu0 0.0
      %2689 = vmatpush2.msra.mxu0 0.0
      %2690 = vmatprep.subr.mxu0 0.0
      %2691 = vmatpush2.msra.mxu0 0.0
      %2692 = vmatprep.subr.mxu0 0.0
      %2693 = vmatpush2.msra.mxu0 0.0
      %2694 = vmatprep.subr.mxu0 0.0
      %2695 = vmatpush2.msra.mxu0 0.0
      %2696 = vmatprep.subr.mxu0 0.0
      %2697 = vmatpush2.msra.mxu0 0.0
      %2698 = vmatprep.subr.mxu0 0.0
      %2699 = vmatpush2.msra.mxu0 0.0
      %2700 = vmatprep.subr.mxu0 0.0
      %2701 = vmatpush2.msra.mxu0 0.0
      %2702 = vmatprep.subr.mxu0 0.0
      %2703 = vmatpush2.msra.mxu0 0.0
      %2704 = vmatprep.subr.mxu0 0.0
      %2705 = vmatpush2.msra.mxu0 0.0
      %2706 = vmatprep.subr.mxu0 0.0
      %2707 = vmatpush2.msra.mxu0 0.0
      %2708 = vmatprep.subr.mxu0 0.0
      %2709 = vmatpush2.msra.mxu0 0.0
      %2710 = vmatprep.subr.mxu0 0.0
      %2711 = vmatpush2.msra.mxu0 0.0
      %2712 = vmatprep.subr.mxu0 0.0
      %2713 = vmatpush2.msra.mxu0 0.0
      %2714 = vmatprep.subr.mxu0 0.0
      %2715 = vmatpush2.msra.mxu0 0.0
      %2716 = vmatprep.mubr.f32.mxu0 0.0
      %2717 = vmatmul.mubr.f32.gmra.mxu0 %v2603
      %v2718 = vpop.f32.mrf.mxu0
      %v2719 = vadd.f32 0.0, %v2718
      %v2720 = vpop.f32.mrf.mxu0
      %2721 = vmatprep.mubr.f32.mxu0 0.0
      %2722 = vmatmul.mubr.f32.gmra.mxu0 %v2604
      %v2723 = vpop.f32.mrf.mxu0
      %v2724 = vadd.f32 0.0, %v2723
      %v2725 = vpop.f32.mrf.mxu0
      %2726 = vmatprep.mubr.f32.mxu0 0.0
      %2727 = vmatmul.mubr.f32.gmra.mxu0 %v2605
      %v2728 = vpop.f32.mrf.mxu0
      %v2729 = vadd.f32 0.0, %v2728
      %v2730 = vpop.f32.mrf.mxu0
      %2731 = vmatprep.mubr.f32.mxu0 0.0
      %2732 = vmatmul.mubr.f32.gmra.mxu0 %v2606
      %v2733 = vpop.f32.mrf.mxu0
      %v2734 = vadd.f32 0.0, %v2733
      %v2735 = vpop.f32.mrf.mxu0
      %2736 = vmatprep.mubr.f32.mxu0 0.0
      %2737 = vmatmul.mubr.f32.gmra.mxu0 %v2607
      %v2738 = vpop.f32.mrf.mxu0
      %v2739 = vadd.f32 0.0, %v2738
      %v2740 = vpop.f32.mrf.mxu0
      %2741 = vmatprep.mubr.f32.mxu0 0.0
      %2742 = vmatmul.mubr.f32.gmra.mxu0 %v2608
      %v2743 = vpop.f32.mrf.mxu0
      %v2744 = vadd.f32 0.0, %v2743
      %v2745 = vpop.f32.mrf.mxu0
      %2746 = vmatprep.mubr.f32.mxu0 0.0
      %2747 = vmatmul.mubr.f32.gmra.mxu0 %v2609
      %v2748 = vpop.f32.mrf.mxu0
      %v2749 = vadd.f32 0.0, %v2748
      %v2750 = vpop.f32.mrf.mxu0
      %2751 = vmatprep.mubr.f32.mxu0 0.0
      %2752 = vmatmul.mubr.f32.gmra.mxu0 %v2610
      %v2753 = vpop.f32.mrf.mxu0
      %v2754 = vadd.f32 0.0, %v2753
      %v2755 = vpop.f32.mrf.mxu0
      %2756 = vmatprep.mubr.f32.mxu0 0.0
      %2757 = vmatmul.mubr.f32.gmra.mxu0 %v2611
      %v2758 = vpop.f32.mrf.mxu0
      %v2759 = vadd.f32 0.0, %v2758
      %v2760 = vpop.f32.mrf.mxu0
      %2761 = vmatprep.mubr.f32.mxu0 0.0
      %2762 = vmatmul.mubr.f32.gmra.mxu0 %v2612
      %v2763 = vpop.f32.mrf.mxu0
      %v2764 = vadd.f32 0.0, %v2763
      %v2765 = vpop.f32.mrf.mxu0
      %2766 = vmatprep.mubr.f32.mxu0 0.0
      %2767 = vmatmul.mubr.f32.gmra.mxu0 %v2613
      %v2768 = vpop.f32.mrf.mxu0
      %v2769 = vadd.f32 0.0, %v2768
      %v2770 = vpop.f32.mrf.mxu0
      %2771 = vmatprep.mubr.f32.mxu0 0.0
      %2772 = vmatmul.mubr.f32.gmra.mxu0 %v2614
      %v2773 = vpop.f32.mrf.mxu0
      %v2774 = vadd.f32 0.0, %v2773
      %v2775 = vpop.f32.mrf.mxu0
      %2776 = vmatprep.mubr.f32.mxu0 0.0
      %2777 = vmatmul.mubr.f32.gmra.mxu0 %v2615
      %v2778 = vpop.f32.mrf.mxu0
      %v2779 = vadd.f32 0.0, %v2778
      %v2780 = vpop.f32.mrf.mxu0
      %2781 = vmatprep.mubr.f32.mxu0 0.0
      %2782 = vmatmul.mubr.f32.gmra.mxu0 %v2616
      %v2783 = vpop.f32.mrf.mxu0
      %v2784 = vadd.f32 0.0, %v2783
      %v2785 = vpop.f32.mrf.mxu0
      %2786 = vmatprep.mubr.f32.mxu0 0.0
      %2787 = vmatmul.mubr.f32.gmra.mxu0 %v2617
      %v2788 = vpop.f32.mrf.mxu0
      %v2789 = vadd.f32 0.0, %v2788
      %v2790 = vpop.f32.mrf.mxu0
      %2791 = vmatprep.mubr.f32.mxu0 0.0
      %2792 = vmatmul.mubr.f32.gmra.mxu0 %v2618
      %v2793 = vpop.f32.mrf.mxu0
      %v2794 = vadd.f32 0.0, %v2793
      %v2795 = vpop.f32.mrf.mxu0
      %2796 = vmatprep.mubr.f32.mxu0 0.0
      %2797 = vmatmul.mubr.f32.gmra.mxu0 %v2619
      %v2798 = vpop.f32.mrf.mxu0
      %v2799 = vadd.f32 0.0, %v2798
      %v2800 = vpop.f32.mrf.mxu0
      %2801 = vmatprep.mubr.f32.mxu0 0.0
      %2802 = vmatmul.mubr.f32.gmra.mxu0 %v2620
      %v2803 = vpop.f32.mrf.mxu0
      %v2804 = vadd.f32 0.0, %v2803
      %v2805 = vpop.f32.mrf.mxu0
      %2806 = vmatprep.mubr.f32.mxu0 0.0
      %2807 = vmatmul.mubr.f32.gmra.mxu0 %v2621
      %v2808 = vpop.f32.mrf.mxu0
      %v2809 = vadd.f32 0.0, %v2808
      %v2810 = vpop.f32.mrf.mxu0
      %2811 = vmatprep.mubr.f32.mxu0 0.0
      %2812 = vmatmul.mubr.f32.gmra.mxu0 %v2622
      %v2813 = vpop.f32.mrf.mxu0
      %v2814 = vadd.f32 0.0, %v2813
      %v2815 = vpop.f32.mrf.mxu0
      %2816 = vmatprep.mubr.f32.mxu0 0.0
      %2817 = vmatmul.mubr.f32.gmra.mxu0 %v2623
      %v2818 = vpop.f32.mrf.mxu0
      %v2819 = vadd.f32 0.0, %v2818
      %v2820 = vpop.f32.mrf.mxu0
      %2821 = vmatprep.mubr.f32.mxu0 0.0
      %2822 = vmatmul.mubr.f32.gmra.mxu0 %v2624
      %v2823 = vpop.f32.mrf.mxu0
      %v2824 = vadd.f32 0.0, %v2823
      %v2825 = vpop.f32.mrf.mxu0
      %2826 = vmatprep.mubr.f32.mxu0 0.0
      %2827 = vmatmul.mubr.f32.gmra.mxu0 %v2625
      %v2828 = vpop.f32.mrf.mxu0
      %v2829 = vadd.f32 0.0, %v2828
      %v2830 = vpop.f32.mrf.mxu0
      %2831 = vmatprep.mubr.f32.mxu0 0.0
      %2832 = vmatmul.mubr.f32.gmra.mxu0 %v2626
      %v2833 = vpop.f32.mrf.mxu0
      %v2834 = vadd.f32 0.0, %v2833
      %v2835 = vpop.f32.mrf.mxu0
      %2836 = vmatprep.mubr.f32.mxu0 0.0
      %2837 = vmatmul.mubr.f32.gmra.mxu0 %v2627
      %v2838 = vpop.f32.mrf.mxu0
      %v2839 = vadd.f32 0.0, %v2838
      %v2840 = vpop.f32.mrf.mxu0
      %2841 = vmatprep.mubr.f32.mxu0 0.0
      %2842 = vmatmul.mubr.f32.gmra.mxu0 %v2628
      %v2843 = vpop.f32.mrf.mxu0
      %v2844 = vadd.f32 0.0, %v2843
      %v2845 = vpop.f32.mrf.mxu0
      %2846 = vmatprep.mubr.f32.mxu0 0.0
      %2847 = vmatmul.mubr.f32.gmra.mxu0 %v2629
      %v2848 = vpop.f32.mrf.mxu0
      %v2849 = vadd.f32 0.0, %v2848
      %v2850 = vpop.f32.mrf.mxu0
      %2851 = vmatprep.mubr.f32.mxu0 0.0
      %2852 = vmatmul.mubr.f32.gmra.mxu0 %v2630
      %v2853 = vpop.f32.mrf.mxu0
      %v2854 = vadd.f32 0.0, %v2853
      %v2855 = vpop.f32.mrf.mxu0
      %2856 = vmatprep.mubr.f32.mxu0 0.0
      %2857 = vmatmul.mubr.f32.gmra.mxu0 %v2631
      %v2858 = vpop.f32.mrf.mxu0
      %v2859 = vadd.f32 0.0, %v2858
      %v2860 = vpop.f32.mrf.mxu0
      %2861 = vmatprep.mubr.f32.mxu0 0.0
      %2862 = vmatmul.mubr.f32.gmra.mxu0 %v2632
      %v2863 = vpop.f32.mrf.mxu0
      %v2864 = vadd.f32 0.0, %v2863
      %v2865 = vpop.f32.mrf.mxu0
      %2866 = vmatprep.mubr.f32.mxu0 0.0
      %2867 = vmatmul.mubr.f32.gmra.mxu0 %v2633
      %v2868 = vpop.f32.mrf.mxu0
      %v2869 = vadd.f32 0.0, %v2868
      %v2870 = vpop.f32.mrf.mxu0
      %2871 = vmatprep.mubr.f32.mxu0 0.0
      %2872 = vmatmul.mubr.f32.gmra.mxu0 %v2634
      %v2873 = vpop.f32.mrf.mxu0
      %v2874 = vadd.f32 0.0, %v2873
      %v2875 = vpop.f32.mrf.mxu0
      %2876 = vdwg.mxu0
      %2877 = vmatprep.subr.mxu0 0.0
      %2878 = vmatpush1.msra.mxu0 %v2794
      %2879 = vmatprep.subr.mxu0 0.0
      %2880 = vmatpush1.msra.mxu0 %v2789
      %2881 = vmatprep.subr.mxu0 0.0
      %2882 = vmatpush1.msra.mxu0 %v2784
      %2883 = vmatprep.subr.mxu0 0.0
      %2884 = vmatpush1.msra.mxu0 %v2779
      %2885 = vmatprep.subr.mxu0 0.0
      %2886 = vmatpush1.msra.mxu0 %v2774
      %2887 = vmatprep.subr.mxu0 0.0
      %2888 = vmatpush1.msra.mxu0 %v2769
      %2889 = vmatprep.subr.mxu0 0.0
      %2890 = vmatpush1.msra.mxu0 %v2764
      %2891 = vmatprep.subr.mxu0 0.0
      %2892 = vmatpush1.msra.mxu0 %v2759
      %2893 = vmatprep.subr.mxu0 0.0
      %2894 = vmatpush1.msra.mxu0 %v2754
      %2895 = vmatprep.subr.mxu0 0.0
      %2896 = vmatpush1.msra.mxu0 %v2749
      %2897 = vmatprep.subr.mxu0 0.0
      %2898 = vmatpush1.msra.mxu0 %v2744
      %2899 = vmatprep.subr.mxu0 0.0
      %2900 = vmatpush1.msra.mxu0 %v2739
      %2901 = vmatprep.subr.mxu0 0.0
      %2902 = vmatpush1.msra.mxu0 %v2734
      %2903 = vmatprep.subr.mxu0 0.0
      %2904 = vmatpush1.msra.mxu0 %v2729
      %2905 = vmatprep.subr.mxu0 0.0
      %2906 = vmatpush1.msra.mxu0 %v2724
      %2907 = vmatprep.subr.mxu0 0.0
      %2908 = vmatpush1.msra.mxu0 %v2719
      %2909 = vmatprep.subr.mxu0 0.0
      %2910 = vmatpush2.msra.mxu0 %v2874
      %2911 = vmatprep.subr.mxu0 0.0
      %2912 = vmatpush2.msra.mxu0 %v2869
      %2913 = vmatprep.subr.mxu0 0.0
      %2914 = vmatpush2.msra.mxu0 %v2864
      %2915 = vmatprep.subr.mxu0 0.0
      %2916 = vmatpush2.msra.mxu0 %v2859
      %2917 = vmatprep.subr.mxu0 0.0
      %2918 = vmatpush2.msra.mxu0 %v2854
      %2919 = vmatprep.subr.mxu0 0.0
      %2920 = vmatpush2.msra.mxu0 %v2849
      %2921 = vmatprep.subr.mxu0 0.0
      %2922 = vmatpush2.msra.mxu0 %v2844
      %2923 = vmatprep.subr.mxu0 0.0
      %2924 = vmatpush2.msra.mxu0 %v2839
      %2925 = vmatprep.subr.mxu0 0.0
      %2926 = vmatpush2.msra.mxu0 %v2834
      %2927 = vmatprep.subr.mxu0 0.0
      %2928 = vmatpush2.msra.mxu0 %v2829
      %2929 = vmatprep.subr.mxu0 0.0
      %2930 = vmatpush2.msra.mxu0 %v2824
      %2931 = vmatprep.subr.mxu0 0.0
      %2932 = vmatpush2.msra.mxu0 %v2819
      %2933 = vmatprep.subr.mxu0 0.0
      %2934 = vmatpush2.msra.mxu0 %v2814
      %2935 = vmatprep.subr.mxu0 0.0
      %2936 = vmatpush2.msra.mxu0 %v2809
      %2937 = vmatprep.subr.mxu0 0.0
      %2938 = vmatpush2.msra.mxu0 %v2804
      %2939 = vmatprep.subr.mxu0 0.0
      %2940 = vmatpush2.msra.mxu0 %v2799
      %2941 = vmatprep.mubr.f32.mxu0 %v340
      %2942 = vmatmul.mubr.f32.gmra.mxu0 %v339
      %v2943 = vpop.f32.mrf.mxu0
      %v2944 = vadd.f32 0.0, %v2943
      %v2945 = vpop.f32.mrf.mxu0
      %2946 = vmatprep.mubr.f32.mxu0 %v342
      %2947 = vmatmul.mubr.f32.gmra.mxu0 %v341
      %v2948 = vpop.f32.mrf.mxu0
      %v2949 = vadd.f32 0.0, %v2948
      %v2950 = vpop.f32.mrf.mxu0
      %2951 = vmatprep.mubr.f32.mxu0 %v344
      %2952 = vmatmul.mubr.f32.gmra.mxu0 %v343
      %v2953 = vpop.f32.mrf.mxu0
      %v2954 = vadd.f32 0.0, %v2953
      %v2955 = vpop.f32.mrf.mxu0
      %2956 = vmatprep.mubr.f32.mxu0 %v346
      %2957 = vmatmul.mubr.f32.gmra.mxu0 %v345
      %v2958 = vpop.f32.mrf.mxu0
      %v2959 = vadd.f32 0.0, %v2958
      %v2960 = vpop.f32.mrf.mxu0
      %2961 = vmatprep.mubr.f32.mxu0 %v348
      %2962 = vmatmul.mubr.f32.gmra.mxu0 %v347
      %v2963 = vpop.f32.mrf.mxu0
      %v2964 = vadd.f32 0.0, %v2963
      %v2965 = vpop.f32.mrf.mxu0
      %2966 = vmatprep.mubr.f32.mxu0 %v350
      %2967 = vmatmul.mubr.f32.gmra.mxu0 %v349
      %v2968 = vpop.f32.mrf.mxu0
      %v2969 = vadd.f32 0.0, %v2968
      %v2970 = vpop.f32.mrf.mxu0
      %2971 = vmatprep.mubr.f32.mxu0 %v352
      %2972 = vmatmul.mubr.f32.gmra.mxu0 %v351
      %v2973 = vpop.f32.mrf.mxu0
      %v2974 = vadd.f32 0.0, %v2973
      %v2975 = vpop.f32.mrf.mxu0
      %2976 = vmatprep.mubr.f32.mxu0 %v354
      %2977 = vmatmul.mubr.f32.gmra.mxu0 %v353
      %v2978 = vpop.f32.mrf.mxu0
      %v2979 = vadd.f32 0.0, %v2978
      %v2980 = vpop.f32.mrf.mxu0
      %2981 = vmatprep.mubr.f32.mxu0 %v356
      %2982 = vmatmul.mubr.f32.gmra.mxu0 %v355
      %v2983 = vpop.f32.mrf.mxu0
      %v2984 = vadd.f32 0.0, %v2983
      %v2985 = vpop.f32.mrf.mxu0
      %2986 = vmatprep.mubr.f32.mxu0 %v358
      %2987 = vmatmul.mubr.f32.gmra.mxu0 %v357
      %v2988 = vpop.f32.mrf.mxu0
      %v2989 = vadd.f32 0.0, %v2988
      %v2990 = vpop.f32.mrf.mxu0
      %2991 = vmatprep.mubr.f32.mxu0 %v360
      %2992 = vmatmul.mubr.f32.gmra.mxu0 %v359
      %v2993 = vpop.f32.mrf.mxu0
      %v2994 = vadd.f32 0.0, %v2993
      %v2995 = vpop.f32.mrf.mxu0
      %2996 = vmatprep.mubr.f32.mxu0 %v362
      %2997 = vmatmul.mubr.f32.gmra.mxu0 %v361
      %v2998 = vpop.f32.mrf.mxu0
      %v2999 = vadd.f32 0.0, %v2998
      %v3000 = vpop.f32.mrf.mxu0
      %3001 = vmatprep.mubr.f32.mxu0 %v364
      %3002 = vmatmul.mubr.f32.gmra.mxu0 %v363
      %v3003 = vpop.f32.mrf.mxu0
      %v3004 = vadd.f32 0.0, %v3003
      %v3005 = vpop.f32.mrf.mxu0
      %3006 = vmatprep.mubr.f32.mxu0 %v366
      %3007 = vmatmul.mubr.f32.gmra.mxu0 %v365
      %v3008 = vpop.f32.mrf.mxu0
      %v3009 = vadd.f32 0.0, %v3008
      %v3010 = vpop.f32.mrf.mxu0
      %3011 = vmatprep.mubr.f32.mxu0 %v368
      %3012 = vmatmul.mubr.f32.gmra.mxu0 %v367
      %v3013 = vpop.f32.mrf.mxu0
      %v3014 = vadd.f32 0.0, %v3013
      %v3015 = vpop.f32.mrf.mxu0
      %3016 = vmatprep.mubr.f32.mxu0 %v370
      %3017 = vmatmul.mubr.f32.gmra.mxu0 %v369
      %v3018 = vpop.f32.mrf.mxu0
      %v3019 = vadd.f32 0.0, %v3018
      %v3020 = vpop.f32.mrf.mxu0
      %3021 = vmatprep.mubr.f32.mxu0 %v372
      %3022 = vmatmul.mubr.f32.gmra.mxu0 %v371
      %v3023 = vpop.f32.mrf.mxu0
      %v3024 = vadd.f32 0.0, %v3023
      %v3025 = vpop.f32.mrf.mxu0
      %3026 = vmatprep.mubr.f32.mxu0 %v374
      %3027 = vmatmul.mubr.f32.gmra.mxu0 %v373
      %v3028 = vpop.f32.mrf.mxu0
      %v3029 = vadd.f32 0.0, %v3028
      %v3030 = vpop.f32.mrf.mxu0
      %3031 = vmatprep.mubr.f32.mxu0 %v376
      %3032 = vmatmul.mubr.f32.gmra.mxu0 %v375
      %v3033 = vpop.f32.mrf.mxu0
      %v3034 = vadd.f32 0.0, %v3033
      %v3035 = vpop.f32.mrf.mxu0
      %3036 = vmatprep.mubr.f32.mxu0 %v378
      %3037 = vmatmul.mubr.f32.gmra.mxu0 %v377
      %v3038 = vpop.f32.mrf.mxu0
      %v3039 = vadd.f32 0.0, %v3038
      %v3040 = vpop.f32.mrf.mxu0
      %3041 = vmatprep.mubr.f32.mxu0 %v380
      %3042 = vmatmul.mubr.f32.gmra.mxu0 %v379
      %v3043 = vpop.f32.mrf.mxu0
      %v3044 = vadd.f32 0.0, %v3043
      %v3045 = vpop.f32.mrf.mxu0
      %3046 = vmatprep.mubr.f32.mxu0 %v382
      %3047 = vmatmul.mubr.f32.gmra.mxu0 %v381
      %v3048 = vpop.f32.mrf.mxu0
      %v3049 = vadd.f32 0.0, %v3048
      %v3050 = vpop.f32.mrf.mxu0
      %3051 = vmatprep.mubr.f32.mxu0 %v384
      %3052 = vmatmul.mubr.f32.gmra.mxu0 %v383
      %v3053 = vpop.f32.mrf.mxu0
      %v3054 = vadd.f32 0.0, %v3053
      %v3055 = vpop.f32.mrf.mxu0
      %3056 = vmatprep.mubr.f32.mxu0 %v386
      %3057 = vmatmul.mubr.f32.gmra.mxu0 %v385
      %v3058 = vpop.f32.mrf.mxu0
      %v3059 = vadd.f32 0.0, %v3058
      %v3060 = vpop.f32.mrf.mxu0
      %3061 = vmatprep.mubr.f32.mxu0 %v388
      %3062 = vmatmul.mubr.f32.gmra.mxu0 %v387
      %v3063 = vpop.f32.mrf.mxu0
      %v3064 = vadd.f32 0.0, %v3063
      %v3065 = vpop.f32.mrf.mxu0
      %3066 = vmatprep.mubr.f32.mxu0 %v390
      %3067 = vmatmul.mubr.f32.gmra.mxu0 %v389
      %v3068 = vpop.f32.mrf.mxu0
      %v3069 = vadd.f32 0.0, %v3068
      %v3070 = vpop.f32.mrf.mxu0
      %3071 = vmatprep.mubr.f32.mxu0 %v392
      %3072 = vmatmul.mubr.f32.gmra.mxu0 %v391
      %v3073 = vpop.f32.mrf.mxu0
      %v3074 = vadd.f32 0.0, %v3073
      %v3075 = vpop.f32.mrf.mxu0
      %3076 = vmatprep.mubr.f32.mxu0 %v394
      %3077 = vmatmul.mubr.f32.gmra.mxu0 %v393
      %v3078 = vpop.f32.mrf.mxu0
      %v3079 = vadd.f32 0.0, %v3078
      %v3080 = vpop.f32.mrf.mxu0
      %3081 = vmatprep.mubr.f32.mxu0 %v396
      %3082 = vmatmul.mubr.f32.gmra.mxu0 %v395
      %v3083 = vpop.f32.mrf.mxu0
      %v3084 = vadd.f32 0.0, %v3083
      %v3085 = vpop.f32.mrf.mxu0
      %3086 = vmatprep.mubr.f32.mxu0 %v398
      %3087 = vmatmul.mubr.f32.gmra.mxu0 %v397
      %v3088 = vpop.f32.mrf.mxu0
      %v3089 = vadd.f32 0.0, %v3088
      %v3090 = vpop.f32.mrf.mxu0
      %3091 = vmatprep.mubr.f32.mxu0 %v400
      %3092 = vmatmul.mubr.f32.gmra.mxu0 %v399
      %v3093 = vpop.f32.mrf.mxu0
      %v3094 = vadd.f32 0.0, %v3093
      %v3095 = vpop.f32.mrf.mxu0
      %3096 = vmatprep.mubr.f32.mxu0 %v402
      %3097 = vmatmul.mubr.f32.gmra.mxu0 %v401
      %v3098 = vpop.f32.mrf.mxu0
      %v3099 = vadd.f32 0.0, %v3098
      %v3100 = vpop.f32.mrf.mxu0
      %3101 = vdwg.mxu0
      %3102 = vmatprep.subr.mxu0 %v449
      %3103 = vmatpush1.msra.mxu0 %v448
      %3104 = vmatprep.subr.mxu0 %v446
      %3105 = vmatpush1.msra.mxu0 %v445
      %3106 = vmatprep.subr.mxu0 %v443
      %3107 = vmatpush1.msra.mxu0 %v442
      %3108 = vmatprep.subr.mxu0 %v440
      %3109 = vmatpush1.msra.mxu0 %v439
      %3110 = vmatprep.subr.mxu0 %v437
      %3111 = vmatpush1.msra.mxu0 %v436
      %3112 = vmatprep.subr.mxu0 %v434
      %3113 = vmatpush1.msra.mxu0 %v433
      %3114 = vmatprep.subr.mxu0 %v431
      %3115 = vmatpush1.msra.mxu0 %v430
      %3116 = vmatprep.subr.mxu0 %v428
      %3117 = vmatpush1.msra.mxu0 %v427
      %3118 = vmatprep.subr.mxu0 %v425
      %3119 = vmatpush1.msra.mxu0 %v424
      %3120 = vmatprep.subr.mxu0 %v422
      %3121 = vmatpush1.msra.mxu0 %v421
      %3122 = vmatprep.subr.mxu0 %v419
      %3123 = vmatpush1.msra.mxu0 %v418
      %3124 = vmatprep.subr.mxu0 %v416
      %3125 = vmatpush1.msra.mxu0 %v415
      %3126 = vmatprep.subr.mxu0 %v413
      %3127 = vmatpush1.msra.mxu0 %v412
      %3128 = vmatprep.subr.mxu0 %v410
      %3129 = vmatpush1.msra.mxu0 %v409
      %3130 = vmatprep.subr.mxu0 %v407
      %3131 = vmatpush1.msra.mxu0 %v406
      %3132 = vmatprep.subr.mxu0 %v404
      %3133 = vmatpush1.msra.mxu0 %v403
      %3134 = vmatprep.subr.mxu0 0.0
      %3135 = vmatpush2.msra.mxu0 0.0
      %3136 = vmatprep.subr.mxu0 0.0
      %3137 = vmatpush2.msra.mxu0 0.0
      %3138 = vmatprep.subr.mxu0 0.0
      %3139 = vmatpush2.msra.mxu0 0.0
      %3140 = vmatprep.subr.mxu0 0.0
      %3141 = vmatpush2.msra.mxu0 0.0
      %3142 = vmatprep.subr.mxu0 0.0
      %3143 = vmatpush2.msra.mxu0 0.0
      %3144 = vmatprep.subr.mxu0 0.0
      %3145 = vmatpush2.msra.mxu0 0.0
      %3146 = vmatprep.subr.mxu0 0.0
      %3147 = vmatpush2.msra.mxu0 0.0
      %3148 = vmatprep.subr.mxu0 0.0
      %3149 = vmatpush2.msra.mxu0 0.0
      %3150 = vmatprep.subr.mxu0 0.0
      %3151 = vmatpush2.msra.mxu0 0.0
      %3152 = vmatprep.subr.mxu0 0.0
      %3153 = vmatpush2.msra.mxu0 0.0
      %3154 = vmatprep.subr.mxu0 0.0
      %3155 = vmatpush2.msra.mxu0 0.0
      %3156 = vmatprep.subr.mxu0 0.0
      %3157 = vmatpush2.msra.mxu0 0.0
      %3158 = vmatprep.subr.mxu0 0.0
      %3159 = vmatpush2.msra.mxu0 0.0
      %3160 = vmatprep.subr.mxu0 0.0
      %3161 = vmatpush2.msra.mxu0 0.0
      %3162 = vmatprep.subr.mxu0 0.0
      %3163 = vmatpush2.msra.mxu0 0.0
      %3164 = vmatprep.subr.mxu0 0.0
      %3165 = vmatpush2.msra.mxu0 0.0
      %3166 = vmatprep.mubr.f32.mxu0 0.0
      %3167 = vmatmul.mubr.f32.gmra.mxu0 %v2944
      %v3168 = vpop.f32.mrf.mxu0
      %v3169 = vadd.f32 %v971, %v3168
      %v3170 = vpop.f32.mrf.mxu0
      %v3171 = vadd.f32 %v975, %v3170
      %3172 = vmatprep.mubr.f32.mxu0 0.0
      %3173 = vmatmul.mubr.f32.gmra.mxu0 %v2949
      %v3174 = vpop.f32.mrf.mxu0
      %v3175 = vadd.f32 %v971, %v3174
      %v3176 = vpop.f32.mrf.mxu0
      %v3177 = vadd.f32 %v975, %v3176
      %3178 = vmatprep.mubr.f32.mxu0 0.0
      %3179 = vmatmul.mubr.f32.gmra.mxu0 %v2954
      %v3180 = vpop.f32.mrf.mxu0
      %v3181 = vadd.f32 %v971, %v3180
      %v3182 = vpop.f32.mrf.mxu0
      %v3183 = vadd.f32 %v975, %v3182
      %3184 = vmatprep.mubr.f32.mxu0 0.0
      %3185 = vmatmul.mubr.f32.gmra.mxu0 %v2959
      %v3186 = vpop.f32.mrf.mxu0
      %v3187 = vadd.f32 %v971, %v3186
      %v3188 = vpop.f32.mrf.mxu0
      %v3189 = vadd.f32 %v975, %v3188
      %3190 = vmatprep.mubr.f32.mxu0 0.0
      %3191 = vmatmul.mubr.f32.gmra.mxu0 %v2964
      %v3192 = vpop.f32.mrf.mxu0
      %v3193 = vadd.f32 %v971, %v3192
      %v3194 = vpop.f32.mrf.mxu0
      %v3195 = vadd.f32 %v975, %v3194
      %3196 = vmatprep.mubr.f32.mxu0 0.0
      %3197 = vmatmul.mubr.f32.gmra.mxu0 %v2969
      %v3198 = vpop.f32.mrf.mxu0
      %v3199 = vadd.f32 %v971, %v3198
      %v3200 = vpop.f32.mrf.mxu0
      %v3201 = vadd.f32 %v975, %v3200
      %3202 = vmatprep.mubr.f32.mxu0 0.0
      %3203 = vmatmul.mubr.f32.gmra.mxu0 %v2974
      %v3204 = vpop.f32.mrf.mxu0
      %v3205 = vadd.f32 %v971, %v3204
      %v3206 = vpop.f32.mrf.mxu0
      %v3207 = vadd.f32 %v975, %v3206
      %3208 = vmatprep.mubr.f32.mxu0 0.0
      %3209 = vmatmul.mubr.f32.gmra.mxu0 %v2979
      %v3210 = vpop.f32.mrf.mxu0
      %v3211 = vadd.f32 %v971, %v3210
      %v3212 = vpop.f32.mrf.mxu0
      %v3213 = vadd.f32 %v975, %v3212
      %3214 = vmatprep.mubr.f32.mxu0 0.0
      %3215 = vmatmul.mubr.f32.gmra.mxu0 %v2984
      %v3216 = vpop.f32.mrf.mxu0
      %v3217 = vadd.f32 %v971, %v3216
      %v3218 = vpop.f32.mrf.mxu0
      %v3219 = vadd.f32 %v975, %v3218
      %3220 = vmatprep.mubr.f32.mxu0 0.0
      %3221 = vmatmul.mubr.f32.gmra.mxu0 %v2989
      %v3222 = vpop.f32.mrf.mxu0
      %v3223 = vadd.f32 %v971, %v3222
      %v3224 = vpop.f32.mrf.mxu0
      %v3225 = vadd.f32 %v975, %v3224
      %3226 = vmatprep.mubr.f32.mxu0 0.0
      %3227 = vmatmul.mubr.f32.gmra.mxu0 %v2994
      %v3228 = vpop.f32.mrf.mxu0
      %v3229 = vadd.f32 %v971, %v3228
      %v3230 = vpop.f32.mrf.mxu0
      %v3231 = vadd.f32 %v975, %v3230
      %3232 = vmatprep.mubr.f32.mxu0 0.0
      %3233 = vmatmul.mubr.f32.gmra.mxu0 %v2999
      %v3234 = vpop.f32.mrf.mxu0
      %v3235 = vadd.f32 %v971, %v3234
      %v3236 = vpop.f32.mrf.mxu0
      %v3237 = vadd.f32 %v975, %v3236
      %3238 = vmatprep.mubr.f32.mxu0 0.0
      %3239 = vmatmul.mubr.f32.gmra.mxu0 %v3004
      %v3240 = vpop.f32.mrf.mxu0
      %v3241 = vadd.f32 %v971, %v3240
      %v3242 = vpop.f32.mrf.mxu0
      %v3243 = vadd.f32 %v975, %v3242
      %3244 = vmatprep.mubr.f32.mxu0 0.0
      %3245 = vmatmul.mubr.f32.gmra.mxu0 %v3009
      %v3246 = vpop.f32.mrf.mxu0
      %v3247 = vadd.f32 %v971, %v3246
      %v3248 = vpop.f32.mrf.mxu0
      %v3249 = vadd.f32 %v975, %v3248
      %3250 = vmatprep.mubr.f32.mxu0 0.0
      %3251 = vmatmul.mubr.f32.gmra.mxu0 %v3014
      %v3252 = vpop.f32.mrf.mxu0
      %v3253 = vadd.f32 %v971, %v3252
      %v3254 = vpop.f32.mrf.mxu0
      %v3255 = vadd.f32 %v975, %v3254
      %3256 = vmatprep.mubr.f32.mxu0 0.0
      %3257 = vmatmul.mubr.f32.gmra.mxu0 %v3019
      %v3258 = vpop.f32.mrf.mxu0
      %v3259 = vadd.f32 %v971, %v3258
      %v3260 = vpop.f32.mrf.mxu0
      %v3261 = vadd.f32 %v975, %v3260
      %3262 = vmatprep.mubr.f32.mxu0 0.0
      %3263 = vmatmul.mubr.f32.gmra.mxu0 %v3024
      %v3264 = vpop.f32.mrf.mxu0
      %v3265 = vadd.f32 %v971, %v3264
      %v3266 = vpop.f32.mrf.mxu0
      %v3267 = vadd.f32 %v975, %v3266
      %3268 = vmatprep.mubr.f32.mxu0 0.0
      %3269 = vmatmul.mubr.f32.gmra.mxu0 %v3029
      %v3270 = vpop.f32.mrf.mxu0
      %v3271 = vadd.f32 %v971, %v3270
      %v3272 = vpop.f32.mrf.mxu0
      %v3273 = vadd.f32 %v975, %v3272
      %3274 = vmatprep.mubr.f32.mxu0 0.0
      %3275 = vmatmul.mubr.f32.gmra.mxu0 %v3034
      %v3276 = vpop.f32.mrf.mxu0
      %v3277 = vadd.f32 %v971, %v3276
      %v3278 = vpop.f32.mrf.mxu0
      %v3279 = vadd.f32 %v975, %v3278
      %3280 = vmatprep.mubr.f32.mxu0 0.0
      %3281 = vmatmul.mubr.f32.gmra.mxu0 %v3039
      %v3282 = vpop.f32.mrf.mxu0
      %v3283 = vadd.f32 %v971, %v3282
      %v3284 = vpop.f32.mrf.mxu0
      %v3285 = vadd.f32 %v975, %v3284
      %3286 = vmatprep.mubr.f32.mxu0 0.0
      %3287 = vmatmul.mubr.f32.gmra.mxu0 %v3044
      %v3288 = vpop.f32.mrf.mxu0
      %v3289 = vadd.f32 %v971, %v3288
      %v3290 = vpop.f32.mrf.mxu0
      %v3291 = vadd.f32 %v975, %v3290
      %3292 = vmatprep.mubr.f32.mxu0 0.0
      %3293 = vmatmul.mubr.f32.gmra.mxu0 %v3049
      %v3294 = vpop.f32.mrf.mxu0
      %v3295 = vadd.f32 %v971, %v3294
      %v3296 = vpop.f32.mrf.mxu0
      %v3297 = vadd.f32 %v975, %v3296
      %3298 = vmatprep.mubr.f32.mxu0 0.0
      %3299 = vmatmul.mubr.f32.gmra.mxu0 %v3054
      %v3300 = vpop.f32.mrf.mxu0
      %v3301 = vadd.f32 %v971, %v3300
      %v3302 = vpop.f32.mrf.mxu0
      %v3303 = vadd.f32 %v975, %v3302
      %3304 = vmatprep.mubr.f32.mxu0 0.0
      %3305 = vmatmul.mubr.f32.gmra.mxu0 %v3059
      %v3306 = vpop.f32.mrf.mxu0
      %v3307 = vadd.f32 %v971, %v3306
      %v3308 = vpop.f32.mrf.mxu0
      %v3309 = vadd.f32 %v975, %v3308
      %3310 = vmatprep.mubr.f32.mxu0 0.0
      %3311 = vmatmul.mubr.f32.gmra.mxu0 %v3064
      %v3312 = vpop.f32.mrf.mxu0
      %v3313 = vadd.f32 %v971, %v3312
      %v3314 = vpop.f32.mrf.mxu0
      %v3315 = vadd.f32 %v975, %v3314
      %3316 = vmatprep.mubr.f32.mxu0 0.0
      %3317 = vmatmul.mubr.f32.gmra.mxu0 %v3069
      %v3318 = vpop.f32.mrf.mxu0
      %v3319 = vadd.f32 %v971, %v3318
      %v3320 = vpop.f32.mrf.mxu0
      %v3321 = vadd.f32 %v975, %v3320
      %3322 = vmatprep.mubr.f32.mxu0 0.0
      %3323 = vmatmul.mubr.f32.gmra.mxu0 %v3074
      %v3324 = vpop.f32.mrf.mxu0
      %v3325 = vadd.f32 %v971, %v3324
      %v3326 = vpop.f32.mrf.mxu0
      %v3327 = vadd.f32 %v975, %v3326
      %3328 = vmatprep.mubr.f32.mxu0 0.0
      %3329 = vmatmul.mubr.f32.gmra.mxu0 %v3079
      %v3330 = vpop.f32.mrf.mxu0
      %v3331 = vadd.f32 %v971, %v3330
      %v3332 = vpop.f32.mrf.mxu0
      %v3333 = vadd.f32 %v975, %v3332
      %3334 = vmatprep.mubr.f32.mxu0 0.0
      %3335 = vmatmul.mubr.f32.gmra.mxu0 %v3084
      %v3336 = vpop.f32.mrf.mxu0
      %v3337 = vadd.f32 %v971, %v3336
      %v3338 = vpop.f32.mrf.mxu0
      %v3339 = vadd.f32 %v975, %v3338
      %3340 = vmatprep.mubr.f32.mxu0 0.0
      %3341 = vmatmul.mubr.f32.gmra.mxu0 %v3089
      %v3342 = vpop.f32.mrf.mxu0
      %v3343 = vadd.f32 %v971, %v3342
      %v3344 = vpop.f32.mrf.mxu0
      %v3345 = vadd.f32 %v975, %v3344
      %3346 = vmatprep.mubr.f32.mxu0 0.0
      %3347 = vmatmul.mubr.f32.gmra.mxu0 %v3094
      %v3348 = vpop.f32.mrf.mxu0
      %v3349 = vadd.f32 %v971, %v3348
      %v3350 = vpop.f32.mrf.mxu0
      %v3351 = vadd.f32 %v975, %v3350
      %3352 = vmatprep.mubr.f32.mxu0 0.0
      %3353 = vmatmul.mubr.f32.gmra.mxu0 %v3099
      %v3354 = vpop.f32.mrf.mxu0
      %v3355 = vadd.f32 %v971, %v3354
      %v3356 = vpop.f32.mrf.mxu0
      %v3357 = vadd.f32 %v975, %v3356
      %3358 = vdwg.mxu0
      %3359 = vmatprep.subr.mxu0 0.0
      %3360 = vmatpush1.msra.mxu0 %v450
      %3361 = vmatprep.subr.mxu0 0.0
      %3362 = vmatpush1.msra.mxu0 %v447
      %3363 = vmatprep.subr.mxu0 0.0
      %3364 = vmatpush1.msra.mxu0 %v444
      %3365 = vmatprep.subr.mxu0 0.0
      %3366 = vmatpush1.msra.mxu0 %v441
      %3367 = vmatprep.subr.mxu0 0.0
      %3368 = vmatpush1.msra.mxu0 %v438
      %3369 = vmatprep.subr.mxu0 0.0
      %3370 = vmatpush1.msra.mxu0 %v435
      %3371 = vmatprep.subr.mxu0 0.0
      %3372 = vmatpush1.msra.mxu0 %v432
      %3373 = vmatprep.subr.mxu0 0.0
      %3374 = vmatpush1.msra.mxu0 %v429
      %3375 = vmatprep.subr.mxu0 0.0
      %3376 = vmatpush1.msra.mxu0 %v426
      %3377 = vmatprep.subr.mxu0 0.0
      %3378 = vmatpush1.msra.mxu0 %v423
      %3379 = vmatprep.subr.mxu0 0.0
      %3380 = vmatpush1.msra.mxu0 %v420
      %3381 = vmatprep.subr.mxu0 0.0
      %3382 = vmatpush1.msra.mxu0 %v417
      %3383 = vmatprep.subr.mxu0 0.0
      %3384 = vmatpush1.msra.mxu0 %v414
      %3385 = vmatprep.subr.mxu0 0.0
      %3386 = vmatpush1.msra.mxu0 %v411
      %3387 = vmatprep.subr.mxu0 0.0
      %3388 = vmatpush1.msra.mxu0 %v408
      %3389 = vmatprep.subr.mxu0 0.0
      %3390 = vmatpush1.msra.mxu0 %v405
      %3391 = vmatprep.subr.mxu0 0.0
      %3392 = vmatpush2.msra.mxu0 0.0
      %3393 = vmatprep.subr.mxu0 0.0
      %3394 = vmatpush2.msra.mxu0 0.0
      %3395 = vmatprep.subr.mxu0 0.0
      %3396 = vmatpush2.msra.mxu0 0.0
      %3397 = vmatprep.subr.mxu0 0.0
      %3398 = vmatpush2.msra.mxu0 0.0
      %3399 = vmatprep.subr.mxu0 0.0
      %3400 = vmatpush2.msra.mxu0 0.0
      %3401 = vmatprep.subr.mxu0 0.0
      %3402 = vmatpush2.msra.mxu0 0.0
      %3403 = vmatprep.subr.mxu0 0.0
      %3404 = vmatpush2.msra.mxu0 0.0
      %3405 = vmatprep.subr.mxu0 0.0
      %3406 = vmatpush2.msra.mxu0 0.0
      %3407 = vmatprep.subr.mxu0 0.0
      %3408 = vmatpush2.msra.mxu0 0.0
      %3409 = vmatprep.subr.mxu0 0.0
      %3410 = vmatpush2.msra.mxu0 0.0
      %3411 = vmatprep.subr.mxu0 0.0
      %3412 = vmatpush2.msra.mxu0 0.0
      %3413 = vmatprep.subr.mxu0 0.0
      %3414 = vmatpush2.msra.mxu0 0.0
      %3415 = vmatprep.subr.mxu0 0.0
      %3416 = vmatpush2.msra.mxu0 0.0
      %3417 = vmatprep.subr.mxu0 0.0
      %3418 = vmatpush2.msra.mxu0 0.0
      %3419 = vmatprep.subr.mxu0 0.0
      %3420 = vmatpush2.msra.mxu0 0.0
      %3421 = vmatprep.subr.mxu0 0.0
      %3422 = vmatpush2.msra.mxu0 0.0
      %3423 = vmatprep.mubr.f32.mxu0 0.0
      %3424 = vmatmul.mubr.f32.gmra.mxu0 %v2944
      %v3425 = vpop.f32.mrf.mxu0
      %v3426 = vadd.f32 %v979, %v3425
      %v3427 = vpop.f32.mrf.mxu0
      %3428 = vmatprep.mubr.f32.mxu0 0.0
      %3429 = vmatmul.mubr.f32.gmra.mxu0 %v2949
      %v3430 = vpop.f32.mrf.mxu0
      %v3431 = vadd.f32 %v979, %v3430
      %v3432 = vpop.f32.mrf.mxu0
      %3433 = vmatprep.mubr.f32.mxu0 0.0
      %3434 = vmatmul.mubr.f32.gmra.mxu0 %v2954
      %v3435 = vpop.f32.mrf.mxu0
      %v3436 = vadd.f32 %v979, %v3435
      %v3437 = vpop.f32.mrf.mxu0
      %3438 = vmatprep.mubr.f32.mxu0 0.0
      %3439 = vmatmul.mubr.f32.gmra.mxu0 %v2959
      %v3440 = vpop.f32.mrf.mxu0
      %v3441 = vadd.f32 %v979, %v3440
      %v3442 = vpop.f32.mrf.mxu0
      %3443 = vmatprep.mubr.f32.mxu0 0.0
      %3444 = vmatmul.mubr.f32.gmra.mxu0 %v2964
      %v3445 = vpop.f32.mrf.mxu0
      %v3446 = vadd.f32 %v979, %v3445
      %v3447 = vpop.f32.mrf.mxu0
      %3448 = vmatprep.mubr.f32.mxu0 0.0
      %3449 = vmatmul.mubr.f32.gmra.mxu0 %v2969
      %v3450 = vpop.f32.mrf.mxu0
      %v3451 = vadd.f32 %v979, %v3450
      %v3452 = vpop.f32.mrf.mxu0
      %3453 = vmatprep.mubr.f32.mxu0 0.0
      %3454 = vmatmul.mubr.f32.gmra.mxu0 %v2974
      %v3455 = vpop.f32.mrf.mxu0
      %v3456 = vadd.f32 %v979, %v3455
      %v3457 = vpop.f32.mrf.mxu0
      %3458 = vmatprep.mubr.f32.mxu0 0.0
      %3459 = vmatmul.mubr.f32.gmra.mxu0 %v2979
      %v3460 = vpop.f32.mrf.mxu0
      %v3461 = vadd.f32 %v979, %v3460
      %v3462 = vpop.f32.mrf.mxu0
      %3463 = vmatprep.mubr.f32.mxu0 0.0
      %3464 = vmatmul.mubr.f32.gmra.mxu0 %v2984
      %v3465 = vpop.f32.mrf.mxu0
      %v3466 = vadd.f32 %v979, %v3465
      %v3467 = vpop.f32.mrf.mxu0
      %3468 = vmatprep.mubr.f32.mxu0 0.0
      %3469 = vmatmul.mubr.f32.gmra.mxu0 %v2989
      %v3470 = vpop.f32.mrf.mxu0
      %v3471 = vadd.f32 %v979, %v3470
      %v3472 = vpop.f32.mrf.mxu0
      %3473 = vmatprep.mubr.f32.mxu0 0.0
      %3474 = vmatmul.mubr.f32.gmra.mxu0 %v2994
      %v3475 = vpop.f32.mrf.mxu0
      %v3476 = vadd.f32 %v979, %v3475
      %v3477 = vpop.f32.mrf.mxu0
      %3478 = vmatprep.mubr.f32.mxu0 0.0
      %3479 = vmatmul.mubr.f32.gmra.mxu0 %v2999
      %v3480 = vpop.f32.mrf.mxu0
      %v3481 = vadd.f32 %v979, %v3480
      %v3482 = vpop.f32.mrf.mxu0
      %3483 = vmatprep.mubr.f32.mxu0 0.0
      %3484 = vmatmul.mubr.f32.gmra.mxu0 %v3004
      %v3485 = vpop.f32.mrf.mxu0
      %v3486 = vadd.f32 %v979, %v3485
      %v3487 = vpop.f32.mrf.mxu0
      %3488 = vmatprep.mubr.f32.mxu0 0.0
      %3489 = vmatmul.mubr.f32.gmra.mxu0 %v3009
      %v3490 = vpop.f32.mrf.mxu0
      %v3491 = vadd.f32 %v979, %v3490
      %v3492 = vpop.f32.mrf.mxu0
      %3493 = vmatprep.mubr.f32.mxu0 0.0
      %3494 = vmatmul.mubr.f32.gmra.mxu0 %v3014
      %v3495 = vpop.f32.mrf.mxu0
      %v3496 = vadd.f32 %v979, %v3495
      %v3497 = vpop.f32.mrf.mxu0
      %3498 = vmatprep.mubr.f32.mxu0 0.0
      %3499 = vmatmul.mubr.f32.gmra.mxu0 %v3019
      %v3500 = vpop.f32.mrf.mxu0
      %v3501 = vadd.f32 %v979, %v3500
      %v3502 = vpop.f32.mrf.mxu0
      %3503 = vmatprep.mubr.f32.mxu0 0.0
      %3504 = vmatmul.mubr.f32.gmra.mxu0 %v3024
      %v3505 = vpop.f32.mrf.mxu0
      %v3506 = vadd.f32 %v979, %v3505
      %v3507 = vpop.f32.mrf.mxu0
      %3508 = vmatprep.mubr.f32.mxu0 0.0
      %3509 = vmatmul.mubr.f32.gmra.mxu0 %v3029
      %v3510 = vpop.f32.mrf.mxu0
      %v3511 = vadd.f32 %v979, %v3510
      %v3512 = vpop.f32.mrf.mxu0
      %3513 = vmatprep.mubr.f32.mxu0 0.0
      %3514 = vmatmul.mubr.f32.gmra.mxu0 %v3034
      %v3515 = vpop.f32.mrf.mxu0
      %v3516 = vadd.f32 %v979, %v3515
      %v3517 = vpop.f32.mrf.mxu0
      %3518 = vmatprep.mubr.f32.mxu0 0.0
      %3519 = vmatmul.mubr.f32.gmra.mxu0 %v3039
      %v3520 = vpop.f32.mrf.mxu0
      %v3521 = vadd.f32 %v979, %v3520
      %v3522 = vpop.f32.mrf.mxu0
      %3523 = vmatprep.mubr.f32.mxu0 0.0
      %3524 = vmatmul.mubr.f32.gmra.mxu0 %v3044
      %v3525 = vpop.f32.mrf.mxu0
      %v3526 = vadd.f32 %v979, %v3525
      %v3527 = vpop.f32.mrf.mxu0
      %3528 = vmatprep.mubr.f32.mxu0 0.0
      %3529 = vmatmul.mubr.f32.gmra.mxu0 %v3049
      %v3530 = vpop.f32.mrf.mxu0
      %v3531 = vadd.f32 %v979, %v3530
      %v3532 = vpop.f32.mrf.mxu0
      %3533 = vmatprep.mubr.f32.mxu0 0.0
      %3534 = vmatmul.mubr.f32.gmra.mxu0 %v3054
      %v3535 = vpop.f32.mrf.mxu0
      %v3536 = vadd.f32 %v979, %v3535
      %v3537 = vpop.f32.mrf.mxu0
      %3538 = vmatprep.mubr.f32.mxu0 0.0
      %3539 = vmatmul.mubr.f32.gmra.mxu0 %v3059
      %v3540 = vpop.f32.mrf.mxu0
      %v3541 = vadd.f32 %v979, %v3540
      %v3542 = vpop.f32.mrf.mxu0
      %3543 = vmatprep.mubr.f32.mxu0 0.0
      %3544 = vmatmul.mubr.f32.gmra.mxu0 %v3064
      %v3545 = vpop.f32.mrf.mxu0
      %v3546 = vadd.f32 %v979, %v3545
      %v3547 = vpop.f32.mrf.mxu0
      %3548 = vmatprep.mubr.f32.mxu0 0.0
      %3549 = vmatmul.mubr.f32.gmra.mxu0 %v3069
      %v3550 = vpop.f32.mrf.mxu0
      %v3551 = vadd.f32 %v979, %v3550
      %v3552 = vpop.f32.mrf.mxu0
      %3553 = vmatprep.mubr.f32.mxu0 0.0
      %3554 = vmatmul.mubr.f32.gmra.mxu0 %v3074
      %v3555 = vpop.f32.mrf.mxu0
      %v3556 = vadd.f32 %v979, %v3555
      %v3557 = vpop.f32.mrf.mxu0
      %3558 = vmatprep.mubr.f32.mxu0 0.0
      %3559 = vmatmul.mubr.f32.gmra.mxu0 %v3079
      %v3560 = vpop.f32.mrf.mxu0
      %v3561 = vadd.f32 %v979, %v3560
      %v3562 = vpop.f32.mrf.mxu0
      %3563 = vmatprep.mubr.f32.mxu0 0.0
      %3564 = vmatmul.mubr.f32.gmra.mxu0 %v3084
      %v3565 = vpop.f32.mrf.mxu0
      %v3566 = vadd.f32 %v979, %v3565
      %v3567 = vpop.f32.mrf.mxu0
      %3568 = vmatprep.mubr.f32.mxu0 0.0
      %3569 = vmatmul.mubr.f32.gmra.mxu0 %v3089
      %v3570 = vpop.f32.mrf.mxu0
      %v3571 = vadd.f32 %v979, %v3570
      %v3572 = vpop.f32.mrf.mxu0
      %3573 = vmatprep.mubr.f32.mxu0 0.0
      %3574 = vmatmul.mubr.f32.gmra.mxu0 %v3094
      %v3575 = vpop.f32.mrf.mxu0
      %v3576 = vadd.f32 %v979, %v3575
      %v3577 = vpop.f32.mrf.mxu0
      %3578 = vmatprep.mubr.f32.mxu0 0.0
      %3579 = vmatmul.mubr.f32.gmra.mxu0 %v3099
      %v3580 = vpop.f32.mrf.mxu0
      %v3581 = vadd.f32 %v979, %v3580
      %v3582 = vpop.f32.mrf.mxu0
      %3583 = vdwg.mxu0
      %3584 = vmatprep.subr.mxu0 %v497
      %3585 = vmatpush1.msra.mxu0 %v496
      %3586 = vmatprep.subr.mxu0 %v494
      %3587 = vmatpush1.msra.mxu0 %v493
      %3588 = vmatprep.subr.mxu0 %v491
      %3589 = vmatpush1.msra.mxu0 %v490
      %3590 = vmatprep.subr.mxu0 %v488
      %3591 = vmatpush1.msra.mxu0 %v487
      %3592 = vmatprep.subr.mxu0 %v485
      %3593 = vmatpush1.msra.mxu0 %v484
      %3594 = vmatprep.subr.mxu0 %v482
      %3595 = vmatpush1.msra.mxu0 %v481
      %3596 = vmatprep.subr.mxu0 %v479
      %3597 = vmatpush1.msra.mxu0 %v478
      %3598 = vmatprep.subr.mxu0 %v476
      %3599 = vmatpush1.msra.mxu0 %v475
      %3600 = vmatprep.subr.mxu0 %v473
      %3601 = vmatpush1.msra.mxu0 %v472
      %3602 = vmatprep.subr.mxu0 %v470
      %3603 = vmatpush1.msra.mxu0 %v469
      %3604 = vmatprep.subr.mxu0 %v467
      %3605 = vmatpush1.msra.mxu0 %v466
      %3606 = vmatprep.subr.mxu0 %v464
      %3607 = vmatpush1.msra.mxu0 %v463
      %3608 = vmatprep.subr.mxu0 %v461
      %3609 = vmatpush1.msra.mxu0 %v460
      %3610 = vmatprep.subr.mxu0 %v458
      %3611 = vmatpush1.msra.mxu0 %v457
      %3612 = vmatprep.subr.mxu0 %v455
      %3613 = vmatpush1.msra.mxu0 %v454
      %3614 = vmatprep.subr.mxu0 %v452
      %3615 = vmatpush1.msra.mxu0 %v451
      %3616 = vmatprep.subr.mxu0 0.0
      %3617 = vmatpush2.msra.mxu0 0.0
      %3618 = vmatprep.subr.mxu0 0.0
      %3619 = vmatpush2.msra.mxu0 0.0
      %3620 = vmatprep.subr.mxu0 0.0
      %3621 = vmatpush2.msra.mxu0 0.0
      %3622 = vmatprep.subr.mxu0 0.0
      %3623 = vmatpush2.msra.mxu0 0.0
      %3624 = vmatprep.subr.mxu0 0.0
      %3625 = vmatpush2.msra.mxu0 0.0
      %3626 = vmatprep.subr.mxu0 0.0
      %3627 = vmatpush2.msra.mxu0 0.0
      %3628 = vmatprep.subr.mxu0 0.0
      %3629 = vmatpush2.msra.mxu0 0.0
      %3630 = vmatprep.subr.mxu0 0.0
      %3631 = vmatpush2.msra.mxu0 0.0
      %3632 = vmatprep.subr.mxu0 0.0
      %3633 = vmatpush2.msra.mxu0 0.0
      %3634 = vmatprep.subr.mxu0 0.0
      %3635 = vmatpush2.msra.mxu0 0.0
      %3636 = vmatprep.subr.mxu0 0.0
      %3637 = vmatpush2.msra.mxu0 0.0
      %3638 = vmatprep.subr.mxu0 0.0
      %3639 = vmatpush2.msra.mxu0 0.0
      %3640 = vmatprep.subr.mxu0 0.0
      %3641 = vmatpush2.msra.mxu0 0.0
      %3642 = vmatprep.subr.mxu0 0.0
      %3643 = vmatpush2.msra.mxu0 0.0
      %3644 = vmatprep.subr.mxu0 0.0
      %3645 = vmatpush2.msra.mxu0 0.0
      %3646 = vmatprep.subr.mxu0 0.0
      %3647 = vmatpush2.msra.mxu0 0.0
      %3648 = vmatprep.mubr.f32.mxu0 0.0
      %3649 = vmatmul.mubr.f32.gmra.mxu0 %v2603
      %v3650 = vpop.f32.mrf.mxu0
      %v3651 = vadd.f32 %v1469, %v3650
      %v3652 = vpop.f32.mrf.mxu0
      %v3653 = vadd.f32 %v1473, %v3652
      %3654 = vmatprep.mubr.f32.mxu0 0.0
      %3655 = vmatmul.mubr.f32.gmra.mxu0 %v2604
      %v3656 = vpop.f32.mrf.mxu0
      %v3657 = vadd.f32 %v1469, %v3656
      %v3658 = vpop.f32.mrf.mxu0
      %v3659 = vadd.f32 %v1473, %v3658
      %3660 = vmatprep.mubr.f32.mxu0 0.0
      %3661 = vmatmul.mubr.f32.gmra.mxu0 %v2605
      %v3662 = vpop.f32.mrf.mxu0
      %v3663 = vadd.f32 %v1469, %v3662
      %v3664 = vpop.f32.mrf.mxu0
      %v3665 = vadd.f32 %v1473, %v3664
      %3666 = vmatprep.mubr.f32.mxu0 0.0
      %3667 = vmatmul.mubr.f32.gmra.mxu0 %v2606
      %v3668 = vpop.f32.mrf.mxu0
      %v3669 = vadd.f32 %v1469, %v3668
      %v3670 = vpop.f32.mrf.mxu0
      %v3671 = vadd.f32 %v1473, %v3670
      %3672 = vmatprep.mubr.f32.mxu0 0.0
      %3673 = vmatmul.mubr.f32.gmra.mxu0 %v2607
      %v3674 = vpop.f32.mrf.mxu0
      %v3675 = vadd.f32 %v1469, %v3674
      %v3676 = vpop.f32.mrf.mxu0
      %v3677 = vadd.f32 %v1473, %v3676
      %3678 = vmatprep.mubr.f32.mxu0 0.0
      %3679 = vmatmul.mubr.f32.gmra.mxu0 %v2608
      %v3680 = vpop.f32.mrf.mxu0
      %v3681 = vadd.f32 %v1469, %v3680
      %v3682 = vpop.f32.mrf.mxu0
      %v3683 = vadd.f32 %v1473, %v3682
      %3684 = vmatprep.mubr.f32.mxu0 0.0
      %3685 = vmatmul.mubr.f32.gmra.mxu0 %v2609
      %v3686 = vpop.f32.mrf.mxu0
      %v3687 = vadd.f32 %v1469, %v3686
      %v3688 = vpop.f32.mrf.mxu0
      %v3689 = vadd.f32 %v1473, %v3688
      %3690 = vmatprep.mubr.f32.mxu0 0.0
      %3691 = vmatmul.mubr.f32.gmra.mxu0 %v2610
      %v3692 = vpop.f32.mrf.mxu0
      %v3693 = vadd.f32 %v1469, %v3692
      %v3694 = vpop.f32.mrf.mxu0
      %v3695 = vadd.f32 %v1473, %v3694
      %3696 = vmatprep.mubr.f32.mxu0 0.0
      %3697 = vmatmul.mubr.f32.gmra.mxu0 %v2611
      %v3698 = vpop.f32.mrf.mxu0
      %v3699 = vadd.f32 %v1469, %v3698
      %v3700 = vpop.f32.mrf.mxu0
      %v3701 = vadd.f32 %v1473, %v3700
      %3702 = vmatprep.mubr.f32.mxu0 0.0
      %3703 = vmatmul.mubr.f32.gmra.mxu0 %v2612
      %v3704 = vpop.f32.mrf.mxu0
      %v3705 = vadd.f32 %v1469, %v3704
      %v3706 = vpop.f32.mrf.mxu0
      %v3707 = vadd.f32 %v1473, %v3706
      %3708 = vmatprep.mubr.f32.mxu0 0.0
      %3709 = vmatmul.mubr.f32.gmra.mxu0 %v2613
      %v3710 = vpop.f32.mrf.mxu0
      %v3711 = vadd.f32 %v1469, %v3710
      %v3712 = vpop.f32.mrf.mxu0
      %v3713 = vadd.f32 %v1473, %v3712
      %3714 = vmatprep.mubr.f32.mxu0 0.0
      %3715 = vmatmul.mubr.f32.gmra.mxu0 %v2614
      %v3716 = vpop.f32.mrf.mxu0
      %v3717 = vadd.f32 %v1469, %v3716
      %v3718 = vpop.f32.mrf.mxu0
      %v3719 = vadd.f32 %v1473, %v3718
      %3720 = vmatprep.mubr.f32.mxu0 0.0
      %3721 = vmatmul.mubr.f32.gmra.mxu0 %v2615
      %v3722 = vpop.f32.mrf.mxu0
      %v3723 = vadd.f32 %v1469, %v3722
      %v3724 = vpop.f32.mrf.mxu0
      %v3725 = vadd.f32 %v1473, %v3724
      %3726 = vmatprep.mubr.f32.mxu0 0.0
      %3727 = vmatmul.mubr.f32.gmra.mxu0 %v2616
      %v3728 = vpop.f32.mrf.mxu0
      %v3729 = vadd.f32 %v1469, %v3728
      %v3730 = vpop.f32.mrf.mxu0
      %v3731 = vadd.f32 %v1473, %v3730
      %3732 = vmatprep.mubr.f32.mxu0 0.0
      %3733 = vmatmul.mubr.f32.gmra.mxu0 %v2617
      %v3734 = vpop.f32.mrf.mxu0
      %v3735 = vadd.f32 %v1469, %v3734
      %v3736 = vpop.f32.mrf.mxu0
      %v3737 = vadd.f32 %v1473, %v3736
      %3738 = vmatprep.mubr.f32.mxu0 0.0
      %3739 = vmatmul.mubr.f32.gmra.mxu0 %v2618
      %v3740 = vpop.f32.mrf.mxu0
      %v3741 = vadd.f32 %v1469, %v3740
      %v3742 = vpop.f32.mrf.mxu0
      %v3743 = vadd.f32 %v1473, %v3742
      %3744 = vmatprep.mubr.f32.mxu0 0.0
      %3745 = vmatmul.mubr.f32.gmra.mxu0 %v2619
      %v3746 = vpop.f32.mrf.mxu0
      %v3747 = vadd.f32 %v1469, %v3746
      %v3748 = vpop.f32.mrf.mxu0
      %v3749 = vadd.f32 %v1473, %v3748
      %3750 = vmatprep.mubr.f32.mxu0 0.0
      %3751 = vmatmul.mubr.f32.gmra.mxu0 %v2620
      %v3752 = vpop.f32.mrf.mxu0
      %v3753 = vadd.f32 %v1469, %v3752
      %v3754 = vpop.f32.mrf.mxu0
      %v3755 = vadd.f32 %v1473, %v3754
      %3756 = vmatprep.mubr.f32.mxu0 0.0
      %3757 = vmatmul.mubr.f32.gmra.mxu0 %v2621
      %v3758 = vpop.f32.mrf.mxu0
      %v3759 = vadd.f32 %v1469, %v3758
      %v3760 = vpop.f32.mrf.mxu0
      %v3761 = vadd.f32 %v1473, %v3760
      %3762 = vmatprep.mubr.f32.mxu0 0.0
      %3763 = vmatmul.mubr.f32.gmra.mxu0 %v2622
      %v3764 = vpop.f32.mrf.mxu0
      %v3765 = vadd.f32 %v1469, %v3764
      %v3766 = vpop.f32.mrf.mxu0
      %v3767 = vadd.f32 %v1473, %v3766
      %3768 = vmatprep.mubr.f32.mxu0 0.0
      %3769 = vmatmul.mubr.f32.gmra.mxu0 %v2623
      %v3770 = vpop.f32.mrf.mxu0
      %v3771 = vadd.f32 %v1469, %v3770
      %v3772 = vpop.f32.mrf.mxu0
      %v3773 = vadd.f32 %v1473, %v3772
      %3774 = vmatprep.mubr.f32.mxu0 0.0
      %3775 = vmatmul.mubr.f32.gmra.mxu0 %v2624
      %v3776 = vpop.f32.mrf.mxu0
      %v3777 = vadd.f32 %v1469, %v3776
      %v3778 = vpop.f32.mrf.mxu0
      %v3779 = vadd.f32 %v1473, %v3778
      %3780 = vmatprep.mubr.f32.mxu0 0.0
      %3781 = vmatmul.mubr.f32.gmra.mxu0 %v2625
      %v3782 = vpop.f32.mrf.mxu0
      %v3783 = vadd.f32 %v1469, %v3782
      %v3784 = vpop.f32.mrf.mxu0
      %v3785 = vadd.f32 %v1473, %v3784
      %3786 = vmatprep.mubr.f32.mxu0 0.0
      %3787 = vmatmul.mubr.f32.gmra.mxu0 %v2626
      %v3788 = vpop.f32.mrf.mxu0
      %v3789 = vadd.f32 %v1469, %v3788
      %v3790 = vpop.f32.mrf.mxu0
      %v3791 = vadd.f32 %v1473, %v3790
      %3792 = vmatprep.mubr.f32.mxu0 0.0
      %3793 = vmatmul.mubr.f32.gmra.mxu0 %v2627
      %v3794 = vpop.f32.mrf.mxu0
      %v3795 = vadd.f32 %v1469, %v3794
      %v3796 = vpop.f32.mrf.mxu0
      %v3797 = vadd.f32 %v1473, %v3796
      %3798 = vmatprep.mubr.f32.mxu0 0.0
      %3799 = vmatmul.mubr.f32.gmra.mxu0 %v2628
      %v3800 = vpop.f32.mrf.mxu0
      %v3801 = vadd.f32 %v1469, %v3800
      %v3802 = vpop.f32.mrf.mxu0
      %v3803 = vadd.f32 %v1473, %v3802
      %3804 = vmatprep.mubr.f32.mxu0 0.0
      %3805 = vmatmul.mubr.f32.gmra.mxu0 %v2629
      %v3806 = vpop.f32.mrf.mxu0
      %v3807 = vadd.f32 %v1469, %v3806
      %v3808 = vpop.f32.mrf.mxu0
      %v3809 = vadd.f32 %v1473, %v3808
      %3810 = vmatprep.mubr.f32.mxu0 0.0
      %3811 = vmatmul.mubr.f32.gmra.mxu0 %v2630
      %v3812 = vpop.f32.mrf.mxu0
      %v3813 = vadd.f32 %v1469, %v3812
      %v3814 = vpop.f32.mrf.mxu0
      %v3815 = vadd.f32 %v1473, %v3814
      %3816 = vmatprep.mubr.f32.mxu0 0.0
      %3817 = vmatmul.mubr.f32.gmra.mxu0 %v2631
      %v3818 = vpop.f32.mrf.mxu0
      %v3819 = vadd.f32 %v1469, %v3818
      %v3820 = vpop.f32.mrf.mxu0
      %v3821 = vadd.f32 %v1473, %v3820
      %3822 = vmatprep.mubr.f32.mxu0 0.0
      %3823 = vmatmul.mubr.f32.gmra.mxu0 %v2632
      %v3824 = vpop.f32.mrf.mxu0
      %v3825 = vadd.f32 %v1469, %v3824
      %v3826 = vpop.f32.mrf.mxu0
      %v3827 = vadd.f32 %v1473, %v3826
      %3828 = vmatprep.mubr.f32.mxu0 0.0
      %3829 = vmatmul.mubr.f32.gmra.mxu0 %v2633
      %v3830 = vpop.f32.mrf.mxu0
      %v3831 = vadd.f32 %v1469, %v3830
      %v3832 = vpop.f32.mrf.mxu0
      %v3833 = vadd.f32 %v1473, %v3832
      %3834 = vmatprep.mubr.f32.mxu0 0.0
      %3835 = vmatmul.mubr.f32.gmra.mxu0 %v2634
      %v3836 = vpop.f32.mrf.mxu0
      %v3837 = vadd.f32 %v1469, %v3836
      %v3838 = vpop.f32.mrf.mxu0
      %v3839 = vadd.f32 %v1473, %v3838
      %3840 = vdwg.mxu0
      %3841 = vmatprep.subr.mxu0 0.0
      %3842 = vmatpush1.msra.mxu0 %v498
      %3843 = vmatprep.subr.mxu0 0.0
      %3844 = vmatpush1.msra.mxu0 %v495
      %3845 = vmatprep.subr.mxu0 0.0
      %3846 = vmatpush1.msra.mxu0 %v492
      %3847 = vmatprep.subr.mxu0 0.0
      %3848 = vmatpush1.msra.mxu0 %v489
      %3849 = vmatprep.subr.mxu0 0.0
      %3850 = vmatpush1.msra.mxu0 %v486
      %3851 = vmatprep.subr.mxu0 0.0
      %3852 = vmatpush1.msra.mxu0 %v483
      %3853 = vmatprep.subr.mxu0 0.0
      %3854 = vmatpush1.msra.mxu0 %v480
      %3855 = vmatprep.subr.mxu0 0.0
      %3856 = vmatpush1.msra.mxu0 %v477
      %3857 = vmatprep.subr.mxu0 0.0
      %3858 = vmatpush1.msra.mxu0 %v474
      %3859 = vmatprep.subr.mxu0 0.0
      %3860 = vmatpush1.msra.mxu0 %v471
      %3861 = vmatprep.subr.mxu0 0.0
      %3862 = vmatpush1.msra.mxu0 %v468
      %3863 = vmatprep.subr.mxu0 0.0
      %3864 = vmatpush1.msra.mxu0 %v465
      %3865 = vmatprep.subr.mxu0 0.0
      %3866 = vmatpush1.msra.mxu0 %v462
      %3867 = vmatprep.subr.mxu0 0.0
      %3868 = vmatpush1.msra.mxu0 %v459
      %3869 = vmatprep.subr.mxu0 0.0
      %3870 = vmatpush1.msra.mxu0 %v456
      %3871 = vmatprep.subr.mxu0 0.0
      %3872 = vmatpush1.msra.mxu0 %v453
      %3873 = vmatprep.subr.mxu0 0.0
      %3874 = vmatpush2.msra.mxu0 0.0
      %3875 = vmatprep.subr.mxu0 0.0
      %3876 = vmatpush2.msra.mxu0 0.0
      %3877 = vmatprep.subr.mxu0 0.0
      %3878 = vmatpush2.msra.mxu0 0.0
      %3879 = vmatprep.subr.mxu0 0.0
      %3880 = vmatpush2.msra.mxu0 0.0
      %3881 = vmatprep.subr.mxu0 0.0
      %3882 = vmatpush2.msra.mxu0 0.0
      %3883 = vmatprep.subr.mxu0 0.0
      %3884 = vmatpush2.msra.mxu0 0.0
      %3885 = vmatprep.subr.mxu0 0.0
      %3886 = vmatpush2.msra.mxu0 0.0
      %3887 = vmatprep.subr.mxu0 0.0
      %3888 = vmatpush2.msra.mxu0 0.0
      %3889 = vmatprep.subr.mxu0 0.0
      %3890 = vmatpush2.msra.mxu0 0.0
      %3891 = vmatprep.subr.mxu0 0.0
      %3892 = vmatpush2.msra.mxu0 0.0
      %3893 = vmatprep.subr.mxu0 0.0
      %3894 = vmatpush2.msra.mxu0 0.0
      %3895 = vmatprep.subr.mxu0 0.0
      %3896 = vmatpush2.msra.mxu0 0.0
      %3897 = vmatprep.subr.mxu0 0.0
      %3898 = vmatpush2.msra.mxu0 0.0
      %3899 = vmatprep.subr.mxu0 0.0
      %3900 = vmatpush2.msra.mxu0 0.0
      %3901 = vmatprep.subr.mxu0 0.0
      %3902 = vmatpush2.msra.mxu0 0.0
      %3903 = vmatprep.subr.mxu0 0.0
      %3904 = vmatpush2.msra.mxu0 0.0
      %3905 = vmatprep.mubr.f32.mxu0 0.0
      %3906 = vmatmul.mubr.f32.gmra.mxu0 %v2603
      %v3907 = vpop.f32.mrf.mxu0
      %v3908 = vadd.f32 %v1477, %v3907
      %v3909 = vpop.f32.mrf.mxu0
      %3910 = vmatprep.mubr.f32.mxu0 0.0
      %3911 = vmatmul.mubr.f32.gmra.mxu0 %v2604
      %v3912 = vpop.f32.mrf.mxu0
      %v3913 = vadd.f32 %v1477, %v3912
      %v3914 = vpop.f32.mrf.mxu0
      %3915 = vmatprep.mubr.f32.mxu0 0.0
      %3916 = vmatmul.mubr.f32.gmra.mxu0 %v2605
      %v3917 = vpop.f32.mrf.mxu0
      %v3918 = vadd.f32 %v1477, %v3917
      %v3919 = vpop.f32.mrf.mxu0
      %3920 = vmatprep.mubr.f32.mxu0 0.0
      %3921 = vmatmul.mubr.f32.gmra.mxu0 %v2606
      %v3922 = vpop.f32.mrf.mxu0
      %v3923 = vadd.f32 %v1477, %v3922
      %v3924 = vpop.f32.mrf.mxu0
      %3925 = vmatprep.mubr.f32.mxu0 0.0
      %3926 = vmatmul.mubr.f32.gmra.mxu0 %v2607
      %v3927 = vpop.f32.mrf.mxu0
      %v3928 = vadd.f32 %v1477, %v3927
      %v3929 = vpop.f32.mrf.mxu0
      %3930 = vmatprep.mubr.f32.mxu0 0.0
      %3931 = vmatmul.mubr.f32.gmra.mxu0 %v2608
      %v3932 = vpop.f32.mrf.mxu0
      %v3933 = vadd.f32 %v1477, %v3932
      %v3934 = vpop.f32.mrf.mxu0
      %3935 = vmatprep.mubr.f32.mxu0 0.0
      %3936 = vmatmul.mubr.f32.gmra.mxu0 %v2609
      %v3937 = vpop.f32.mrf.mxu0
      %v3938 = vadd.f32 %v1477, %v3937
      %v3939 = vpop.f32.mrf.mxu0
      %3940 = vmatprep.mubr.f32.mxu0 0.0
      %3941 = vmatmul.mubr.f32.gmra.mxu0 %v2610
      %v3942 = vpop.f32.mrf.mxu0
      %v3943 = vadd.f32 %v1477, %v3942
      %v3944 = vpop.f32.mrf.mxu0
      %3945 = vmatprep.mubr.f32.mxu0 0.0
      %3946 = vmatmul.mubr.f32.gmra.mxu0 %v2611
      %v3947 = vpop.f32.mrf.mxu0
      %v3948 = vadd.f32 %v1477, %v3947
      %v3949 = vpop.f32.mrf.mxu0
      %3950 = vmatprep.mubr.f32.mxu0 0.0
      %3951 = vmatmul.mubr.f32.gmra.mxu0 %v2612
      %v3952 = vpop.f32.mrf.mxu0
      %v3953 = vadd.f32 %v1477, %v3952
      %v3954 = vpop.f32.mrf.mxu0
      %3955 = vmatprep.mubr.f32.mxu0 0.0
      %3956 = vmatmul.mubr.f32.gmra.mxu0 %v2613
      %v3957 = vpop.f32.mrf.mxu0
      %v3958 = vadd.f32 %v1477, %v3957
      %v3959 = vpop.f32.mrf.mxu0
      %3960 = vmatprep.mubr.f32.mxu0 0.0
      %3961 = vmatmul.mubr.f32.gmra.mxu0 %v2614
      %v3962 = vpop.f32.mrf.mxu0
      %v3963 = vadd.f32 %v1477, %v3962
      %v3964 = vpop.f32.mrf.mxu0
      %3965 = vmatprep.mubr.f32.mxu0 0.0
      %3966 = vmatmul.mubr.f32.gmra.mxu0 %v2615
      %v3967 = vpop.f32.mrf.mxu0
      %v3968 = vadd.f32 %v1477, %v3967
      %v3969 = vpop.f32.mrf.mxu0
      %3970 = vmatprep.mubr.f32.mxu0 0.0
      %3971 = vmatmul.mubr.f32.gmra.mxu0 %v2616
      %v3972 = vpop.f32.mrf.mxu0
      %v3973 = vadd.f32 %v1477, %v3972
      %v3974 = vpop.f32.mrf.mxu0
      %3975 = vmatprep.mubr.f32.mxu0 0.0
      %3976 = vmatmul.mubr.f32.gmra.mxu0 %v2617
      %v3977 = vpop.f32.mrf.mxu0
      %v3978 = vadd.f32 %v1477, %v3977
      %v3979 = vpop.f32.mrf.mxu0
      %3980 = vmatprep.mubr.f32.mxu0 0.0
      %3981 = vmatmul.mubr.f32.gmra.mxu0 %v2618
      %v3982 = vpop.f32.mrf.mxu0
      %v3983 = vadd.f32 %v1477, %v3982
      %v3984 = vpop.f32.mrf.mxu0
      %3985 = vmatprep.mubr.f32.mxu0 0.0
      %3986 = vmatmul.mubr.f32.gmra.mxu0 %v2619
      %v3987 = vpop.f32.mrf.mxu0
      %v3988 = vadd.f32 %v1477, %v3987
      %v3989 = vpop.f32.mrf.mxu0
      %3990 = vmatprep.mubr.f32.mxu0 0.0
      %3991 = vmatmul.mubr.f32.gmra.mxu0 %v2620
      %v3992 = vpop.f32.mrf.mxu0
      %v3993 = vadd.f32 %v1477, %v3992
      %v3994 = vpop.f32.mrf.mxu0
      %3995 = vmatprep.mubr.f32.mxu0 0.0
      %3996 = vmatmul.mubr.f32.gmra.mxu0 %v2621
      %v3997 = vpop.f32.mrf.mxu0
      %v3998 = vadd.f32 %v1477, %v3997
      %v3999 = vpop.f32.mrf.mxu0
      %4000 = vmatprep.mubr.f32.mxu0 0.0
      %4001 = vmatmul.mubr.f32.gmra.mxu0 %v2622
      %v4002 = vpop.f32.mrf.mxu0
      %v4003 = vadd.f32 %v1477, %v4002
      %v4004 = vpop.f32.mrf.mxu0
      %4005 = vmatprep.mubr.f32.mxu0 0.0
      %4006 = vmatmul.mubr.f32.gmra.mxu0 %v2623
      %v4007 = vpop.f32.mrf.mxu0
      %v4008 = vadd.f32 %v1477, %v4007
      %v4009 = vpop.f32.mrf.mxu0
      %4010 = vmatprep.mubr.f32.mxu0 0.0
      %4011 = vmatmul.mubr.f32.gmra.mxu0 %v2624
      %v4012 = vpop.f32.mrf.mxu0
      %v4013 = vadd.f32 %v1477, %v4012
      %v4014 = vpop.f32.mrf.mxu0
      %4015 = vmatprep.mubr.f32.mxu0 0.0
      %4016 = vmatmul.mubr.f32.gmra.mxu0 %v2625
      %v4017 = vpop.f32.mrf.mxu0
      %v4018 = vadd.f32 %v1477, %v4017
      %v4019 = vpop.f32.mrf.mxu0
      %4020 = vmatprep.mubr.f32.mxu0 0.0
      %4021 = vmatmul.mubr.f32.gmra.mxu0 %v2626
      %v4022 = vpop.f32.mrf.mxu0
      %v4023 = vadd.f32 %v1477, %v4022
      %v4024 = vpop.f32.mrf.mxu0
      %4025 = vmatprep.mubr.f32.mxu0 0.0
      %4026 = vmatmul.mubr.f32.gmra.mxu0 %v2627
      %v4027 = vpop.f32.mrf.mxu0
      %v4028 = vadd.f32 %v1477, %v4027
      %v4029 = vpop.f32.mrf.mxu0
      %4030 = vmatprep.mubr.f32.mxu0 0.0
      %4031 = vmatmul.mubr.f32.gmra.mxu0 %v2628
      %v4032 = vpop.f32.mrf.mxu0
      %v4033 = vadd.f32 %v1477, %v4032
      %v4034 = vpop.f32.mrf.mxu0
      %4035 = vmatprep.mubr.f32.mxu0 0.0
      %4036 = vmatmul.mubr.f32.gmra.mxu0 %v2629
      %v4037 = vpop.f32.mrf.mxu0
      %v4038 = vadd.f32 %v1477, %v4037
      %v4039 = vpop.f32.mrf.mxu0
      %4040 = vmatprep.mubr.f32.mxu0 0.0
      %4041 = vmatmul.mubr.f32.gmra.mxu0 %v2630
      %v4042 = vpop.f32.mrf.mxu0
      %v4043 = vadd.f32 %v1477, %v4042
      %v4044 = vpop.f32.mrf.mxu0
      %4045 = vmatprep.mubr.f32.mxu0 0.0
      %4046 = vmatmul.mubr.f32.gmra.mxu0 %v2631
      %v4047 = vpop.f32.mrf.mxu0
      %v4048 = vadd.f32 %v1477, %v4047
      %v4049 = vpop.f32.mrf.mxu0
      %4050 = vmatprep.mubr.f32.mxu0 0.0
      %4051 = vmatmul.mubr.f32.gmra.mxu0 %v2632
      %v4052 = vpop.f32.mrf.mxu0
      %v4053 = vadd.f32 %v1477, %v4052
      %v4054 = vpop.f32.mrf.mxu0
      %4055 = vmatprep.mubr.f32.mxu0 0.0
      %4056 = vmatmul.mubr.f32.gmra.mxu0 %v2633
      %v4057 = vpop.f32.mrf.mxu0
      %v4058 = vadd.f32 %v1477, %v4057
      %v4059 = vpop.f32.mrf.mxu0
      %4060 = vmatprep.mubr.f32.mxu0 0.0
      %4061 = vmatmul.mubr.f32.gmra.mxu0 %v2634
      %v4062 = vpop.f32.mrf.mxu0
      %v4063 = vadd.f32 %v1477, %v4062
      %v4064 = vpop.f32.mrf.mxu0
      %4065 = vdwg.mxu0
      %v4066 = vadd.f32 %v3169, %v3651
      %v4067 = vadd.f32 %v3175, %v3657
      %v4068 = vadd.f32 %v3181, %v3663
      %v4069 = vadd.f32 %v3187, %v3669
      %v4070 = vadd.f32 %v3193, %v3675
      %v4071 = vadd.f32 %v3199, %v3681
      %v4072 = vadd.f32 %v3205, %v3687
      %v4073 = vadd.f32 %v3211, %v3693
      %v4074 = vadd.f32 %v3217, %v3699
      %v4075 = vadd.f32 %v3223, %v3705
      %v4076 = vadd.f32 %v3229, %v3711
      %v4077 = vadd.f32 %v3235, %v3717
      %v4078 = vadd.f32 %v3241, %v3723
      %v4079 = vadd.f32 %v3247, %v3729
      %v4080 = vadd.f32 %v3253, %v3735
      %v4081 = vadd.f32 %v3259, %v3741
      %v4082 = vadd.f32 %v3265, %v3747
      %v4083 = vadd.f32 %v3271, %v3753
      %v4084 = vadd.f32 %v3277, %v3759
      %v4085 = vadd.f32 %v3283, %v3765
      %v4086 = vadd.f32 %v3289, %v3771
      %v4087 = vadd.f32 %v3295, %v3777
      %v4088 = vadd.f32 %v3301, %v3783
      %v4089 = vadd.f32 %v3307, %v3789
      %v4090 = vadd.f32 %v3313, %v3795
      %v4091 = vadd.f32 %v3319, %v3801
      %v4092 = vadd.f32 %v3325, %v3807
      %v4093 = vadd.f32 %v3331, %v3813
      %v4094 = vadd.f32 %v3337, %v3819
      %v4095 = vadd.f32 %v3343, %v3825
      %v4096 = vadd.f32 %v3349, %v3831
      %v4097 = vadd.f32 %v3355, %v3837
      %v4098 = vxor.u32 %v4066, 2147483648
      %v4099 = vxor.u32 %v4067, 2147483648
      %v4100 = vxor.u32 %v4068, 2147483648
      %v4101 = vxor.u32 %v4069, 2147483648
      %v4102 = vxor.u32 %v4070, 2147483648
      %v4103 = vxor.u32 %v4071, 2147483648
      %v4104 = vxor.u32 %v4072, 2147483648
      %v4105 = vxor.u32 %v4073, 2147483648
      %v4106 = vxor.u32 %v4074, 2147483648
      %v4107 = vxor.u32 %v4075, 2147483648
      %v4108 = vxor.u32 %v4076, 2147483648
      %v4109 = vxor.u32 %v4077, 2147483648
      %v4110 = vxor.u32 %v4078, 2147483648
      %v4111 = vxor.u32 %v4079, 2147483648
      %v4112 = vxor.u32 %v4080, 2147483648
      %v4113 = vxor.u32 %v4081, 2147483648
      %v4114 = vxor.u32 %v4082, 2147483648
      %v4115 = vxor.u32 %v4083, 2147483648
      %v4116 = vxor.u32 %v4084, 2147483648
      %v4117 = vxor.u32 %v4085, 2147483648
      %v4118 = vxor.u32 %v4086, 2147483648
      %v4119 = vxor.u32 %v4087, 2147483648
      %v4120 = vxor.u32 %v4088, 2147483648
      %v4121 = vxor.u32 %v4089, 2147483648
      %v4122 = vxor.u32 %v4090, 2147483648
      %v4123 = vxor.u32 %v4091, 2147483648
      %v4124 = vxor.u32 %v4092, 2147483648
      %v4125 = vxor.u32 %v4093, 2147483648
      %v4126 = vxor.u32 %v4094, 2147483648
      %v4127 = vxor.u32 %v4095, 2147483648
      %v4128 = vxor.u32 %v4096, 2147483648
      %v4129 = vxor.u32 %v4097, 2147483648
      %v4130 = vmul.f32 %v4098, 1.442695
      %v4131 = vpow.pop %v4130
      %v4132 = vmul.f32 %v4099, 1.442695
      %v4133 = vpow.pop %v4132
      %v4134 = vmul.f32 %v4100, 1.442695
      %v4135 = vpow.pop %v4134
      %v4136 = vmul.f32 %v4101, 1.442695
      %v4137 = vpow.pop %v4136
      %v4138 = vmul.f32 %v4102, 1.442695
      %v4139 = vpow.pop %v4138
      %v4140 = vmul.f32 %v4103, 1.442695
      %v4141 = vpow.pop %v4140
      %v4142 = vmul.f32 %v4104, 1.442695
      %v4143 = vpow.pop %v4142
      %v4144 = vmul.f32 %v4105, 1.442695
      %v4145 = vpow.pop %v4144
      %v4146 = vmul.f32 %v4106, 1.442695
      %v4147 = vpow.pop %v4146
      %v4148 = vmul.f32 %v4107, 1.442695
      %v4149 = vpow.pop %v4148
      %v4150 = vmul.f32 %v4108, 1.442695
      %v4151 = vpow.pop %v4150
      %v4152 = vmul.f32 %v4109, 1.442695
      %v4153 = vpow.pop %v4152
      %v4154 = vmul.f32 %v4110, 1.442695
      %v4155 = vpow.pop %v4154
      %v4156 = vmul.f32 %v4111, 1.442695
      %v4157 = vpow.pop %v4156
      %v4158 = vmul.f32 %v4112, 1.442695
      %v4159 = vpow.pop %v4158
      %v4160 = vmul.f32 %v4113, 1.442695
      %v4161 = vpow.pop %v4160
      %v4162 = vmul.f32 %v4114, 1.442695
      %v4163 = vpow.pop %v4162
      %v4164 = vmul.f32 %v4115, 1.442695
      %v4165 = vpow.pop %v4164
      %v4166 = vmul.f32 %v4116, 1.442695
      %v4167 = vpow.pop %v4166
      %v4168 = vmul.f32 %v4117, 1.442695
      %v4169 = vpow.pop %v4168
      %v4170 = vmul.f32 %v4118, 1.442695
      %v4171 = vpow.pop %v4170
      %v4172 = vmul.f32 %v4119, 1.442695
      %v4173 = vpow.pop %v4172
      %v4174 = vmul.f32 %v4120, 1.442695
      %v4175 = vpow.pop %v4174
      %v4176 = vmul.f32 %v4121, 1.442695
      %v4177 = vpow.pop %v4176
      %v4178 = vmul.f32 %v4122, 1.442695
      %v4179 = vpow.pop %v4178
      %v4180 = vmul.f32 %v4123, 1.442695
      %v4181 = vpow.pop %v4180
      %v4182 = vmul.f32 %v4124, 1.442695
      %v4183 = vpow.pop %v4182
      %v4184 = vmul.f32 %v4125, 1.442695
      %v4185 = vpow.pop %v4184
      %v4186 = vmul.f32 %v4126, 1.442695
      %v4187 = vpow.pop %v4186
      %v4188 = vmul.f32 %v4127, 1.442695
      %v4189 = vpow.pop %v4188
      %v4190 = vmul.f32 %v4128, 1.442695
      %v4191 = vpow.pop %v4190
      %v4192 = vmul.f32 %v4129, 1.442695
      %v4193 = vpow.pop %v4192
      %v4194 = vadd.f32 %v4131, 1.0
      %v4195 = vadd.f32 %v4133, 1.0
      %v4196 = vadd.f32 %v4135, 1.0
      %v4197 = vadd.f32 %v4137, 1.0
      %v4198 = vadd.f32 %v4139, 1.0
      %v4199 = vadd.f32 %v4141, 1.0
      %v4200 = vadd.f32 %v4143, 1.0
      %v4201 = vadd.f32 %v4145, 1.0
      %v4202 = vadd.f32 %v4147, 1.0
      %v4203 = vadd.f32 %v4149, 1.0
      %v4204 = vadd.f32 %v4151, 1.0
      %v4205 = vadd.f32 %v4153, 1.0
      %v4206 = vadd.f32 %v4155, 1.0
      %v4207 = vadd.f32 %v4157, 1.0
      %v4208 = vadd.f32 %v4159, 1.0
      %v4209 = vadd.f32 %v4161, 1.0
      %v4210 = vadd.f32 %v4163, 1.0
      %v4211 = vadd.f32 %v4165, 1.0
      %v4212 = vadd.f32 %v4167, 1.0
      %v4213 = vadd.f32 %v4169, 1.0
      %v4214 = vadd.f32 %v4171, 1.0
      %v4215 = vadd.f32 %v4173, 1.0
      %v4216 = vadd.f32 %v4175, 1.0
      %v4217 = vadd.f32 %v4177, 1.0
      %v4218 = vadd.f32 %v4179, 1.0
      %v4219 = vadd.f32 %v4181, 1.0
      %v4220 = vadd.f32 %v4183, 1.0
      %v4221 = vadd.f32 %v4185, 1.0
      %v4222 = vadd.f32 %v4187, 1.0
      %v4223 = vadd.f32 %v4189, 1.0
      %v4224 = vadd.f32 %v4191, 1.0
      %v4225 = vadd.f32 %v4193, 1.0
      %v4226 = vrcp.pop %v4194
      %v4227 = vmul.f32 1.0, %v4226
      %v4228 = vrcp.pop %v4195
      %v4229 = vmul.f32 1.0, %v4228
      %v4230 = vrcp.pop %v4196
      %v4231 = vmul.f32 1.0, %v4230
      %v4232 = vrcp.pop %v4197
      %v4233 = vmul.f32 1.0, %v4232
      %v4234 = vrcp.pop %v4198
      %v4235 = vmul.f32 1.0, %v4234
      %v4236 = vrcp.pop %v4199
      %v4237 = vmul.f32 1.0, %v4236
      %v4238 = vrcp.pop %v4200
      %v4239 = vmul.f32 1.0, %v4238
      %v4240 = vrcp.pop %v4201
      %v4241 = vmul.f32 1.0, %v4240
      %v4242 = vrcp.pop %v4202
      %v4243 = vmul.f32 1.0, %v4242
      %v4244 = vrcp.pop %v4203
      %v4245 = vmul.f32 1.0, %v4244
      %v4246 = vrcp.pop %v4204
      %v4247 = vmul.f32 1.0, %v4246
      %v4248 = vrcp.pop %v4205
      %v4249 = vmul.f32 1.0, %v4248
      %v4250 = vrcp.pop %v4206
      %v4251 = vmul.f32 1.0, %v4250
      %v4252 = vrcp.pop %v4207
      %v4253 = vmul.f32 1.0, %v4252
      %v4254 = vrcp.pop %v4208
      %v4255 = vmul.f32 1.0, %v4254
      %v4256 = vrcp.pop %v4209
      %v4257 = vmul.f32 1.0, %v4256
      %v4258 = vrcp.pop %v4210
      %v4259 = vmul.f32 1.0, %v4258
      %v4260 = vrcp.pop %v4211
      %v4261 = vmul.f32 1.0, %v4260
      %v4262 = vrcp.pop %v4212
      %v4263 = vmul.f32 1.0, %v4262
      %v4264 = vrcp.pop %v4213
      %v4265 = vmul.f32 1.0, %v4264
      %v4266 = vrcp.pop %v4214
      %v4267 = vmul.f32 1.0, %v4266
      %v4268 = vrcp.pop %v4215
      %v4269 = vmul.f32 1.0, %v4268
      %v4270 = vrcp.pop %v4216
      %v4271 = vmul.f32 1.0, %v4270
      %v4272 = vrcp.pop %v4217
      %v4273 = vmul.f32 1.0, %v4272
      %v4274 = vrcp.pop %v4218
      %v4275 = vmul.f32 1.0, %v4274
      %v4276 = vrcp.pop %v4219
      %v4277 = vmul.f32 1.0, %v4276
      %v4278 = vrcp.pop %v4220
      %v4279 = vmul.f32 1.0, %v4278
      %v4280 = vrcp.pop %v4221
      %v4281 = vmul.f32 1.0, %v4280
      %v4282 = vrcp.pop %v4222
      %v4283 = vmul.f32 1.0, %v4282
      %v4284 = vrcp.pop %v4223
      %v4285 = vmul.f32 1.0, %v4284
      %v4286 = vrcp.pop %v4224
      %v4287 = vmul.f32 1.0, %v4286
      %v4288 = vrcp.pop %v4225
      %v4289 = vmul.f32 1.0, %v4288
      %v4290 = vadd.f32 %v3171, %v3653
      %v4291 = vadd.f32 %v3177, %v3659
      %v4292 = vadd.f32 %v3183, %v3665
      %v4293 = vadd.f32 %v3189, %v3671
      %v4294 = vadd.f32 %v3195, %v3677
      %v4295 = vadd.f32 %v3201, %v3683
      %v4296 = vadd.f32 %v3207, %v3689
      %v4297 = vadd.f32 %v3213, %v3695
      %v4298 = vadd.f32 %v3219, %v3701
      %v4299 = vadd.f32 %v3225, %v3707
      %v4300 = vadd.f32 %v3231, %v3713
      %v4301 = vadd.f32 %v3237, %v3719
      %v4302 = vadd.f32 %v3243, %v3725
      %v4303 = vadd.f32 %v3249, %v3731
      %v4304 = vadd.f32 %v3255, %v3737
      %v4305 = vadd.f32 %v3261, %v3743
      %v4306 = vadd.f32 %v3267, %v3749
      %v4307 = vadd.f32 %v3273, %v3755
      %v4308 = vadd.f32 %v3279, %v3761
      %v4309 = vadd.f32 %v3285, %v3767
      %v4310 = vadd.f32 %v3291, %v3773
      %v4311 = vadd.f32 %v3297, %v3779
      %v4312 = vadd.f32 %v3303, %v3785
      %v4313 = vadd.f32 %v3309, %v3791
      %v4314 = vadd.f32 %v3315, %v3797
      %v4315 = vadd.f32 %v3321, %v3803
      %v4316 = vadd.f32 %v3327, %v3809
      %v4317 = vadd.f32 %v3333, %v3815
      %v4318 = vadd.f32 %v3339, %v3821
      %v4319 = vadd.f32 %v3345, %v3827
      %v4320 = vadd.f32 %v3351, %v3833
      %v4321 = vadd.f32 %v3357, %v3839
      %v4322 = vxor.u32 %v4290, 2147483648
      %v4323 = vxor.u32 %v4291, 2147483648
      %v4324 = vxor.u32 %v4292, 2147483648
      %v4325 = vxor.u32 %v4293, 2147483648
      %v4326 = vxor.u32 %v4294, 2147483648
      %v4327 = vxor.u32 %v4295, 2147483648
      %v4328 = vxor.u32 %v4296, 2147483648
      %v4329 = vxor.u32 %v4297, 2147483648
      %v4330 = vxor.u32 %v4298, 2147483648
      %v4331 = vxor.u32 %v4299, 2147483648
      %v4332 = vxor.u32 %v4300, 2147483648
      %v4333 = vxor.u32 %v4301, 2147483648
      %v4334 = vxor.u32 %v4302, 2147483648
      %v4335 = vxor.u32 %v4303, 2147483648
      %v4336 = vxor.u32 %v4304, 2147483648
      %v4337 = vxor.u32 %v4305, 2147483648
      %v4338 = vxor.u32 %v4306, 2147483648
      %v4339 = vxor.u32 %v4307, 2147483648
      %v4340 = vxor.u32 %v4308, 2147483648
      %v4341 = vxor.u32 %v4309, 2147483648
      %v4342 = vxor.u32 %v4310, 2147483648
      %v4343 = vxor.u32 %v4311, 2147483648
      %v4344 = vxor.u32 %v4312, 2147483648
      %v4345 = vxor.u32 %v4313, 2147483648
      %v4346 = vxor.u32 %v4314, 2147483648
      %v4347 = vxor.u32 %v4315, 2147483648
      %v4348 = vxor.u32 %v4316, 2147483648
      %v4349 = vxor.u32 %v4317, 2147483648
      %v4350 = vxor.u32 %v4318, 2147483648
      %v4351 = vxor.u32 %v4319, 2147483648
      %v4352 = vxor.u32 %v4320, 2147483648
      %v4353 = vxor.u32 %v4321, 2147483648
      %v4354 = vmul.f32 %v4322, 1.442695
      %v4355 = vpow.pop %v4354
      %v4356 = vmul.f32 %v4323, 1.442695
      %v4357 = vpow.pop %v4356
      %v4358 = vmul.f32 %v4324, 1.442695
      %v4359 = vpow.pop %v4358
      %v4360 = vmul.f32 %v4325, 1.442695
      %v4361 = vpow.pop %v4360
      %v4362 = vmul.f32 %v4326, 1.442695
      %v4363 = vpow.pop %v4362
      %v4364 = vmul.f32 %v4327, 1.442695
      %v4365 = vpow.pop %v4364
      %v4366 = vmul.f32 %v4328, 1.442695
      %v4367 = vpow.pop %v4366
      %v4368 = vmul.f32 %v4329, 1.442695
      %v4369 = vpow.pop %v4368
      %v4370 = vmul.f32 %v4330, 1.442695
      %v4371 = vpow.pop %v4370
      %v4372 = vmul.f32 %v4331, 1.442695
      %v4373 = vpow.pop %v4372
      %v4374 = vmul.f32 %v4332, 1.442695
      %v4375 = vpow.pop %v4374
      %v4376 = vmul.f32 %v4333, 1.442695
      %v4377 = vpow.pop %v4376
      %v4378 = vmul.f32 %v4334, 1.442695
      %v4379 = vpow.pop %v4378
      %v4380 = vmul.f32 %v4335, 1.442695
      %v4381 = vpow.pop %v4380
      %v4382 = vmul.f32 %v4336, 1.442695
      %v4383 = vpow.pop %v4382
      %v4384 = vmul.f32 %v4337, 1.442695
      %v4385 = vpow.pop %v4384
      %v4386 = vmul.f32 %v4338, 1.442695
      %v4387 = vpow.pop %v4386
      %v4388 = vmul.f32 %v4339, 1.442695
      %v4389 = vpow.pop %v4388
      %v4390 = vmul.f32 %v4340, 1.442695
      %v4391 = vpow.pop %v4390
      %v4392 = vmul.f32 %v4341, 1.442695
      %v4393 = vpow.pop %v4392
      %v4394 = vmul.f32 %v4342, 1.442695
      %v4395 = vpow.pop %v4394
      %v4396 = vmul.f32 %v4343, 1.442695
      %v4397 = vpow.pop %v4396
      %v4398 = vmul.f32 %v4344, 1.442695
      %v4399 = vpow.pop %v4398
      %v4400 = vmul.f32 %v4345, 1.442695
      %v4401 = vpow.pop %v4400
      %v4402 = vmul.f32 %v4346, 1.442695
      %v4403 = vpow.pop %v4402
      %v4404 = vmul.f32 %v4347, 1.442695
      %v4405 = vpow.pop %v4404
      %v4406 = vmul.f32 %v4348, 1.442695
      %v4407 = vpow.pop %v4406
      %v4408 = vmul.f32 %v4349, 1.442695
      %v4409 = vpow.pop %v4408
      %v4410 = vmul.f32 %v4350, 1.442695
      %v4411 = vpow.pop %v4410
      %v4412 = vmul.f32 %v4351, 1.442695
      %v4413 = vpow.pop %v4412
      %v4414 = vmul.f32 %v4352, 1.442695
      %v4415 = vpow.pop %v4414
      %v4416 = vmul.f32 %v4353, 1.442695
      %v4417 = vpow.pop %v4416
      %v4418 = vadd.f32 %v4355, 1.0
      %v4419 = vadd.f32 %v4357, 1.0
      %v4420 = vadd.f32 %v4359, 1.0
      %v4421 = vadd.f32 %v4361, 1.0
      %v4422 = vadd.f32 %v4363, 1.0
      %v4423 = vadd.f32 %v4365, 1.0
      %v4424 = vadd.f32 %v4367, 1.0
      %v4425 = vadd.f32 %v4369, 1.0
      %v4426 = vadd.f32 %v4371, 1.0
      %v4427 = vadd.f32 %v4373, 1.0
      %v4428 = vadd.f32 %v4375, 1.0
      %v4429 = vadd.f32 %v4377, 1.0
      %v4430 = vadd.f32 %v4379, 1.0
      %v4431 = vadd.f32 %v4381, 1.0
      %v4432 = vadd.f32 %v4383, 1.0
      %v4433 = vadd.f32 %v4385, 1.0
      %v4434 = vadd.f32 %v4387, 1.0
      %v4435 = vadd.f32 %v4389, 1.0
      %v4436 = vadd.f32 %v4391, 1.0
      %v4437 = vadd.f32 %v4393, 1.0
      %v4438 = vadd.f32 %v4395, 1.0
      %v4439 = vadd.f32 %v4397, 1.0
      %v4440 = vadd.f32 %v4399, 1.0
      %v4441 = vadd.f32 %v4401, 1.0
      %v4442 = vadd.f32 %v4403, 1.0
      %v4443 = vadd.f32 %v4405, 1.0
      %v4444 = vadd.f32 %v4407, 1.0
      %v4445 = vadd.f32 %v4409, 1.0
      %v4446 = vadd.f32 %v4411, 1.0
      %v4447 = vadd.f32 %v4413, 1.0
      %v4448 = vadd.f32 %v4415, 1.0
      %v4449 = vadd.f32 %v4417, 1.0
      %v4450 = vrcp.pop %v4418
      %v4451 = vmul.f32 1.0, %v4450
      %v4452 = vrcp.pop %v4419
      %v4453 = vmul.f32 1.0, %v4452
      %v4454 = vrcp.pop %v4420
      %v4455 = vmul.f32 1.0, %v4454
      %v4456 = vrcp.pop %v4421
      %v4457 = vmul.f32 1.0, %v4456
      %v4458 = vrcp.pop %v4422
      %v4459 = vmul.f32 1.0, %v4458
      %v4460 = vrcp.pop %v4423
      %v4461 = vmul.f32 1.0, %v4460
      %v4462 = vrcp.pop %v4424
      %v4463 = vmul.f32 1.0, %v4462
      %v4464 = vrcp.pop %v4425
      %v4465 = vmul.f32 1.0, %v4464
      %v4466 = vrcp.pop %v4426
      %v4467 = vmul.f32 1.0, %v4466
      %v4468 = vrcp.pop %v4427
      %v4469 = vmul.f32 1.0, %v4468
      %v4470 = vrcp.pop %v4428
      %v4471 = vmul.f32 1.0, %v4470
      %v4472 = vrcp.pop %v4429
      %v4473 = vmul.f32 1.0, %v4472
      %v4474 = vrcp.pop %v4430
      %v4475 = vmul.f32 1.0, %v4474
      %v4476 = vrcp.pop %v4431
      %v4477 = vmul.f32 1.0, %v4476
      %v4478 = vrcp.pop %v4432
      %v4479 = vmul.f32 1.0, %v4478
      %v4480 = vrcp.pop %v4433
      %v4481 = vmul.f32 1.0, %v4480
      %v4482 = vrcp.pop %v4434
      %v4483 = vmul.f32 1.0, %v4482
      %v4484 = vrcp.pop %v4435
      %v4485 = vmul.f32 1.0, %v4484
      %v4486 = vrcp.pop %v4436
      %v4487 = vmul.f32 1.0, %v4486
      %v4488 = vrcp.pop %v4437
      %v4489 = vmul.f32 1.0, %v4488
      %v4490 = vrcp.pop %v4438
      %v4491 = vmul.f32 1.0, %v4490
      %v4492 = vrcp.pop %v4439
      %v4493 = vmul.f32 1.0, %v4492
      %v4494 = vrcp.pop %v4440
      %v4495 = vmul.f32 1.0, %v4494
      %v4496 = vrcp.pop %v4441
      %v4497 = vmul.f32 1.0, %v4496
      %v4498 = vrcp.pop %v4442
      %v4499 = vmul.f32 1.0, %v4498
      %v4500 = vrcp.pop %v4443
      %v4501 = vmul.f32 1.0, %v4500
      %v4502 = vrcp.pop %v4444
      %v4503 = vmul.f32 1.0, %v4502
      %v4504 = vrcp.pop %v4445
      %v4505 = vmul.f32 1.0, %v4504
      %v4506 = vrcp.pop %v4446
      %v4507 = vmul.f32 1.0, %v4506
      %v4508 = vrcp.pop %v4447
      %v4509 = vmul.f32 1.0, %v4508
      %v4510 = vrcp.pop %v4448
      %v4511 = vmul.f32 1.0, %v4510
      %v4512 = vrcp.pop %v4449
      %v4513 = vmul.f32 1.0, %v4512
      %v4514 = vmul.f32 %v4227, %v3908
      %v4515 = vmul.f32 %v4229, %v3913
      %v4516 = vmul.f32 %v4231, %v3918
      %v4517 = vmul.f32 %v4233, %v3923
      %v4518 = vmul.f32 %v4235, %v3928
      %v4519 = vmul.f32 %v4237, %v3933
      %v4520 = vmul.f32 %v4239, %v3938
      %v4521 = vmul.f32 %v4241, %v3943
      %v4522 = vmul.f32 %v4243, %v3948
      %v4523 = vmul.f32 %v4245, %v3953
      %v4524 = vmul.f32 %v4247, %v3958
      %v4525 = vmul.f32 %v4249, %v3963
      %v4526 = vmul.f32 %v4251, %v3968
      %v4527 = vmul.f32 %v4253, %v3973
      %v4528 = vmul.f32 %v4255, %v3978
      %v4529 = vmul.f32 %v4257, %v3983
      %v4530 = vmul.f32 %v4259, %v3988
      %v4531 = vmul.f32 %v4261, %v3993
      %v4532 = vmul.f32 %v4263, %v3998
      %v4533 = vmul.f32 %v4265, %v4003
      %v4534 = vmul.f32 %v4267, %v4008
      %v4535 = vmul.f32 %v4269, %v4013
      %v4536 = vmul.f32 %v4271, %v4018
      %v4537 = vmul.f32 %v4273, %v4023
      %v4538 = vmul.f32 %v4275, %v4028
      %v4539 = vmul.f32 %v4277, %v4033
      %v4540 = vmul.f32 %v4279, %v4038
      %v4541 = vmul.f32 %v4281, %v4043
      %v4542 = vmul.f32 %v4283, %v4048
      %v4543 = vmul.f32 %v4285, %v4053
      %v4544 = vmul.f32 %v4287, %v4058
      %v4545 = vmul.f32 %v4289, %v4063
      %v4546 = vadd.f32 %v3426, %v4514
      %v4547 = vadd.f32 %v3431, %v4515
      %v4548 = vadd.f32 %v3436, %v4516
      %v4549 = vadd.f32 %v3441, %v4517
      %v4550 = vadd.f32 %v3446, %v4518
      %v4551 = vadd.f32 %v3451, %v4519
      %v4552 = vadd.f32 %v3456, %v4520
      %v4553 = vadd.f32 %v3461, %v4521
      %v4554 = vadd.f32 %v3466, %v4522
      %v4555 = vadd.f32 %v3471, %v4523
      %v4556 = vadd.f32 %v3476, %v4524
      %v4557 = vadd.f32 %v3481, %v4525
      %v4558 = vadd.f32 %v3486, %v4526
      %v4559 = vadd.f32 %v3491, %v4527
      %v4560 = vadd.f32 %v3496, %v4528
      %v4561 = vadd.f32 %v3501, %v4529
      %v4562 = vadd.f32 %v3506, %v4530
      %v4563 = vadd.f32 %v3511, %v4531
      %v4564 = vadd.f32 %v3516, %v4532
      %v4565 = vadd.f32 %v3521, %v4533
      %v4566 = vadd.f32 %v3526, %v4534
      %v4567 = vadd.f32 %v3531, %v4535
      %v4568 = vadd.f32 %v3536, %v4536
      %v4569 = vadd.f32 %v3541, %v4537
      %v4570 = vadd.f32 %v3546, %v4538
      %v4571 = vadd.f32 %v3551, %v4539
      %v4572 = vadd.f32 %v3556, %v4540
      %v4573 = vadd.f32 %v3561, %v4541
      %v4574 = vadd.f32 %v3566, %v4542
      %v4575 = vadd.f32 %v3571, %v4543
      %v4576 = vadd.f32 %v3576, %v4544
      %v4577 = vadd.f32 %v3581, %v4545
      %v4578 = vtanh.pop %v4546
      %v4579 = vtanh.pop %v4547
      %v4580 = vtanh.pop %v4548
      %v4581 = vtanh.pop %v4549
      %v4582 = vtanh.pop %v4550
      %v4583 = vtanh.pop %v4551
      %v4584 = vtanh.pop %v4552
      %v4585 = vtanh.pop %v4553
      %v4586 = vtanh.pop %v4554
      %v4587 = vtanh.pop %v4555
      %v4588 = vtanh.pop %v4556
      %v4589 = vtanh.pop %v4557
      %v4590 = vtanh.pop %v4558
      %v4591 = vtanh.pop %v4559
      %v4592 = vtanh.pop %v4560
      %v4593 = vtanh.pop %v4561
      %v4594 = vtanh.pop %v4562
      %v4595 = vtanh.pop %v4563
      %v4596 = vtanh.pop %v4564
      %v4597 = vtanh.pop %v4565
      %v4598 = vtanh.pop %v4566
      %v4599 = vtanh.pop %v4567
      %v4600 = vtanh.pop %v4568
      %v4601 = vtanh.pop %v4569
      %v4602 = vtanh.pop %v4570
      %v4603 = vtanh.pop %v4571
      %v4604 = vtanh.pop %v4572
      %v4605 = vtanh.pop %v4573
      %v4606 = vtanh.pop %v4574
      %v4607 = vtanh.pop %v4575
      %v4608 = vtanh.pop %v4576
      %v4609 = vtanh.pop %v4577
      %v4610 = vsub.f32 1.0, %v4451
      %v4611 = vsub.f32 1.0, %v4453
      %v4612 = vsub.f32 1.0, %v4455
      %v4613 = vsub.f32 1.0, %v4457
      %v4614 = vsub.f32 1.0, %v4459
      %v4615 = vsub.f32 1.0, %v4461
      %v4616 = vsub.f32 1.0, %v4463
      %v4617 = vsub.f32 1.0, %v4465
      %v4618 = vsub.f32 1.0, %v4467
      %v4619 = vsub.f32 1.0, %v4469
      %v4620 = vsub.f32 1.0, %v4471
      %v4621 = vsub.f32 1.0, %v4473
      %v4622 = vsub.f32 1.0, %v4475
      %v4623 = vsub.f32 1.0, %v4477
      %v4624 = vsub.f32 1.0, %v4479
      %v4625 = vsub.f32 1.0, %v4481
      %v4626 = vsub.f32 1.0, %v4483
      %v4627 = vsub.f32 1.0, %v4485
      %v4628 = vsub.f32 1.0, %v4487
      %v4629 = vsub.f32 1.0, %v4489
      %v4630 = vsub.f32 1.0, %v4491
      %v4631 = vsub.f32 1.0, %v4493
      %v4632 = vsub.f32 1.0, %v4495
      %v4633 = vsub.f32 1.0, %v4497
      %v4634 = vsub.f32 1.0, %v4499
      %v4635 = vsub.f32 1.0, %v4501
      %v4636 = vsub.f32 1.0, %v4503
      %v4637 = vsub.f32 1.0, %v4505
      %v4638 = vsub.f32 1.0, %v4507
      %v4639 = vsub.f32 1.0, %v4509
      %v4640 = vsub.f32 1.0, %v4511
      %v4641 = vsub.f32 1.0, %v4513
      %v4642 = vmul.f32 %v4610, %v4578
      %v4643 = vmul.f32 %v4611, %v4579
      %v4644 = vmul.f32 %v4612, %v4580
      %v4645 = vmul.f32 %v4613, %v4581
      %v4646 = vmul.f32 %v4614, %v4582
      %v4647 = vmul.f32 %v4615, %v4583
      %v4648 = vmul.f32 %v4616, %v4584
      %v4649 = vmul.f32 %v4617, %v4585
      %v4650 = vmul.f32 %v4618, %v4586
      %v4651 = vmul.f32 %v4619, %v4587
      %v4652 = vmul.f32 %v4620, %v4588
      %v4653 = vmul.f32 %v4621, %v4589
      %v4654 = vmul.f32 %v4622, %v4590
      %v4655 = vmul.f32 %v4623, %v4591
      %v4656 = vmul.f32 %v4624, %v4592
      %v4657 = vmul.f32 %v4625, %v4593
      %v4658 = vmul.f32 %v4626, %v4594
      %v4659 = vmul.f32 %v4627, %v4595
      %v4660 = vmul.f32 %v4628, %v4596
      %v4661 = vmul.f32 %v4629, %v4597
      %v4662 = vmul.f32 %v4630, %v4598
      %v4663 = vmul.f32 %v4631, %v4599
      %v4664 = vmul.f32 %v4632, %v4600
      %v4665 = vmul.f32 %v4633, %v4601
      %v4666 = vmul.f32 %v4634, %v4602
      %v4667 = vmul.f32 %v4635, %v4603
      %v4668 = vmul.f32 %v4636, %v4604
      %v4669 = vmul.f32 %v4637, %v4605
      %v4670 = vmul.f32 %v4638, %v4606
      %v4671 = vmul.f32 %v4639, %v4607
      %v4672 = vmul.f32 %v4640, %v4608
      %v4673 = vmul.f32 %v4641, %v4609
      %v4674 = vmul.f32 %v4451, %v2603
      %v4675 = vmul.f32 %v4453, %v2604
      %v4676 = vmul.f32 %v4455, %v2605
      %v4677 = vmul.f32 %v4457, %v2606
      %v4678 = vmul.f32 %v4459, %v2607
      %v4679 = vmul.f32 %v4461, %v2608
      %v4680 = vmul.f32 %v4463, %v2609
      %v4681 = vmul.f32 %v4465, %v2610
      %v4682 = vmul.f32 %v4467, %v2611
      %v4683 = vmul.f32 %v4469, %v2612
      %v4684 = vmul.f32 %v4471, %v2613
      %v4685 = vmul.f32 %v4473, %v2614
      %v4686 = vmul.f32 %v4475, %v2615
      %v4687 = vmul.f32 %v4477, %v2616
      %v4688 = vmul.f32 %v4479, %v2617
      %v4689 = vmul.f32 %v4481, %v2618
      %v4690 = vmul.f32 %v4483, %v2619
      %v4691 = vmul.f32 %v4485, %v2620
      %v4692 = vmul.f32 %v4487, %v2621
      %v4693 = vmul.f32 %v4489, %v2622
      %v4694 = vmul.f32 %v4491, %v2623
      %v4695 = vmul.f32 %v4493, %v2624
      %v4696 = vmul.f32 %v4495, %v2625
      %v4697 = vmul.f32 %v4497, %v2626
      %v4698 = vmul.f32 %v4499, %v2627
      %v4699 = vmul.f32 %v4501, %v2628
      %v4700 = vmul.f32 %v4503, %v2629
      %v4701 = vmul.f32 %v4505, %v2630
      %v4702 = vmul.f32 %v4507, %v2631
      %v4703 = vmul.f32 %v4509, %v2632
      %v4704 = vmul.f32 %v4511, %v2633
      %v4705 = vmul.f32 %v4513, %v2634
      %v4706 = vadd.f32 %v4642, %v4674
      %v4707 = vadd.f32 %v4643, %v4675
      %v4708 = vadd.f32 %v4644, %v4676
      %v4709 = vadd.f32 %v4645, %v4677
      %v4710 = vadd.f32 %v4646, %v4678
      %v4711 = vadd.f32 %v4647, %v4679
      %v4712 = vadd.f32 %v4648, %v4680
      %v4713 = vadd.f32 %v4649, %v4681
      %v4714 = vadd.f32 %v4650, %v4682
      %v4715 = vadd.f32 %v4651, %v4683
      %v4716 = vadd.f32 %v4652, %v4684
      %v4717 = vadd.f32 %v4653, %v4685
      %v4718 = vadd.f32 %v4654, %v4686
      %v4719 = vadd.f32 %v4655, %v4687
      %v4720 = vadd.f32 %v4656, %v4688
      %v4721 = vadd.f32 %v4657, %v4689
      %v4722 = vadd.f32 %v4658, %v4690
      %v4723 = vadd.f32 %v4659, %v4691
      %v4724 = vadd.f32 %v4660, %v4692
      %v4725 = vadd.f32 %v4661, %v4693
      %v4726 = vadd.f32 %v4662, %v4694
      %v4727 = vadd.f32 %v4663, %v4695
      %v4728 = vadd.f32 %v4664, %v4696
      %v4729 = vadd.f32 %v4665, %v4697
      %v4730 = vadd.f32 %v4666, %v4698
      %v4731 = vadd.f32 %v4667, %v4699
      %v4732 = vadd.f32 %v4668, %v4700
      %v4733 = vadd.f32 %v4669, %v4701
      %v4734 = vadd.f32 %v4670, %v4702
      %v4735 = vadd.f32 %v4671, %v4703
      %v4736 = vadd.f32 %v4672, %v4704
      %v4737 = vadd.f32 %v4673, %v4705
      %4738 = vst [vmem:[%s305] sm:$0xff] %v4706
      %4739 = vst [vmem:[%s305 + $0x8] sm:$0xff] %v4707
      %4740 = vst [vmem:[%s305 + $0x10] sm:$0xff] %v4708
      %4741 = vst [vmem:[%s305 + $0x18] sm:$0xff] %v4709
      %4742 = vst [vmem:[%s305 + $0x20] sm:$0xff] %v4710
      %4743 = vst [vmem:[%s305 + $0x28] sm:$0xff] %v4711
      %4744 = vst [vmem:[%s305 + $0x30] sm:$0xff] %v4712
      %4745 = vst [vmem:[%s305 + $0x38] sm:$0xff] %v4713
      %4746 = vst [vmem:[%s305 + $0x40] sm:$0xff] %v4714
      %4747 = vst [vmem:[%s305 + $0x48] sm:$0xff] %v4715
      %4748 = vst [vmem:[%s305 + $0x50] sm:$0xff] %v4716
      %4749 = vst [vmem:[%s305 + $0x58] sm:$0xff] %v4717
      %4750 = vst [vmem:[%s305 + $0x60] sm:$0xff] %v4718
      %4751 = vst [vmem:[%s305 + $0x68] sm:$0xff] %v4719
      %4752 = vst [vmem:[%s305 + $0x70] sm:$0xff] %v4720
      %4753 = vst [vmem:[%s305 + $0x78] sm:$0xff] %v4721
      %4754 = vst [vmem:[%s305 + $0x80] sm:$0xff] %v4722
      %4755 = vst [vmem:[%s305 + $0x88] sm:$0xff] %v4723
      %4756 = vst [vmem:[%s305 + $0x90] sm:$0xff] %v4724
      %4757 = vst [vmem:[%s305 + $0x98] sm:$0xff] %v4725
      %4758 = vst [vmem:[%s305 + $0xa0] sm:$0xff] %v4726
      %4759 = vst [vmem:[%s305 + $0xa8] sm:$0xff] %v4727
      %4760 = vst [vmem:[%s305 + $0xb0] sm:$0xff] %v4728
      %4761 = vst [vmem:[%s305 + $0xb8] sm:$0xff] %v4729
      %4762 = vst [vmem:[%s305 + $0xc0] sm:$0xff] %v4730
      %4763 = vst [vmem:[%s305 + $0xc8] sm:$0xff] %v4731
      %4764 = vst [vmem:[%s305 + $0xd0] sm:$0xff] %v4732
      %4765 = vst [vmem:[%s305 + $0xd8] sm:$0xff] %v4733
      %4766 = vst [vmem:[%s305 + $0xe0] sm:$0xff] %v4734
      %4767 = vst [vmem:[%s305 + $0xe8] sm:$0xff] %v4735
      %4768 = vst [vmem:[%s305 + $0xf0] sm:$0xff] %v4736
      %4769 = vst [vmem:[%s305 + $0xf8] sm:$0xff] %v4737
      %s4770 = smul.u32 16, %s18
      %p4771 = scmp.lt.s32.totalorder %s4770, 31
      %s4772 = scalar_select %p4771, %s4770, 31
      %s4773 = smul.addr %s4772, 2
      %s4774 = smul.addr %s4773, 8
      %s4775 = scalar_lea.vmem %s7, %s4774
      // Predicated region
      $region49: #{dense_ggnn_forward.1} parent=47 // pred_check
        %p4776 = pneg %p193
      $region50: #{dense_ggnn_forward.1} parent=47 // pred_check_branch
        %4778 = sbr.rel (%p4776) target = $region52
      $region51: #{dense_ggnn_forward.1} parent=47 // pred_region
        %s4779 = smul.u32 16, %s18
      $region52: #{dense_ggnn_forward.1} parent=47 // pred_fallthru
        _
    $region48: #{dense_ggnn_forward.1} parent=5 // pred_fallthru
      _
    %p4780 = scmp.le.s32.totalorder 2, %s13
    // Predicated region
    $region53: #{dense_ggnn_forward.1} parent=5 // pred_check
      %p4781 = pneg %p4780
    $region54: #{dense_ggnn_forward.1} parent=5 // pred_check_branch
      %4783 = sbr.rel (%p4781) target = $region56
    $region55: #{dense_ggnn_forward.1} parent=5 // pred_region
      %s4784 = ssub.s32 %s13, 2
      // Predicated region
      $region57: #{dense_ggnn_forward.1} parent=55 // pred_check
        %p4785 = pneg %p199
      $region58: #{dense_ggnn_forward.1} parent=55 // pred_check_branch
        %4787 = sbr.rel (%p4785) target = $region60
      $region59: #{dense_ggnn_forward.1} parent=55 // pred_region
        %s4788 = smul.u32 16, %s19
        %p4789 = scmp.lt.s32.totalorder %s4788, 31
        %s4790 = scalar_select %p4789, %s4788, 31
        %s4791 = smul.addr %s4790, 2
        %s4792 = smul.addr %s4791, 8
        %s4793 = scalar_lea.vmem %s7, %s4792
      $region60: #{dense_ggnn_forward.1} parent=55 // pred_fallthru
        _
    $region56: #{dense_ggnn_forward.1} parent=5 // pred_fallthru
      _
  $region6: #{dense_ggnn_forward.1} parent=0 // loop_footer
    %s17 = sadd.s32 1, %s13
  $region7: #{dense_ggnn_forward.1} parent=0 // loop_footer_branch
    %12 = sbr.rel target = $region3
  $region8: #{dense_ggnn_forward.1} parent=0 // loop_exit
    _

</llo_original>
